<compile_context>
chip_gen: v6e
topology: v6e:2x2x1
jax: 0.10.0
libtpu: 0.0.40
codegen_flags: <defaults>
</compile_context>

<pallas_src>
import jax
import jax.numpy as jnp
from jax.experimental import pallas as pl
from jax.experimental.pallas import tpu as pltpu

TEXT_DIM, GRAPH_DIM, STANCE_DIM, KG_DIM = 384, 64, 3, 64
HIDDEN, NUM_CLASSES = 256, 4
GK_DIM = GRAPH_DIM + KG_DIM   # 128, graph++kg concat fed to block-diag weight
FUSED = 4 * HIDDEN            # 1024
OUT_PAD = 128                 # lane-dense classifier output (cols 4..127 zero)
BN_EPS = 1e-5
MAX_TILE_B = 256              # max batch tile for the grid
MIN_TILE_B = 16               # bf16 sublane packing (16 rows / packed tile)


def detector_kernel(
    text_ref, gk_ref, stance_ref,            # activations [TB, d]
    wt_ref, wgk_ref, ws_ref,                 # branch weights (BN folded)
    wgate_ref, wfus_ref, wcls_ref,           # gate / fusion / classifier
    misc_ref,                                # packed shifts+biases [3, 1024]
    out_ref,                                 # output [TB, OUT_PAD] f32
    fused_ref,                               # scratch [TB, FUSED] bf16
):
    misc = misc_ref[...]                                  # [3, 1024] f32
    shift = misc[0:1, :]                                  # 4 branch shifts, concat
    b_gate = misc[1:2, :]
    b_fus = misc[2:3, 0:HIDDEN]
    b_cls = misc[2:3, HIDDEN:HIDDEN + OUT_PAD]

    # ---- text branch (K=384 MXU dot) ------------------------------------
    t = jnp.maximum(
        jnp.dot(text_ref[...], wt_ref[...], preferred_element_type=jnp.float32)
        + shift[:, 0:HIDDEN], 0.0)
    fused_ref[:, 0:HIDDEN] = t.astype(jnp.bfloat16)

    # ---- graph + kg branches: one block-diagonal dot (K=128, N=512) -----
    gk = jnp.dot(gk_ref[...], wgk_ref[...], preferred_element_type=jnp.float32)
    g = jnp.maximum(gk[:, 0:HIDDEN] + shift[:, HIDDEN:2 * HIDDEN], 0.0)
    k = jnp.maximum(gk[:, HIDDEN:2 * HIDDEN] + shift[:, 3 * HIDDEN:4 * HIDDEN], 0.0)
    fused_ref[:, HIDDEN:2 * HIDDEN] = g.astype(jnp.bfloat16)
    fused_ref[:, 3 * HIDDEN:4 * HIDDEN] = k.astype(jnp.bfloat16)

    # ---- stance branch: K=3 -> three VPU broadcast FMAs (no padded MXU) -
    sx = stance_ref[...]                                  # [TB, 3]  f32
    ws = ws_ref[...]                                      # [3, 256] f32 (scale folded)
    s = jnp.maximum(
        sx[:, 0:1] * ws[0:1, :]
        + sx[:, 1:2] * ws[1:2, :]
        + sx[:, 2:3] * ws[2:3, :]
        + shift[:, 2 * HIDDEN:3 * HIDDEN],
        0.0)
    fused_ref[:, 2 * HIDDEN:3 * HIDDEN] = s.astype(jnp.bfloat16)

    # ---- gate (one K=1024 dot), sigmoid gating, fusion (one K=1024 dot) --
    fused = fused_ref[...]                                # [TB, 1024] bf16
    gl = jnp.dot(fused, wgate_ref[...],
                 preferred_element_type=jnp.float32) + b_gate
    sig = jax.nn.sigmoid(gl)                              # [TB, 1024] f32
    gated = (fused * sig).astype(jnp.bfloat16)            # f32 mul, bf16 for MXU

    h = jnp.maximum(
        jnp.dot(gated, wfus_ref[...], preferred_element_type=jnp.float32)
        + b_fus, 0.0)

    out_ref[...] = (
        jnp.dot(h.astype(jnp.bfloat16), wcls_ref[...],
                preferred_element_type=jnp.float32)
        + b_cls
    )


def init_params(key):
    """Synthetic DETECTORModel params, pre-folded/packed for the kernel."""
    ks = iter(jax.random.split(key, 32))

    def linear(in_dim, out_dim):
        bound = 1.0 / float(in_dim) ** 0.5
        w = jax.random.uniform(next(ks), (in_dim, out_dim), jnp.float32, -bound, bound)
        b = jax.random.uniform(next(ks), (out_dim,), jnp.float32, -bound, bound)
        return w, b

    def bn(dim):
        gamma = 1.0 + 0.1 * jax.random.normal(next(ks), (dim,), jnp.float32)
        beta = 0.1 * jax.random.normal(next(ks), (dim,), jnp.float32)
        rmean = 0.1 * jax.random.normal(next(ks), (dim,), jnp.float32)
        rvar = jax.random.uniform(next(ks), (dim,), jnp.float32, 0.5, 1.5)
        return gamma, beta, rmean, rvar

    p = {}
    folded = {}
    shifts = []
    for name, d in (("text", TEXT_DIM), ("graph", GRAPH_DIM),
                    ("stance", STANCE_DIM), ("kg", KG_DIM)):
        w, b = linear(d, HIDDEN)
        gamma, beta, rmean, rvar = bn(HIDDEN)
        scale = gamma / jnp.sqrt(rvar + BN_EPS)
        folded[name] = w * scale[None, :]          # fold BN scale into weight cols
        shifts.append((b - rmean) * scale + beta)

    p["w_text"] = folded["text"].astype(jnp.bfloat16)
    p["w_stance"] = folded["stance"]               # [3, 256] f32, VPU path

    # Block-diagonal graph/kg weight: [128, 512], graph top-left, kg bottom-right.
    wgk = jnp.zeros((GK_DIM, 2 * HIDDEN), jnp.float32)
    wgk = wgk.at[:GRAPH_DIM, :HIDDEN].set(folded["graph"])
    wgk = wgk.at[GRAPH_DIM:, HIDDEN:].set(folded["kg"])
    p["w_gk"] = wgk.astype(jnp.bfloat16)

    wgate, bgate = linear(FUSED, FUSED)
    wfus, bfus = linear(FUSED, HIDDEN)
    wcls, bcls = linear(HIDDEN, NUM_CLASSES)

    p["w_gate"] = wgate.astype(jnp.bfloat16)
    p["w_fus"] = wfus.astype(jnp.bfloat16)
    wcls_pad = jnp.zeros((HIDDEN, OUT_PAD), jnp.float32).at[:, :NUM_CLASSES].set(wcls)
    p["w_cls"] = wcls_pad.astype(jnp.bfloat16)

    misc = jnp.zeros((3, FUSED), jnp.float32)
    misc = misc.at[0, :].set(jnp.concatenate(shifts))
    misc = misc.at[1, :].set(bgate)
    misc = misc.at[2, :HIDDEN].set(bfus)
    misc = misc.at[2, HIDDEN:HIDDEN + NUM_CLASSES].set(bcls)
    p["misc"] = misc
    return p


def _round_up(x, m):
    return ((x + m - 1) // m) * m


def _choose_tiling(batch):
    """Adaptive batch tiling: minimal padding, >=2 grid steps for v7x megacore."""
    n_steps = -(-batch // MAX_TILE_B)                  # ceil
    if n_steps < 2 and batch > MIN_TILE_B:
        n_steps = 2                                    # shard across 2 TCs on v7x
    tile_b = _round_up(-(-batch // n_steps), MIN_TILE_B)
    return tile_b, n_steps


def detector_forward(params, text, graph, stance, kg):
    B = text.shape[0]
    tile_b, n_steps = _choose_tiling(B)
    b_pad = tile_b * n_steps

    def prep(x, dtype):
        x = x.astype(dtype)
        if b_pad != B:
            x = jnp.pad(x, ((0, b_pad - B), (0, 0)))
        return x

    text_p = prep(text, jnp.bfloat16)
    gk_p = prep(jnp.concatenate([graph, kg], axis=1), jnp.bfloat16)
    stance_p = prep(stance, jnp.float32)

    act_spec = lambda d: pl.BlockSpec((tile_b, d), lambda i: (i, 0))
    res_spec = lambda shape: pl.BlockSpec(shape, lambda i: (0, 0))  # VMEM-resident

    out = pl.pallas_call(
        detector_kernel,
        out_shape=jax.ShapeDtypeStruct((b_pad, OUT_PAD), jnp.float32),
        grid=(n_steps,),
        in_specs=[
            act_spec(TEXT_DIM), act_spec(GK_DIM), act_spec(STANCE_DIM),
            res_spec((TEXT_DIM, HIDDEN)),
            res_spec((GK_DIM, 2 * HIDDEN)),
            res_spec((STANCE_DIM, HIDDEN)),
            res_spec((FUSED, FUSED)),
            res_spec((FUSED, HIDDEN)),
            res_spec((HIDDEN, OUT_PAD)),
            res_spec((3, FUSED)),
        ],
        out_specs=pl.BlockSpec((tile_b, OUT_PAD), lambda i: (i, 0)),
        scratch_shapes=[pltpu.VMEM((tile_b, FUSED), jnp.bfloat16)],
        compiler_params=pltpu.CompilerParams(
            dimension_semantics=("parallel",)),
    )(
        text_p, gk_p, stance_p,
        params["w_text"], params["w_gk"], params["w_stance"],
        params["w_gate"], params["w_fus"], params["w_cls"], params["misc"],
    )
    return out[:B, :NUM_CLASSES]


def detector_reference(params, text, graph, stance, kg):
    """Plain-JAX reference with identical folded-BN / bf16-weight semantics."""
    misc = params["misc"]
    shift = misc[0:1, :]
    b_gate = misc[1:2, :]
    b_fus = misc[2:3, 0:HIDDEN]
    b_cls = misc[2:3, HIDDEN:HIDDEN + NUM_CLASSES]

    t = jnp.maximum(
        jnp.dot(text.astype(jnp.bfloat16), params["w_text"],
                preferred_element_type=jnp.float32) + shift[:, 0:HIDDEN], 0.0)
    gk_in = jnp.concatenate([graph, kg], axis=1).astype(jnp.bfloat16)
    gk = jnp.dot(gk_in, params["w_gk"], preferred_element_type=jnp.float32)
    g = jnp.maximum(gk[:, 0:HIDDEN] + shift[:, HIDDEN:2 * HIDDEN], 0.0)
    k = jnp.maximum(gk[:, HIDDEN:] + shift[:, 3 * HIDDEN:4 * HIDDEN], 0.0)
    s = jnp.maximum(stance @ params["w_stance"] + shift[:, 2 * HIDDEN:3 * HIDDEN], 0.0)

    fused = jnp.concatenate([t, g, s, k], axis=1).astype(jnp.bfloat16)
    gate = jax.nn.sigmoid(
        jnp.dot(fused, params["w_gate"], preferred_element_type=jnp.float32) + b_gate)
    gated = (fused * gate).astype(jnp.bfloat16)
    h = jnp.maximum(
        jnp.dot(gated, params["w_fus"], preferred_element_type=jnp.float32) + b_fus, 0.0)
    return jnp.dot(h.astype(jnp.bfloat16), params["w_cls"][:, :NUM_CLASSES],
                   preferred_element_type=jnp.float32) + b_cls


if __name__ == "__main__":
    key = jax.random.PRNGKey(0)
    kp, kd = jax.random.split(key, 2)
    params = init_params(kp)
    fwd = jax.jit(detector_forward)

    for B in (8, 40):   # 8 -> single grid step; 40 -> two steps (padded tiles)
        kt, kgr, kst, kkg = jax.random.split(jax.random.fold_in(kd, B), 4)
        text = jax.random.normal(kt, (B, TEXT_DIM), jnp.float32)
        graph = jax.random.normal(kgr, (B, GRAPH_DIM), jnp.float32)
        stance = jax.random.normal(kst, (B, STANCE_DIM), jnp.float32)
        kg = jax.random.normal(kkg, (B, KG_DIM), jnp.float32)

        out = jax.block_until_ready(fwd(params, text, graph, stance, kg))
        ref = detector_reference(params, text, graph, stance, kg)
        assert out.shape == (B, NUM_CLASSES)
        assert jnp.allclose(out, ref, atol=1e-2, rtol=1e-2), (
            f"mismatch vs reference at B={B}, max abs diff "
            f"{float(jnp.max(jnp.abs(out - ref)))}")

    print("KERNEL_OK")
</pallas_src>

<mosaic_0001>
module attributes {stable_mosaic.version = 11 : i64} {
  func.func @detector_kernel(%arg0: i32, %arg1: memref<16x384xbf16, #tpu.memory_space<vmem>>, %arg2: memref<16x128xbf16, #tpu.memory_space<vmem>>, %arg3: memref<16x3xf32, #tpu.memory_space<vmem>>, %arg4: memref<384x256xbf16, #tpu.memory_space<vmem>>, %arg5: memref<128x512xbf16, #tpu.memory_space<vmem>>, %arg6: memref<3x256xf32, #tpu.memory_space<vmem>>, %arg7: memref<1024x1024xbf16, #tpu.memory_space<vmem>>, %arg8: memref<1024x256xbf16, #tpu.memory_space<vmem>>, %arg9: memref<256x128xbf16, #tpu.memory_space<vmem>>, %arg10: memref<3x1024xf32, #tpu.memory_space<vmem>>, %arg11: memref<16x128xf32, #tpu.memory_space<vmem>>, %arg12: memref<16x1024xbf16, #tpu.memory_space<vmem>>) attributes {dimension_semantics = [#tpu.dimension_semantics<parallel>], iteration_bounds = array<i64: 1>, scalar_prefetch = 0 : i64, scratch_operands = 1 : i64, tpu.core_type = #tpu.core_type<tc>, window_params = [{transform_indices = @transform_0, window_bounds = array<i64: 16, 384>}, {transform_indices = @transform_1, window_bounds = array<i64: 16, 128>}, {transform_indices = @transform_2, window_bounds = array<i64: 16, 3>}, {pipeline_mode = #tpu.pipeline_mode<synchronous>, transform_indices = @transform_3, window_bounds = array<i64: 384, 256>}, {pipeline_mode = #tpu.pipeline_mode<synchronous>, transform_indices = @transform_4, window_bounds = array<i64: 128, 512>}, {pipeline_mode = #tpu.pipeline_mode<synchronous>, transform_indices = @transform_5, window_bounds = array<i64: 3, 256>}, {pipeline_mode = #tpu.pipeline_mode<synchronous>, transform_indices = @transform_6, window_bounds = array<i64: 1024, 1024>}, {pipeline_mode = #tpu.pipeline_mode<synchronous>, transform_indices = @transform_7, window_bounds = array<i64: 1024, 256>}, {pipeline_mode = #tpu.pipeline_mode<synchronous>, transform_indices = @transform_8, window_bounds = array<i64: 256, 128>}, {pipeline_mode = #tpu.pipeline_mode<synchronous>, transform_indices = @transform_9, window_bounds = array<i64: 3, 1024>}, {transform_indices = @transform_10, window_bounds = array<i64: 16, 128>}]} {
    %c0 = arith.constant 0 : index
    %c0_0 = arith.constant 0 : index
    %0 = vector.load %arg10[%c0, %c0_0] : memref<3x1024xf32, #tpu.memory_space<vmem>>, vector<3x1024xf32>
    %1 = vector.extract_strided_slice %0 {offsets = [0, 0], sizes = [1, 1024], strides = [1, 1]} : vector<3x1024xf32> to vector<1x1024xf32>
    %2 = vector.extract_strided_slice %0 {offsets = [1, 0], sizes = [1, 1024], strides = [1, 1]} : vector<3x1024xf32> to vector<1x1024xf32>
    %3 = vector.extract_strided_slice %0 {offsets = [2, 0], sizes = [1, 256], strides = [1, 1]} : vector<3x1024xf32> to vector<1x256xf32>
    %4 = vector.extract_strided_slice %0 {offsets = [2, 256], sizes = [1, 128], strides = [1, 1]} : vector<3x1024xf32> to vector<1x128xf32>
    %c0_1 = arith.constant 0 : index
    %c0_2 = arith.constant 0 : index
    %5 = vector.load %arg1[%c0_1, %c0_2] : memref<16x384xbf16, #tpu.memory_space<vmem>>, vector<16x384xbf16>
    %c0_3 = arith.constant 0 : index
    %c0_4 = arith.constant 0 : index
    %6 = vector.load %arg4[%c0_3, %c0_4] : memref<384x256xbf16, #tpu.memory_space<vmem>>, vector<384x256xbf16>
    %cst = arith.constant dense<0.000000e+00> : vector<16x256xf32>
    %7 = tpu.matmul %5, %6, %cst {dimension_numbers = #tpu.dot_dimension_numbers<[1], [0], [0], [1], [0, 0, 1, 1], [], []>} : vector<16x384xbf16>, vector<384x256xbf16>, vector<16x256xf32> -> vector<16x256xf32>
    %8 = vector.extract_strided_slice %1 {offsets = [0, 0], sizes = [1, 256], strides = [1, 1]} : vector<1x1024xf32> to vector<1x256xf32>
    %9 = vector.broadcast %8 : vector<1x256xf32> to vector<16x256xf32>
    %10 = arith.addf %7, %9 : vector<16x256xf32>
    %cst_5 = arith.constant 0.000000e+00 : f32
    %11 = vector.broadcast %cst_5 : f32 to vector<16x256xf32>
    %12 = arith.maximumf %10, %11 : vector<16x256xf32>
    %13 = arith.truncf %12 : vector<16x256xf32> to vector<16x256xbf16>
    %c0_6 = arith.constant 0 : index
    %c0_7 = arith.constant 0 : index
    %14 = vector.load %arg12[%c0_6, %c0_7] : memref<16x1024xbf16, #tpu.memory_space<vmem>>, vector<16x256xbf16>
    tpu.vector_store %arg12[%c0_6, %c0_7], %13 {strides = array<i32>} : memref<16x1024xbf16, #tpu.memory_space<vmem>>, vector<16x256xbf16>,
    %c0_8 = arith.constant 0 : index
    %c0_9 = arith.constant 0 : index
    %15 = vector.load %arg2[%c0_8, %c0_9] : memref<16x128xbf16, #tpu.memory_space<vmem>>, vector<16x128xbf16>
    %c0_10 = arith.constant 0 : index
    %c0_11 = arith.constant 0 : index
    %16 = vector.load %arg5[%c0_10, %c0_11] : memref<128x512xbf16, #tpu.memory_space<vmem>>, vector<128x512xbf16>
    %cst_12 = arith.constant dense<0.000000e+00> : vector<16x512xf32>
    %17 = tpu.matmul %15, %16, %cst_12 {dimension_numbers = #tpu.dot_dimension_numbers<[1], [0], [0], [1], [0, 0, 1, 1], [], []>} : vector<16x128xbf16>, vector<128x512xbf16>, vector<16x512xf32> -> vector<16x512xf32>
    %18 = vector.extract_strided_slice %17 {offsets = [0, 0], sizes = [16, 256], strides = [1, 1]} : vector<16x512xf32> to vector<16x256xf32>
    %19 = vector.extract_strided_slice %1 {offsets = [0, 256], sizes = [1, 256], strides = [1, 1]} : vector<1x1024xf32> to vector<1x256xf32>
    %20 = vector.broadcast %19 : vector<1x256xf32> to vector<16x256xf32>
    %21 = arith.addf %18, %20 : vector<16x256xf32>
    %cst_13 = arith.constant 0.000000e+00 : f32
    %22 = vector.broadcast %cst_13 : f32 to vector<16x256xf32>
    %23 = arith.maximumf %21, %22 : vector<16x256xf32>
    %24 = vector.extract_strided_slice %17 {offsets = [0, 256], sizes = [16, 256], strides = [1, 1]} : vector<16x512xf32> to vector<16x256xf32>
    %25 = vector.extract_strided_slice %1 {offsets = [0, 768], sizes = [1, 256], strides = [1, 1]} : vector<1x1024xf32> to vector<1x256xf32>
    %26 = vector.broadcast %25 : vector<1x256xf32> to vector<16x256xf32>
    %27 = arith.addf %24, %26 : vector<16x256xf32>
    %cst_14 = arith.constant 0.000000e+00 : f32
    %28 = vector.broadcast %cst_14 : f32 to vector<16x256xf32>
    %29 = arith.maximumf %27, %28 : vector<16x256xf32>
    %30 = arith.truncf %23 : vector<16x256xf32> to vector<16x256xbf16>
    %c0_15 = arith.constant 0 : index
    %c256 = arith.constant 256 : index
    %31 = vector.load %arg12[%c0_15, %c256] : memref<16x1024xbf16, #tpu.memory_space<vmem>>, vector<16x256xbf16>
    tpu.vector_store %arg12[%c0_15, %c256], %30 {strides = array<i32>} : memref<16x1024xbf16, #tpu.memory_space<vmem>>, vector<16x256xbf16>,
    %32 = arith.truncf %29 : vector<16x256xf32> to vector<16x256xbf16>
    %c0_16 = arith.constant 0 : index
    %c768 = arith.constant 768 : index
    %33 = vector.load %arg12[%c0_16, %c768] : memref<16x1024xbf16, #tpu.memory_space<vmem>>, vector<16x256xbf16>
    tpu.vector_store %arg12[%c0_16, %c768], %32 {strides = array<i32>} : memref<16x1024xbf16, #tpu.memory_space<vmem>>, vector<16x256xbf16>,
    %c0_17 = arith.constant 0 : index
    %c0_18 = arith.constant 0 : index
    %34 = vector.load %arg3[%c0_17, %c0_18] : memref<16x3xf32, #tpu.memory_space<vmem>>, vector<16x3xf32>
    %c0_19 = arith.constant 0 : index
    %c0_20 = arith.constant 0 : index
    %35 = vector.load %arg6[%c0_19, %c0_20] : memref<3x256xf32, #tpu.memory_space<vmem>>, vector<3x256xf32>
    %36 = vector.extract_strided_slice %34 {offsets = [0, 0], sizes = [16, 1], strides = [1, 1]} : vector<16x3xf32> to vector<16x1xf32>
    %37 = vector.extract_strided_slice %35 {offsets = [0, 0], sizes = [1, 256], strides = [1, 1]} : vector<3x256xf32> to vector<1x256xf32>
    %38 = vector.broadcast %36 : vector<16x1xf32> to vector<16x256xf32>
    %39 = vector.broadcast %37 : vector<1x256xf32> to vector<16x256xf32>
    %40 = arith.mulf %38, %39 : vector<16x256xf32>
    %41 = vector.extract_strided_slice %34 {offsets = [0, 1], sizes = [16, 1], strides = [1, 1]} : vector<16x3xf32> to vector<16x1xf32>
    %42 = vector.extract_strided_slice %35 {offsets = [1, 0], sizes = [1, 256], strides = [1, 1]} : vector<3x256xf32> to vector<1x256xf32>
    %43 = vector.broadcast %41 : vector<16x1xf32> to vector<16x256xf32>
    %44 = vector.broadcast %42 : vector<1x256xf32> to vector<16x256xf32>
    %45 = arith.mulf %43, %44 : vector<16x256xf32>
    %46 = arith.addf %40, %45 : vector<16x256xf32>
    %47 = vector.extract_strided_slice %34 {offsets = [0, 2], sizes = [16, 1], strides = [1, 1]} : vector<16x3xf32> to vector<16x1xf32>
    %48 = vector.extract_strided_slice %35 {offsets = [2, 0], sizes = [1, 256], strides = [1, 1]} : vector<3x256xf32> to vector<1x256xf32>
    %49 = vector.broadcast %47 : vector<16x1xf32> to vector<16x256xf32>
    %50 = vector.broadcast %48 : vector<1x256xf32> to vector<16x256xf32>
    %51 = arith.mulf %49, %50 : vector<16x256xf32>
    %52 = arith.addf %46, %51 : vector<16x256xf32>
    %53 = vector.extract_strided_slice %1 {offsets = [0, 512], sizes = [1, 256], strides = [1, 1]} : vector<1x1024xf32> to vector<1x256xf32>
    %54 = vector.broadcast %53 : vector<1x256xf32> to vector<16x256xf32>
    %55 = arith.addf %52, %54 : vector<16x256xf32>
    %cst_21 = arith.constant 0.000000e+00 : f32
    %56 = vector.broadcast %cst_21 : f32 to vector<16x256xf32>
    %57 = arith.maximumf %55, %56 : vector<16x256xf32>
    %58 = arith.truncf %57 : vector<16x256xf32> to vector<16x256xbf16>
    %c0_22 = arith.constant 0 : index
    %c512 = arith.constant 512 : index
    %59 = vector.load %arg12[%c0_22, %c512] : memref<16x1024xbf16, #tpu.memory_space<vmem>>, vector<16x256xbf16>
    tpu.vector_store %arg12[%c0_22, %c512], %58 {strides = array<i32>} : memref<16x1024xbf16, #tpu.memory_space<vmem>>, vector<16x256xbf16>,
    %c0_23 = arith.constant 0 : index
    %c0_24 = arith.constant 0 : index
    %60 = vector.load %arg12[%c0_23, %c0_24] : memref<16x1024xbf16, #tpu.memory_space<vmem>>, vector<16x1024xbf16>
    %c0_25 = arith.constant 0 : index
    %c0_26 = arith.constant 0 : index
    %61 = vector.load %arg7[%c0_25, %c0_26] : memref<1024x1024xbf16, #tpu.memory_space<vmem>>, vector<1024x1024xbf16>
    %cst_27 = arith.constant dense<0.000000e+00> : vector<16x1024xf32>
    %62 = tpu.matmul %60, %61, %cst_27 {dimension_numbers = #tpu.dot_dimension_numbers<[1], [0], [0], [1], [0, 0, 1, 1], [], []>} : vector<16x1024xbf16>, vector<1024x1024xbf16>, vector<16x1024xf32> -> vector<16x1024xf32>
    %63 = vector.broadcast %2 : vector<1x1024xf32> to vector<16x1024xf32>
    %64 = arith.addf %62, %63 : vector<16x1024xf32>
    %65 = arith.negf %64 : vector<16x1024xf32>
    %66 = math.exp %65 : vector<16x1024xf32>
    %cst_28 = arith.constant 1.000000e+00 : f32
    %67 = vector.broadcast %cst_28 : f32 to vector<16x1024xf32>
    %68 = arith.addf %67, %66 : vector<16x1024xf32>
    %69 = arith.divf %67, %68 : vector<16x1024xf32>
    %70 = arith.extf %60 : vector<16x1024xbf16> to vector<16x1024xf32>
    %71 = arith.mulf %70, %69 : vector<16x1024xf32>
    %72 = arith.truncf %71 : vector<16x1024xf32> to vector<16x1024xbf16>
    %c0_29 = arith.constant 0 : index
    %c0_30 = arith.constant 0 : index
    %73 = vector.load %arg8[%c0_29, %c0_30] : memref<1024x256xbf16, #tpu.memory_space<vmem>>, vector<1024x256xbf16>
    %cst_31 = arith.constant dense<0.000000e+00> : vector<16x256xf32>
    %74 = tpu.matmul %72, %73, %cst_31 {dimension_numbers = #tpu.dot_dimension_numbers<[1], [0], [0], [1], [0, 0, 1, 1], [], []>} : vector<16x1024xbf16>, vector<1024x256xbf16>, vector<16x256xf32> -> vector<16x256xf32>
    %75 = vector.broadcast %3 : vector<1x256xf32> to vector<16x256xf32>
    %76 = arith.addf %74, %75 : vector<16x256xf32>
    %cst_32 = arith.constant 0.000000e+00 : f32
    %77 = vector.broadcast %cst_32 : f32 to vector<16x256xf32>
    %78 = arith.maximumf %76, %77 : vector<16x256xf32>
    %79 = arith.truncf %78 : vector<16x256xf32> to vector<16x256xbf16>
    %c0_33 = arith.constant 0 : index
    %c0_34 = arith.constant 0 : index
    %80 = vector.load %arg9[%c0_33, %c0_34] : memref<256x128xbf16, #tpu.memory_space<vmem>>, vector<256x128xbf16>
    %cst_35 = arith.constant dense<0.000000e+00> : vector<16x128xf32>
    %81 = tpu.matmul %79, %80, %cst_35 {dimension_numbers = #tpu.dot_dimension_numbers<[1], [0], [0], [1], [0, 0, 1, 1], [], []>} : vector<16x256xbf16>, vector<256x128xbf16>, vector<16x128xf32> -> vector<16x128xf32>
    %82 = vector.broadcast %4 : vector<1x128xf32> to vector<16x128xf32>
    %83 = arith.addf %81, %82 : vector<16x128xf32>
    %c0_36 = arith.constant 0 : index
    %c0_37 = arith.constant 0 : index
    %84 = vector.load %arg11[%c0_36, %c0_37] : memref<16x128xf32, #tpu.memory_space<vmem>>, vector<16x128xf32>
    tpu.vector_store %arg11[%c0_36, %c0_37], %83 {strides = array<i32>} : memref<16x128xf32, #tpu.memory_space<vmem>>, vector<16x128xf32>,
    return
  }
  func.func @transform_0(%arg0: i32) -> (i32, i32) {
    %c0_i32 = arith.constant 0 : i32
    %c0_i32_0 = arith.constant 0 : i32
    return %arg0, %c0_i32 : i32, i32
  }
  func.func @transform_1(%arg0: i32) -> (i32, i32) {
    %c0_i32 = arith.constant 0 : i32
    %c0_i32_0 = arith.constant 0 : i32
    return %arg0, %c0_i32 : i32, i32
  }
  func.func @transform_2(%arg0: i32) -> (i32, i32) {
    %c0_i32 = arith.constant 0 : i32
    %c0_i32_0 = arith.constant 0 : i32
    return %arg0, %c0_i32 : i32, i32
  }
  func.func @transform_3(%arg0: i32) -> (i32, i32) {
    %c0_i32 = arith.constant 0 : i32
    %c0_i32_0 = arith.constant 0 : i32
    %c0_i32_1 = arith.constant 0 : i32
    return %c0_i32, %c0_i32_0 : i32, i32
  }
  func.func @transform_4(%arg0: i32) -> (i32, i32) {
    %c0_i32 = arith.constant 0 : i32
    %c0_i32_0 = arith.constant 0 : i32
    %c0_i32_1 = arith.constant 0 : i32
    return %c0_i32, %c0_i32_0 : i32, i32
  }
  func.func @transform_5(%arg0: i32) -> (i32, i32) {
    %c0_i32 = arith.constant 0 : i32
    %c0_i32_0 = arith.constant 0 : i32
    %c0_i32_1 = arith.constant 0 : i32
    return %c0_i32, %c0_i32_0 : i32, i32
  }
  func.func @transform_6(%arg0: i32) -> (i32, i32) {
    %c0_i32 = arith.constant 0 : i32
    %c0_i32_0 = arith.constant 0 : i32
    %c0_i32_1 = arith.constant 0 : i32
    return %c0_i32, %c0_i32_0 : i32, i32
  }
  func.func @transform_7(%arg0: i32) -> (i32, i32) {
    %c0_i32 = arith.constant 0 : i32
    %c0_i32_0 = arith.constant 0 : i32
    %c0_i32_1 = arith.constant 0 : i32
    return %c0_i32, %c0_i32_0 : i32, i32
  }
  func.func @transform_8(%arg0: i32) -> (i32, i32) {
    %c0_i32 = arith.constant 0 : i32
    %c0_i32_0 = arith.constant 0 : i32
    %c0_i32_1 = arith.constant 0 : i32
    return %c0_i32, %c0_i32_0 : i32, i32
  }
  func.func @transform_9(%arg0: i32) -> (i32, i32) {
    %c0_i32 = arith.constant 0 : i32
    %c0_i32_0 = arith.constant 0 : i32
    %c0_i32_1 = arith.constant 0 : i32
    return %c0_i32, %c0_i32_0 : i32, i32
  }
  func.func @transform_10(%arg0: i32) -> (i32, i32) {
    %c0_i32 = arith.constant 0 : i32
    %c0_i32_0 = arith.constant 0 : i32
    return %arg0, %c0_i32 : i32, i32
  }
}

</mosaic_0001>

<llo_original>
// kernel: detector_forward.1
$region0: #{detector_forward.1}
  #allocation0 [shape = 'u32[]', space=smem, size = 0x4, offset = 0x4, fixed_abs, tag = 'smem constant byte address 0x4 - core index']
  #allocation1 [shape = 'u32[144,128]{1,0:T(1,128)}', space=vmem, size = 0x12000, scoped, tag = 'internal scratch']
  #allocation2 [shape = 'bf16[16,1024]{1,0:T(8,128)(2,1)}', space=vmem, size = 0x8000, scoped, tag = 'scratch operand']
  %s0 = inlined_call_operand.vmem [shape: bf16[16,384], index: 0, kind: input, shape index: {}]
  %s1 = inlined_call_operand.vmem [shape: bf16[16,128], index: 1, kind: input, shape index: {}]
  %s2 = inlined_call_operand.vmem [shape: f32[16,3], index: 2, kind: input, shape index: {}]
  %s3 = inlined_call_operand.hbm [shape: bf16[384,256], index: 3, kind: input, shape index: {}]
  %s4 = inlined_call_operand.hbm [shape: bf16[128,512], index: 4, kind: input, shape index: {}]
  %s5 = inlined_call_operand.hbm [shape: f32[3,256], index: 5, kind: input, shape index: {}]
  %s6 = inlined_call_operand.hbm [shape: bf16[1024,1024], index: 6, kind: input, shape index: {}]
  %s7 = inlined_call_operand.hbm [shape: bf16[1024,256], index: 7, kind: input, shape index: {}]
  %s8 = inlined_call_operand.hbm [shape: bf16[256,128], index: 8, kind: input, shape index: {}]
  %s9 = inlined_call_operand.hbm [shape: f32[3,1024], index: 9, kind: input, shape index: {}]
  %s10 = inlined_call_operand.vmem [shape: f32[16,128], index: 10, kind: output, shape index: {}]
  %s11 = sld [smem:[#allocation0]]
  $region78: #{detector_forward.1} parent=0
    _
  %s13 = ssub.s32 1, %s11
  %s14 = scalar_select 0, %s13, %s11
  $region1: #{detector_forward.1} parent=0
    #allocation3 [shape = 'u8[196608]{0}', space=vmem, size = 0x30000, scoped, tag = 'input window, operand 3, single buffered']
    #allocation4 [shape = 's32[1]{0}', space=sflag, size = 0x4, scoped, tag = 'scoped memory for detector_forward.1']
    #allocation5 [shape = 'u8[131072]{0}', space=vmem, size = 0x20000, scoped, tag = 'input window, operand 4, single buffered']
    #allocation6 [shape = 's32[1]{0}', space=sflag, size = 0x4, scoped, tag = 'scoped memory for detector_forward.1']
    #allocation7 [shape = 'u8[4096]{0}', space=vmem, size = 0x1000, scoped, tag = 'input window, operand 5, single buffered']
    #allocation8 [shape = 'u8[2097152]{0}', space=vmem, size = 0x200000, scoped, tag = 'input window, operand 6, single buffered']
    #allocation9 [shape = 's32[1]{0}', space=sflag, size = 0x4, scoped, tag = 'scoped memory for detector_forward.1']
    #allocation10 [shape = 'u8[524288]{0}', space=vmem, size = 0x80000, scoped, tag = 'input window, operand 7, single buffered']
    #allocation11 [shape = 'u8[65536]{0}', space=vmem, size = 0x10000, scoped, tag = 'input window, operand 8, single buffered']
    #allocation12 [shape = 's32[1]{0}', space=sflag, size = 0x4, scoped, tag = 'scoped memory for detector_forward.1']
    #allocation13 [shape = 'u8[16384]{0}', space=vmem, size = 0x4000, scoped, tag = 'input window, operand 9, single buffered']
    %15 = vsyncpa [#allocation4], 0
    %16 = vsyncpa [#allocation6], 0
    %17 = vsyncpa [#allocation9], 0
    %18 = vsyncpa [#allocation12], 0
    // Predicated region
    $region2: #{detector_forward.1} parent=1 // pred_check
      _
    $region3: #{detector_forward.1} parent=1 // pred_check_branch
      %20 = sbr.rel (0) target = $region5
    $region4: #{detector_forward.1} parent=1 // pred_region
      _
    $region5: #{detector_forward.1} parent=1 // pred_fallthru
      _
    // Predicated region
    $region6: #{detector_forward.1} parent=1 // pred_check
      _
    $region7: #{detector_forward.1} parent=1 // pred_check_branch
      %22 = sbr.rel (0) target = $region9
    $region8: #{detector_forward.1} parent=1 // pred_region
      _
    $region9: #{detector_forward.1} parent=1 // pred_fallthru
      _
    // Predicated region
    $region10: #{detector_forward.1} parent=1 // pred_check
      _
    $region11: #{detector_forward.1} parent=1 // pred_check_branch
      %24 = sbr.rel (0) target = $region13
    $region12: #{detector_forward.1} parent=1 // pred_region
      _
    $region13: #{detector_forward.1} parent=1 // pred_fallthru
      _
    // Predicated region
    $region14: #{detector_forward.1} parent=1 // pred_check
      _
    $region15: #{detector_forward.1} parent=1 // pred_check_branch
      %26 = sbr.rel (0) target = $region17
    $region16: #{detector_forward.1} parent=1 // pred_region
      %s28 = ssub.s32 6144, 6144
      %29 = vsyncadd [#allocation4], %s28
      %s30 = sshll.u32 [#allocation3], 4
      %s31 = int_to_ptr.vmem [resolvable:$true] %s30
      %36 = dma.hbm_to_vmem [thread:$0]  %s3, 6144, %s31, [#allocation4], 128, 128, 8
    $region17: #{detector_forward.1} parent=1 // pred_fallthru
      _
    // Predicated region
    $region18: #{detector_forward.1} parent=1 // pred_check
      _
    $region19: #{detector_forward.1} parent=1 // pred_check_branch
      %38 = sbr.rel (0) target = $region21
    $region20: #{detector_forward.1} parent=1 // pred_region
      %s40 = ssub.s32 4096, 4096
      %41 = vsyncadd [#allocation6], %s40
      %s42 = sshll.u32 [#allocation5], 4
      %s43 = int_to_ptr.vmem [resolvable:$true] %s42
      %48 = dma.hbm_to_vmem [thread:$0]  %s4, 4096, %s43, [#allocation6], 256, 256, 16
    $region21: #{detector_forward.1} parent=1 // pred_fallthru
      _
    // Predicated region
    $region22: #{detector_forward.1} parent=1 // pred_check
      _
    $region23: #{detector_forward.1} parent=1 // pred_check_branch
      %50 = sbr.rel (0) target = $region25
    $region24: #{detector_forward.1} parent=1 // pred_region
      %s52 = ssub.s32 128, 128
      %53 = vsyncadd [#allocation6], %s52
      %s55 = sshll.u32 [#allocation7], 4
      %s56 = int_to_ptr.vmem [resolvable:$true] %s55
      %58 = dma.hbm_to_vmem [thread:$0]  %s5, 128, %s56, [#allocation6]
    $region25: #{detector_forward.1} parent=1 // pred_fallthru
      _
    // Predicated region
    $region26: #{detector_forward.1} parent=1 // pred_check
      _
    $region27: #{detector_forward.1} parent=1 // pred_check_branch
      %60 = sbr.rel (0) target = $region29
    $region28: #{detector_forward.1} parent=1 // pred_region
      %s62 = ssub.s32 65536, 65536
      %63 = vsyncadd [#allocation9], %s62
      %s64 = sshll.u32 [#allocation8], 4
      %s65 = int_to_ptr.vmem [resolvable:$true] %s64
      %70 = dma.hbm_to_vmem [thread:$0]  %s6, 65536, %s65, [#allocation9], 512, 512, 32
    $region29: #{detector_forward.1} parent=1 // pred_fallthru
      _
    // Predicated region
    $region30: #{detector_forward.1} parent=1 // pred_check
      _
    $region31: #{detector_forward.1} parent=1 // pred_check_branch
      %72 = sbr.rel (0) target = $region33
    $region32: #{detector_forward.1} parent=1 // pred_region
      %s74 = ssub.s32 16384, 16384
      %75 = vsyncadd [#allocation9], %s74
      %s76 = sshll.u32 [#allocation10], 4
      %s77 = int_to_ptr.vmem [resolvable:$true] %s76
      %82 = dma.hbm_to_vmem [thread:$0]  %s7, 16384, %s77, [#allocation9], 128, 128, 8
    $region33: #{detector_forward.1} parent=1 // pred_fallthru
      _
    // Predicated region
    $region34: #{detector_forward.1} parent=1 // pred_check
      _
    $region35: #{detector_forward.1} parent=1 // pred_check_branch
      %84 = sbr.rel (0) target = $region37
    $region36: #{detector_forward.1} parent=1 // pred_region
      %s86 = ssub.s32 2048, 2048
      %87 = vsyncadd [#allocation12], %s86
      %s88 = sshll.u32 [#allocation11], 4
      %s89 = int_to_ptr.vmem [resolvable:$true] %s88
      %94 = dma.hbm_to_vmem [thread:$0]  %s8, 2048, %s89, [#allocation12], 64, 64, 4
    $region37: #{detector_forward.1} parent=1 // pred_fallthru
      _
    // Predicated region
    $region38: #{detector_forward.1} parent=1 // pred_check
      _
    $region39: #{detector_forward.1} parent=1 // pred_check_branch
      %96 = sbr.rel (0) target = $region41
    $region40: #{detector_forward.1} parent=1 // pred_region
      %s98 = ssub.s32 512, 512
      %99 = vsyncadd [#allocation12], %s98
      %s101 = sshll.u32 [#allocation13], 4
      %s102 = int_to_ptr.vmem [resolvable:$true] %s101
      %104 = dma.hbm_to_vmem [thread:$0]  %s9, 512, %s102, [#allocation12]
    $region41: #{detector_forward.1} parent=1 // pred_fallthru
      _
    // Predicated region
    $region42: #{detector_forward.1} parent=1 // pred_check
      _
    $region43: #{detector_forward.1} parent=1 // pred_check_branch
      %106 = sbr.rel (0) target = $region45
    $region44: #{detector_forward.1} parent=1 // pred_region
      %107 = dma.done [#allocation4], 6144
    $region45: #{detector_forward.1} parent=1 // pred_fallthru
      _
    // Predicated region
    $region46: #{detector_forward.1} parent=1 // pred_check
      _
    $region47: #{detector_forward.1} parent=1 // pred_check_branch
      %109 = sbr.rel (0) target = $region49
    $region48: #{detector_forward.1} parent=1 // pred_region
      %110 = dma.done [#allocation6], 4096
    $region49: #{detector_forward.1} parent=1 // pred_fallthru
      _
    // Predicated region
    $region50: #{detector_forward.1} parent=1 // pred_check
      _
    $region51: #{detector_forward.1} parent=1 // pred_check_branch
      %112 = sbr.rel (0) target = $region53
    $region52: #{detector_forward.1} parent=1 // pred_region
      %113 = dma.done [#allocation6], 128
    $region53: #{detector_forward.1} parent=1 // pred_fallthru
      _
    // Predicated region
    $region54: #{detector_forward.1} parent=1 // pred_check
      _
    $region55: #{detector_forward.1} parent=1 // pred_check_branch
      %115 = sbr.rel (0) target = $region57
    $region56: #{detector_forward.1} parent=1 // pred_region
      %116 = dma.done [#allocation9], 65536
    $region57: #{detector_forward.1} parent=1 // pred_fallthru
      _
    // Predicated region
    $region58: #{detector_forward.1} parent=1 // pred_check
      _
    $region59: #{detector_forward.1} parent=1 // pred_check_branch
      %118 = sbr.rel (0) target = $region61
    $region60: #{detector_forward.1} parent=1 // pred_region
      %119 = dma.done [#allocation9], 16384
    $region61: #{detector_forward.1} parent=1 // pred_fallthru
      _
    // Predicated region
    $region62: #{detector_forward.1} parent=1 // pred_check
      _
    $region63: #{detector_forward.1} parent=1 // pred_check_branch
      %121 = sbr.rel (0) target = $region65
    $region64: #{detector_forward.1} parent=1 // pred_region
      %122 = dma.done [#allocation12], 2048
    $region65: #{detector_forward.1} parent=1 // pred_fallthru
      _
    // Predicated region
    $region66: #{detector_forward.1} parent=1 // pred_check
      _
    $region67: #{detector_forward.1} parent=1 // pred_check_branch
      %124 = sbr.rel (0) target = $region69
    $region68: #{detector_forward.1} parent=1 // pred_region
      %125 = dma.done [#allocation12], 512
    $region69: #{detector_forward.1} parent=1 // pred_fallthru
      _
    %v127 = vld [vmem:[#allocation13] sm:$0x77]
    %v128 = vld [vmem:[#allocation13 + $0x8] sm:$0x77]
    %v129 = vld [vmem:[#allocation13 + $0x10] sm:$0x77]
    %v130 = vld [vmem:[#allocation13 + $0x18] sm:$0x77]
    %v131 = vld [vmem:[%s0] sm:$0xff]
    %v132 = vld [vmem:[%s0 + $0x8] sm:$0xf]
    %v133 = vld [vmem:[%s0 + $0xc] sm:$0xff]
    %v134 = vld [vmem:[%s0 + $0x14] sm:$0xf]
    %v135 = vld [vmem:[#allocation3] sm:$0xff]
    %v136 = vld [vmem:[#allocation3 + $0x8] sm:$0xff]
    %v137 = vld [vmem:[#allocation3 + $0x10] sm:$0xff]
    %v138 = vld [vmem:[#allocation3 + $0x18] sm:$0xff]
    %v139 = vld [vmem:[#allocation3 + $0x20] sm:$0xff]
    %v140 = vld [vmem:[#allocation3 + $0x28] sm:$0xff]
    %v141 = vld [vmem:[#allocation3 + $0x30] sm:$0xff]
    %v142 = vld [vmem:[#allocation3 + $0x38] sm:$0xff]
    %v143 = vld [vmem:[#allocation3 + $0x40] sm:$0xff]
    %v144 = vld [vmem:[#allocation3 + $0x48] sm:$0xff]
    %v145 = vld [vmem:[#allocation3 + $0x50] sm:$0xff]
    %v146 = vld [vmem:[#allocation3 + $0x58] sm:$0xff]
    %v147 = vld [vmem:[#allocation3 + $0x60] sm:$0xff]
    %v148 = vld [vmem:[#allocation3 + $0x68] sm:$0xff]
    %v149 = vld [vmem:[#allocation3 + $0x70] sm:$0xff]
    %v150 = vld [vmem:[#allocation3 + $0x78] sm:$0xff]
    %v151 = vld [vmem:[#allocation3 + $0x80] sm:$0xff]
    %v152 = vld [vmem:[#allocation3 + $0x88] sm:$0xff]
    %v153 = vld [vmem:[#allocation3 + $0x90] sm:$0xff]
    %v154 = vld [vmem:[#allocation3 + $0x98] sm:$0xff]
    %v155 = vld [vmem:[#allocation3 + $0xa0] sm:$0xff]
    %v156 = vld [vmem:[#allocation3 + $0xa8] sm:$0xff]
    %v157 = vld [vmem:[#allocation3 + $0xb0] sm:$0xff]
    %v158 = vld [vmem:[#allocation3 + $0xb8] sm:$0xff]
    %v159 = vld [vmem:[#allocation3 + $0xc0] sm:$0xff]
    %v160 = vld [vmem:[#allocation3 + $0xc8] sm:$0xff]
    %v161 = vld [vmem:[#allocation3 + $0xd0] sm:$0xff]
    %v162 = vld [vmem:[#allocation3 + $0xd8] sm:$0xff]
    %v163 = vld [vmem:[#allocation3 + $0xe0] sm:$0xff]
    %v164 = vld [vmem:[#allocation3 + $0xe8] sm:$0xff]
    %v165 = vld [vmem:[#allocation3 + $0xf0] sm:$0xff]
    %v166 = vld [vmem:[#allocation3 + $0xf8] sm:$0xff]
    %v167 = vld [vmem:[#allocation3 + $0x100] sm:$0xff]
    %v168 = vld [vmem:[#allocation3 + $0x108] sm:$0xff]
    %v169 = vld [vmem:[#allocation3 + $0x110] sm:$0xff]
    %v170 = vld [vmem:[#allocation3 + $0x118] sm:$0xff]
    %v171 = vld [vmem:[#allocation3 + $0x120] sm:$0xff]
    %v172 = vld [vmem:[#allocation3 + $0x128] sm:$0xff]
    %v173 = vld [vmem:[#allocation3 + $0x130] sm:$0xff]
    %v174 = vld [vmem:[#allocation3 + $0x138] sm:$0xff]
    %v175 = vld [vmem:[#allocation3 + $0x140] sm:$0xff]
    %v176 = vld [vmem:[#allocation3 + $0x148] sm:$0xff]
    %v177 = vld [vmem:[#allocation3 + $0x150] sm:$0xff]
    %v178 = vld [vmem:[#allocation3 + $0x158] sm:$0xff]
    %v179 = vld [vmem:[#allocation3 + $0x160] sm:$0xff]
    %v180 = vld [vmem:[#allocation3 + $0x168] sm:$0xff]
    %v181 = vld [vmem:[#allocation3 + $0x170] sm:$0xff]
    %v182 = vld [vmem:[#allocation3 + $0x178] sm:$0xff]
    %v184 = vlaneseq
    %v185 = vshrl.u32 %v184, 7
    %v186 = vsub.s32 0, %v185
    %v187 = vrot.slane %v127, %v186
    %v188 = vlaneseq
    %v189 = vshrl.u32 %v188, 7
    %v190 = vsub.s32 4, %v189
    %v191 = vrot.slane %v127, %v190
    %v194 = vlaneseq
    %v195 = vshrl.u32 %v194, 7
    %v196 = vsub.s32 0, %v195
    %v197 = vrot.slane %v187, %v196
    %v198 = vlaneseq
    %v199 = vshrl.u32 %v198, 7
    %v200 = vsub.s32 0, %v199
    %v201 = vrot.slane %v191, %v200
    %v206 = vunpack.c.l.b16 %v131
    %v207 = vunpack.c.h.b16 %v131
    %v208 = vunpack.c.l.b16 %v132
    %v209 = vunpack.c.l.b16 %v133
    %v210 = vunpack.c.h.b16 %v133
    %v211 = vunpack.c.l.b16 %v134
    %v212 = vpack.c.b16 %v209, %v206
    %v213 = vpack.c.b16 %v210, %v207
    %v214 = vpack.c.b16 %v211, %v208
    %v266 = vunpack.c.l.b16 %v135
    %v267 = vunpack.c.h.b16 %v135
    %v268 = vunpack.c.l.b16 %v136
    %v269 = vunpack.c.h.b16 %v136
    %v270 = vunpack.c.l.b16 %v137
    %v271 = vunpack.c.h.b16 %v137
    %v272 = vunpack.c.l.b16 %v138
    %v273 = vunpack.c.h.b16 %v138
    %v274 = vunpack.c.l.b16 %v139
    %v275 = vunpack.c.h.b16 %v139
    %v276 = vunpack.c.l.b16 %v140
    %v277 = vunpack.c.h.b16 %v140
    %v278 = vunpack.c.l.b16 %v141
    %v279 = vunpack.c.h.b16 %v141
    %v280 = vunpack.c.l.b16 %v142
    %v281 = vunpack.c.h.b16 %v142
    %v282 = vunpack.c.l.b16 %v143
    %v283 = vunpack.c.h.b16 %v143
    %v284 = vunpack.c.l.b16 %v144
    %v285 = vunpack.c.h.b16 %v144
    %v286 = vunpack.c.l.b16 %v145
    %v287 = vunpack.c.h.b16 %v145
    %v288 = vunpack.c.l.b16 %v146
    %v289 = vunpack.c.h.b16 %v146
    %v290 = vunpack.c.l.b16 %v147
    %v291 = vunpack.c.h.b16 %v147
    %v292 = vunpack.c.l.b16 %v148
    %v293 = vunpack.c.h.b16 %v148
    %v294 = vunpack.c.l.b16 %v149
    %v295 = vunpack.c.h.b16 %v149
    %v296 = vunpack.c.l.b16 %v150
    %v297 = vunpack.c.h.b16 %v150
    %v298 = vunpack.c.l.b16 %v151
    %v299 = vunpack.c.h.b16 %v151
    %v300 = vunpack.c.l.b16 %v152
    %v301 = vunpack.c.h.b16 %v152
    %v302 = vunpack.c.l.b16 %v153
    %v303 = vunpack.c.h.b16 %v153
    %v304 = vunpack.c.l.b16 %v154
    %v305 = vunpack.c.h.b16 %v154
    %v306 = vunpack.c.l.b16 %v155
    %v307 = vunpack.c.h.b16 %v155
    %v308 = vunpack.c.l.b16 %v156
    %v309 = vunpack.c.h.b16 %v156
    %v310 = vunpack.c.l.b16 %v157
    %v311 = vunpack.c.h.b16 %v157
    %v312 = vunpack.c.l.b16 %v158
    %v313 = vunpack.c.h.b16 %v158
    %v314 = vunpack.c.l.b16 %v159
    %v315 = vunpack.c.h.b16 %v159
    %v316 = vunpack.c.l.b16 %v160
    %v317 = vunpack.c.h.b16 %v160
    %v318 = vunpack.c.l.b16 %v161
    %v319 = vunpack.c.h.b16 %v161
    %v320 = vunpack.c.l.b16 %v162
    %v321 = vunpack.c.h.b16 %v162
    %v322 = vunpack.c.l.b16 %v163
    %v323 = vunpack.c.h.b16 %v163
    %v324 = vunpack.c.l.b16 %v164
    %v325 = vunpack.c.h.b16 %v164
    %v326 = vunpack.c.l.b16 %v165
    %v327 = vunpack.c.h.b16 %v165
    %v328 = vunpack.c.l.b16 %v166
    %v329 = vunpack.c.h.b16 %v166
    %v330 = vunpack.c.l.b16 %v167
    %v331 = vunpack.c.h.b16 %v167
    %v332 = vunpack.c.l.b16 %v168
    %v333 = vunpack.c.h.b16 %v168
    %v334 = vunpack.c.l.b16 %v169
    %v335 = vunpack.c.h.b16 %v169
    %v336 = vunpack.c.l.b16 %v170
    %v337 = vunpack.c.h.b16 %v170
    %v338 = vunpack.c.l.b16 %v171
    %v339 = vunpack.c.h.b16 %v171
    %v340 = vunpack.c.l.b16 %v172
    %v341 = vunpack.c.h.b16 %v172
    %v342 = vunpack.c.l.b16 %v173
    %v343 = vunpack.c.h.b16 %v173
    %v344 = vunpack.c.l.b16 %v174
    %v345 = vunpack.c.h.b16 %v174
    %v346 = vunpack.c.l.b16 %v175
    %v347 = vunpack.c.h.b16 %v175
    %v348 = vunpack.c.l.b16 %v176
    %v349 = vunpack.c.h.b16 %v176
    %v350 = vunpack.c.l.b16 %v177
    %v351 = vunpack.c.h.b16 %v177
    %v352 = vunpack.c.l.b16 %v178
    %v353 = vunpack.c.h.b16 %v178
    %v354 = vunpack.c.l.b16 %v179
    %v355 = vunpack.c.h.b16 %v179
    %v356 = vunpack.c.l.b16 %v180
    %v357 = vunpack.c.h.b16 %v180
    %v358 = vunpack.c.l.b16 %v181
    %v359 = vunpack.c.h.b16 %v181
    %v360 = vunpack.c.l.b16 %v182
    %v361 = vunpack.c.h.b16 %v182
    %v362 = vpack.c.b16 %v268, %v266
    %v363 = vpack.c.b16 %v269, %v267
    %v364 = vpack.c.b16 %v272, %v270
    %v365 = vpack.c.b16 %v273, %v271
    %v366 = vpack.c.b16 %v276, %v274
    %v367 = vpack.c.b16 %v277, %v275
    %v368 = vpack.c.b16 %v280, %v278
    %v369 = vpack.c.b16 %v281, %v279
    %v370 = vpack.c.b16 %v284, %v282
    %v371 = vpack.c.b16 %v285, %v283
    %v372 = vpack.c.b16 %v288, %v286
    %v373 = vpack.c.b16 %v289, %v287
    %v374 = vpack.c.b16 %v292, %v290
    %v375 = vpack.c.b16 %v293, %v291
    %v376 = vpack.c.b16 %v296, %v294
    %v377 = vpack.c.b16 %v297, %v295
    %v378 = vpack.c.b16 %v300, %v298
    %v379 = vpack.c.b16 %v301, %v299
    %v380 = vpack.c.b16 %v304, %v302
    %v381 = vpack.c.b16 %v305, %v303
    %v382 = vpack.c.b16 %v308, %v306
    %v383 = vpack.c.b16 %v309, %v307
    %v384 = vpack.c.b16 %v312, %v310
    %v385 = vpack.c.b16 %v313, %v311
    %v386 = vpack.c.b16 %v316, %v314
    %v387 = vpack.c.b16 %v317, %v315
    %v388 = vpack.c.b16 %v320, %v318
    %v389 = vpack.c.b16 %v321, %v319
    %v390 = vpack.c.b16 %v324, %v322
    %v391 = vpack.c.b16 %v325, %v323
    %v392 = vpack.c.b16 %v328, %v326
    %v393 = vpack.c.b16 %v329, %v327
    %v394 = vpack.c.b16 %v332, %v330
    %v395 = vpack.c.b16 %v333, %v331
    %v396 = vpack.c.b16 %v336, %v334
    %v397 = vpack.c.b16 %v337, %v335
    %v398 = vpack.c.b16 %v340, %v338
    %v399 = vpack.c.b16 %v341, %v339
    %v400 = vpack.c.b16 %v344, %v342
    %v401 = vpack.c.b16 %v345, %v343
    %v402 = vpack.c.b16 %v348, %v346
    %v403 = vpack.c.b16 %v349, %v347
    %v404 = vpack.c.b16 %v352, %v350
    %v405 = vpack.c.b16 %v353, %v351
    %v406 = vpack.c.b16 %v356, %v354
    %v407 = vpack.c.b16 %v357, %v355
    %v408 = vpack.c.b16 %v360, %v358
    %v409 = vpack.c.b16 %v361, %v359
    %458 = vmatprep.subr.bf16.mxu0 %v377
    %459 = vmatpush1.bf16.msra.mxu0 %v376
    %460 = vmatprep.subr.bf16.mxu0 %v375
    %461 = vmatpush1.bf16.msra.mxu0 %v374
    %462 = vmatprep.subr.bf16.mxu0 %v373
    %463 = vmatpush1.bf16.msra.mxu0 %v372
    %464 = vmatprep.subr.bf16.mxu0 %v371
    %465 = vmatpush1.bf16.msra.mxu0 %v370
    %466 = vmatprep.subr.bf16.mxu0 %v369
    %467 = vmatpush1.bf16.msra.mxu0 %v368
    %468 = vmatprep.subr.bf16.mxu0 %v367
    %469 = vmatpush1.bf16.msra.mxu0 %v366
    %470 = vmatprep.subr.bf16.mxu0 %v365
    %471 = vmatpush1.bf16.msra.mxu0 %v364
    %472 = vmatprep.subr.bf16.mxu0 %v363
    %473 = vmatpush1.bf16.msra.mxu0 %v362
    %474 = vmatprep.subr.bf16.mxu0 %v393
    %475 = vmatpush2.bf16.msra.mxu0 %v392
    %476 = vmatprep.subr.bf16.mxu0 %v391
    %477 = vmatpush2.bf16.msra.mxu0 %v390
    %478 = vmatprep.subr.bf16.mxu0 %v389
    %479 = vmatpush2.bf16.msra.mxu0 %v388
    %480 = vmatprep.subr.bf16.mxu0 %v387
    %481 = vmatpush2.bf16.msra.mxu0 %v386
    %482 = vmatprep.subr.bf16.mxu0 %v385
    %483 = vmatpush2.bf16.msra.mxu0 %v384
    %484 = vmatprep.subr.bf16.mxu0 %v383
    %485 = vmatpush2.bf16.msra.mxu0 %v382
    %486 = vmatprep.subr.bf16.mxu0 %v381
    %487 = vmatpush2.bf16.msra.mxu0 %v380
    %488 = vmatprep.subr.bf16.mxu0 %v379
    %489 = vmatpush2.bf16.msra.mxu0 %v378
    %490 = vmatprep.mubr.bf16.mxu0 %v213
    %491 = vmatmul.mubr.bf16.gmra.mxu0 %v212
    %v492 = vpop.f32.mrf.mxu0
    %v493 = vadd.f32 %v197, %v492
    %v494 = vpop.f32.mrf.mxu0
    %v495 = vadd.f32 %v201, %v494
    %v496 = vpop.f32.mrf.mxu0
    %v497 = vadd.f32 %v197, %v496
    %v498 = vpop.f32.mrf.mxu0
    %v499 = vadd.f32 %v201, %v498
    %500 = vdwg.mxu0
    %501 = vmatprep.subr.bf16.mxu0 %v409
    %502 = vmatpush1.bf16.msra.mxu0 %v408
    %503 = vmatprep.subr.bf16.mxu0 %v407
    %504 = vmatpush1.bf16.msra.mxu0 %v406
    %505 = vmatprep.subr.bf16.mxu0 %v405
    %506 = vmatpush1.bf16.msra.mxu0 %v404
    %507 = vmatprep.subr.bf16.mxu0 %v403
    %508 = vmatpush1.bf16.msra.mxu0 %v402
    %509 = vmatprep.subr.bf16.mxu0 %v401
    %510 = vmatpush1.bf16.msra.mxu0 %v400
    %511 = vmatprep.subr.bf16.mxu0 %v399
    %512 = vmatpush1.bf16.msra.mxu0 %v398
    %513 = vmatprep.subr.bf16.mxu0 %v397
    %514 = vmatpush1.bf16.msra.mxu0 %v396
    %515 = vmatprep.subr.bf16.mxu0 %v395
    %516 = vmatpush1.bf16.msra.mxu0 %v394
    %517 = vmatprep.subr.bf16.mxu0 0
    %518 = vmatpush2.bf16.msra.mxu0 0
    %519 = vmatprep.subr.bf16.mxu0 0
    %520 = vmatpush2.bf16.msra.mxu0 0
    %521 = vmatprep.subr.bf16.mxu0 0
    %522 = vmatpush2.bf16.msra.mxu0 0
    %523 = vmatprep.subr.bf16.mxu0 0
    %524 = vmatpush2.bf16.msra.mxu0 0
    %525 = vmatprep.subr.bf16.mxu0 0
    %526 = vmatpush2.bf16.msra.mxu0 0
    %527 = vmatprep.subr.bf16.mxu0 0
    %528 = vmatpush2.bf16.msra.mxu0 0
    %529 = vmatprep.subr.bf16.mxu0 0
    %530 = vmatpush2.bf16.msra.mxu0 0
    %531 = vmatprep.subr.bf16.mxu0 0
    %532 = vmatpush2.bf16.msra.mxu0 0
    %533 = vmatprep.mubr.bf16.mxu0 0
    %534 = vmatmul.mubr.bf16.gmra.mxu0 %v214
    %v535 = vpop.f32.mrf.mxu0
    %v536 = vadd.f32 %v493, %v535
    %v537 = vpop.f32.mrf.mxu0
    %v538 = vadd.f32 %v495, %v537
    %v539 = vpop.f32.mrf.mxu0
    %v540 = vadd.f32 %v497, %v539
    %v541 = vpop.f32.mrf.mxu0
    %v542 = vadd.f32 %v499, %v541
    %543 = vdwg.mxu0
    %v544 = vmax.f32 %v536, 0.0
    %v545 = vmax.f32 %v538, 0.0
    %v546 = vmax.f32 %v540, 0.0
    %v547 = vmax.f32 %v542, 0.0
    %v548 = vpack.c.bf16 %v546, %v544
    %v549 = vpack.c.bf16 %v547, %v545
    %v552 = vunpack.c.l.b16 %v548
    %v553 = vunpack.c.l.b16 %v549
    %v554 = vunpack.c.h.b16 %v548
    %v555 = vunpack.c.h.b16 %v549
    %v556 = vpack.c.b16 %v553, %v552
    %v557 = vpack.c.b16 %v555, %v554
    %560 = vst [vmem:[#allocation2] sm:$0xff] %v556
    %561 = vst [vmem:[#allocation2 + $0x20] sm:$0xff] %v557
    %v562 = vld [vmem:[%s1] sm:$0xf]
    %v563 = vld [vmem:[%s1 + $0x4] sm:$0xf]
    %v564 = vld [vmem:[#allocation5] sm:$0xff]
    %v565 = vld [vmem:[#allocation5 + $0x8] sm:$0xff]
    %v566 = vld [vmem:[#allocation5 + $0x10] sm:$0xff]
    %v567 = vld [vmem:[#allocation5 + $0x18] sm:$0xff]
    %v568 = vld [vmem:[#allocation5 + $0x20] sm:$0xff]
    %v569 = vld [vmem:[#allocation5 + $0x28] sm:$0xff]
    %v570 = vld [vmem:[#allocation5 + $0x30] sm:$0xff]
    %v571 = vld [vmem:[#allocation5 + $0x38] sm:$0xff]
    %v572 = vld [vmem:[#allocation5 + $0x40] sm:$0xff]
    %v573 = vld [vmem:[#allocation5 + $0x48] sm:$0xff]
    %v574 = vld [vmem:[#allocation5 + $0x50] sm:$0xff]
    %v575 = vld [vmem:[#allocation5 + $0x58] sm:$0xff]
    %v576 = vld [vmem:[#allocation5 + $0x60] sm:$0xff]
    %v577 = vld [vmem:[#allocation5 + $0x68] sm:$0xff]
    %v578 = vld [vmem:[#allocation5 + $0x70] sm:$0xff]
    %v579 = vld [vmem:[#allocation5 + $0x78] sm:$0xff]
    %v580 = vld [vmem:[#allocation5 + $0x80] sm:$0xff]
    %v581 = vld [vmem:[#allocation5 + $0x88] sm:$0xff]
    %v582 = vld [vmem:[#allocation5 + $0x90] sm:$0xff]
    %v583 = vld [vmem:[#allocation5 + $0x98] sm:$0xff]
    %v584 = vld [vmem:[#allocation5 + $0xa0] sm:$0xff]
    %v585 = vld [vmem:[#allocation5 + $0xa8] sm:$0xff]
    %v586 = vld [vmem:[#allocation5 + $0xb0] sm:$0xff]
    %v587 = vld [vmem:[#allocation5 + $0xb8] sm:$0xff]
    %v588 = vld [vmem:[#allocation5 + $0xc0] sm:$0xff]
    %v589 = vld [vmem:[#allocation5 + $0xc8] sm:$0xff]
    %v590 = vld [vmem:[#allocation5 + $0xd0] sm:$0xff]
    %v591 = vld [vmem:[#allocation5 + $0xd8] sm:$0xff]
    %v592 = vld [vmem:[#allocation5 + $0xe0] sm:$0xff]
    %v593 = vld [vmem:[#allocation5 + $0xe8] sm:$0xff]
    %v594 = vld [vmem:[#allocation5 + $0xf0] sm:$0xff]
    %v595 = vld [vmem:[#allocation5 + $0xf8] sm:$0xff]
    %v598 = vunpack.c.l.b16 %v562
    %v599 = vunpack.c.l.b16 %v563
    %v600 = vpack.c.b16 %v599, %v598
    %v634 = vunpack.c.l.b16 %v564
    %v635 = vunpack.c.h.b16 %v564
    %v636 = vunpack.c.l.b16 %v565
    %v637 = vunpack.c.h.b16 %v565
    %v638 = vunpack.c.l.b16 %v566
    %v639 = vunpack.c.h.b16 %v566
    %v640 = vunpack.c.l.b16 %v567
    %v641 = vunpack.c.h.b16 %v567
    %v642 = vunpack.c.l.b16 %v568
    %v643 = vunpack.c.h.b16 %v568
    %v644 = vunpack.c.l.b16 %v569
    %v645 = vunpack.c.h.b16 %v569
    %v646 = vunpack.c.l.b16 %v570
    %v647 = vunpack.c.h.b16 %v570
    %v648 = vunpack.c.l.b16 %v571
    %v649 = vunpack.c.h.b16 %v571
    %v650 = vunpack.c.l.b16 %v572
    %v651 = vunpack.c.h.b16 %v572
    %v652 = vunpack.c.l.b16 %v573
    %v653 = vunpack.c.h.b16 %v573
    %v654 = vunpack.c.l.b16 %v574
    %v655 = vunpack.c.h.b16 %v574
    %v656 = vunpack.c.l.b16 %v575
    %v657 = vunpack.c.h.b16 %v575
    %v658 = vunpack.c.l.b16 %v576
    %v659 = vunpack.c.h.b16 %v576
    %v660 = vunpack.c.l.b16 %v577
    %v661 = vunpack.c.h.b16 %v577
    %v662 = vunpack.c.l.b16 %v578
    %v663 = vunpack.c.h.b16 %v578
    %v664 = vunpack.c.l.b16 %v579
    %v665 = vunpack.c.h.b16 %v579
    %v666 = vunpack.c.l.b16 %v580
    %v667 = vunpack.c.h.b16 %v580
    %v668 = vunpack.c.l.b16 %v581
    %v669 = vunpack.c.h.b16 %v581
    %v670 = vunpack.c.l.b16 %v582
    %v671 = vunpack.c.h.b16 %v582
    %v672 = vunpack.c.l.b16 %v583
    %v673 = vunpack.c.h.b16 %v583
    %v674 = vunpack.c.l.b16 %v584
    %v675 = vunpack.c.h.b16 %v584
    %v676 = vunpack.c.l.b16 %v585
    %v677 = vunpack.c.h.b16 %v585
    %v678 = vunpack.c.l.b16 %v586
    %v679 = vunpack.c.h.b16 %v586
    %v680 = vunpack.c.l.b16 %v587
    %v681 = vunpack.c.h.b16 %v587
    %v682 = vunpack.c.l.b16 %v588
    %v683 = vunpack.c.h.b16 %v588
    %v684 = vunpack.c.l.b16 %v589
    %v685 = vunpack.c.h.b16 %v589
    %v686 = vunpack.c.l.b16 %v590
    %v687 = vunpack.c.h.b16 %v590
    %v688 = vunpack.c.l.b16 %v591
    %v689 = vunpack.c.h.b16 %v591
    %v690 = vunpack.c.l.b16 %v592
    %v691 = vunpack.c.h.b16 %v592
    %v692 = vunpack.c.l.b16 %v593
    %v693 = vunpack.c.h.b16 %v593
    %v694 = vunpack.c.l.b16 %v594
    %v695 = vunpack.c.h.b16 %v594
    %v696 = vunpack.c.l.b16 %v595
    %v697 = vunpack.c.h.b16 %v595
    %v698 = vpack.c.b16 %v638, %v634
    %v699 = vpack.c.b16 %v639, %v635
    %v700 = vpack.c.b16 %v640, %v636
    %v701 = vpack.c.b16 %v641, %v637
    %v702 = vpack.c.b16 %v646, %v642
    %v703 = vpack.c.b16 %v647, %v643
    %v704 = vpack.c.b16 %v648, %v644
    %v705 = vpack.c.b16 %v649, %v645
    %v706 = vpack.c.b16 %v654, %v650
    %v707 = vpack.c.b16 %v655, %v651
    %v708 = vpack.c.b16 %v656, %v652
    %v709 = vpack.c.b16 %v657, %v653
    %v710 = vpack.c.b16 %v662, %v658
    %v711 = vpack.c.b16 %v663, %v659
    %v712 = vpack.c.b16 %v664, %v660
    %v713 = vpack.c.b16 %v665, %v661
    %v714 = vpack.c.b16 %v670, %v666
    %v715 = vpack.c.b16 %v671, %v667
    %v716 = vpack.c.b16 %v672, %v668
    %v717 = vpack.c.b16 %v673, %v669
    %v718 = vpack.c.b16 %v678, %v674
    %v719 = vpack.c.b16 %v679, %v675
    %v720 = vpack.c.b16 %v680, %v676
    %v721 = vpack.c.b16 %v681, %v677
    %v722 = vpack.c.b16 %v686, %v682
    %v723 = vpack.c.b16 %v687, %v683
    %v724 = vpack.c.b16 %v688, %v684
    %v725 = vpack.c.b16 %v689, %v685
    %v726 = vpack.c.b16 %v694, %v690
    %v727 = vpack.c.b16 %v695, %v691
    %v728 = vpack.c.b16 %v696, %v692
    %v729 = vpack.c.b16 %v697, %v693
    %762 = vmatprep.subr.bf16.mxu0 %v727
    %763 = vmatpush1.bf16.msra.mxu0 %v726
    %764 = vmatprep.subr.bf16.mxu0 %v723
    %765 = vmatpush1.bf16.msra.mxu0 %v722
    %766 = vmatprep.subr.bf16.mxu0 %v719
    %767 = vmatpush1.bf16.msra.mxu0 %v718
    %768 = vmatprep.subr.bf16.mxu0 %v715
    %769 = vmatpush1.bf16.msra.mxu0 %v714
    %770 = vmatprep.subr.bf16.mxu0 %v711
    %771 = vmatpush1.bf16.msra.mxu0 %v710
    %772 = vmatprep.subr.bf16.mxu0 %v707
    %773 = vmatpush1.bf16.msra.mxu0 %v706
    %774 = vmatprep.subr.bf16.mxu0 %v703
    %775 = vmatpush1.bf16.msra.mxu0 %v702
    %776 = vmatprep.subr.bf16.mxu0 %v699
    %777 = vmatpush1.bf16.msra.mxu0 %v698
    %778 = vmatprep.subr.bf16.mxu0 0
    %779 = vmatpush2.bf16.msra.mxu0 0
    %780 = vmatprep.subr.bf16.mxu0 0
    %781 = vmatpush2.bf16.msra.mxu0 0
    %782 = vmatprep.subr.bf16.mxu0 0
    %783 = vmatpush2.bf16.msra.mxu0 0
    %784 = vmatprep.subr.bf16.mxu0 0
    %785 = vmatpush2.bf16.msra.mxu0 0
    %786 = vmatprep.subr.bf16.mxu0 0
    %787 = vmatpush2.bf16.msra.mxu0 0
    %788 = vmatprep.subr.bf16.mxu0 0
    %789 = vmatpush2.bf16.msra.mxu0 0
    %790 = vmatprep.subr.bf16.mxu0 0
    %791 = vmatpush2.bf16.msra.mxu0 0
    %792 = vmatprep.subr.bf16.mxu0 0
    %793 = vmatpush2.bf16.msra.mxu0 0
    %794 = vmatprep.mubr.bf16.mxu0 0
    %795 = vmatmul.mubr.bf16.gmra.mxu0 %v600
    %v796 = vpop.f32.mrf.mxu0
    %v797 = vadd.f32 0.0, %v796
    %v798 = vpop.f32.mrf.mxu0
    %v799 = vadd.f32 0.0, %v798
    %v800 = vpop.f32.mrf.mxu0
    %v801 = vadd.f32 0.0, %v800
    %v802 = vpop.f32.mrf.mxu0
    %v803 = vadd.f32 0.0, %v802
    %804 = vdwg.mxu0
    %805 = vmatprep.subr.bf16.mxu0 %v729
    %806 = vmatpush1.bf16.msra.mxu0 %v728
    %807 = vmatprep.subr.bf16.mxu0 %v725
    %808 = vmatpush1.bf16.msra.mxu0 %v724
    %809 = vmatprep.subr.bf16.mxu0 %v721
    %810 = vmatpush1.bf16.msra.mxu0 %v720
    %811 = vmatprep.subr.bf16.mxu0 %v717
    %812 = vmatpush1.bf16.msra.mxu0 %v716
    %813 = vmatprep.subr.bf16.mxu0 %v713
    %814 = vmatpush1.bf16.msra.mxu0 %v712
    %815 = vmatprep.subr.bf16.mxu0 %v709
    %816 = vmatpush1.bf16.msra.mxu0 %v708
    %817 = vmatprep.subr.bf16.mxu0 %v705
    %818 = vmatpush1.bf16.msra.mxu0 %v704
    %819 = vmatprep.subr.bf16.mxu0 %v701
    %820 = vmatpush1.bf16.msra.mxu0 %v700
    %821 = vmatprep.subr.bf16.mxu0 0
    %822 = vmatpush2.bf16.msra.mxu0 0
    %823 = vmatprep.subr.bf16.mxu0 0
    %824 = vmatpush2.bf16.msra.mxu0 0
    %825 = vmatprep.subr.bf16.mxu0 0
    %826 = vmatpush2.bf16.msra.mxu0 0
    %827 = vmatprep.subr.bf16.mxu0 0
    %828 = vmatpush2.bf16.msra.mxu0 0
    %829 = vmatprep.subr.bf16.mxu0 0
    %830 = vmatpush2.bf16.msra.mxu0 0
    %831 = vmatprep.subr.bf16.mxu0 0
    %832 = vmatpush2.bf16.msra.mxu0 0
    %833 = vmatprep.subr.bf16.mxu0 0
    %834 = vmatpush2.bf16.msra.mxu0 0
    %835 = vmatprep.subr.bf16.mxu0 0
    %836 = vmatpush2.bf16.msra.mxu0 0
    %837 = vmatprep.mubr.bf16.mxu0 0
    %838 = vmatmul.mubr.bf16.gmra.mxu0 %v600
    %v839 = vpop.f32.mrf.mxu0
    %v840 = vadd.f32 0.0, %v839
    %v841 = vpop.f32.mrf.mxu0
    %v842 = vadd.f32 0.0, %v841
    %v843 = vpop.f32.mrf.mxu0
    %v844 = vadd.f32 0.0, %v843
    %v845 = vpop.f32.mrf.mxu0
    %v846 = vadd.f32 0.0, %v845
    %847 = vdwg.mxu0
    %v849 = vlaneseq
    %v850 = vshrl.u32 %v849, 7
    %v851 = vsub.s32 0, %v850
    %v852 = vrot.slane %v128, %v851
    %v853 = vlaneseq
    %v854 = vshrl.u32 %v853, 7
    %v855 = vsub.s32 4, %v854
    %v856 = vrot.slane %v128, %v855
    %v859 = vlaneseq
    %v860 = vshrl.u32 %v859, 7
    %v861 = vsub.s32 0, %v860
    %v862 = vrot.slane %v852, %v861
    %v863 = vlaneseq
    %v864 = vshrl.u32 %v863, 7
    %v865 = vsub.s32 0, %v864
    %v866 = vrot.slane %v856, %v865
    %v867 = vadd.f32 %v797, %v862
    %v868 = vadd.f32 %v799, %v866
    %v869 = vadd.f32 %v801, %v862
    %v870 = vadd.f32 %v803, %v866
    %v871 = vmax.f32 %v867, 0.0
    %v872 = vmax.f32 %v868, 0.0
    %v873 = vmax.f32 %v869, 0.0
    %v874 = vmax.f32 %v870, 0.0
    %v876 = vlaneseq
    %v877 = vshrl.u32 %v876, 7
    %v878 = vsub.s32 0, %v877
    %v879 = vrot.slane %v130, %v878
    %v880 = vlaneseq
    %v881 = vshrl.u32 %v880, 7
    %v882 = vsub.s32 4, %v881
    %v883 = vrot.slane %v130, %v882
    %v886 = vlaneseq
    %v887 = vshrl.u32 %v886, 7
    %v888 = vsub.s32 0, %v887
    %v889 = vrot.slane %v879, %v888
    %v890 = vlaneseq
    %v891 = vshrl.u32 %v890, 7
    %v892 = vsub.s32 0, %v891
    %v893 = vrot.slane %v883, %v892
    %v894 = vadd.f32 %v840, %v889
    %v895 = vadd.f32 %v842, %v893
    %v896 = vadd.f32 %v844, %v889
    %v897 = vadd.f32 %v846, %v893
    %v898 = vmax.f32 %v894, 0.0
    %v899 = vmax.f32 %v895, 0.0
    %v900 = vmax.f32 %v896, 0.0
    %v901 = vmax.f32 %v897, 0.0
    %v902 = vpack.c.bf16 %v873, %v871
    %v903 = vpack.c.bf16 %v874, %v872
    %v906 = vunpack.c.l.b16 %v902
    %v907 = vunpack.c.l.b16 %v903
    %v908 = vunpack.c.h.b16 %v902
    %v909 = vunpack.c.h.b16 %v903
    %v910 = vpack.c.b16 %v907, %v906
    %v911 = vpack.c.b16 %v909, %v908
    %914 = vst [vmem:[#allocation2 + $0x8] sm:$0xff] %v910
    %915 = vst [vmem:[#allocation2 + $0x28] sm:$0xff] %v911
    %v916 = vpack.c.bf16 %v900, %v898
    %v917 = vpack.c.bf16 %v901, %v899
    %v920 = vunpack.c.l.b16 %v916
    %v921 = vunpack.c.l.b16 %v917
    %v922 = vunpack.c.h.b16 %v916
    %v923 = vunpack.c.h.b16 %v917
    %v924 = vpack.c.b16 %v921, %v920
    %v925 = vpack.c.b16 %v923, %v922
    %928 = vst [vmem:[#allocation2 + $0x18] sm:$0xff] %v924
    %929 = vst [vmem:[#allocation2 + $0x38] sm:$0xff] %v925
    %v930 = vld [vmem:[%s2] sm:$0xff]
    %v931 = vld [vmem:[%s2 + $0x8] sm:$0xff]
    %v932 = vld [vmem:[#allocation7] sm:$0x77]
    %934 = vset.pattern.permute.xlu0 0
    %935 = vperm.xlu0 %934, %v930
    %v936 = vpop.permute.xlu0 %935
    %939 = vset.pattern.permute.xlu0 0
    %940 = vperm.xlu0 %939, %v931
    %v941 = vpop.permute.xlu0 %940
    %v944 = vlaneseq
    %v945 = vshrl.u32 %v944, 7
    %v946 = vsub.s32 0, %v945
    %v947 = vrot.slane %v932, %v946
    %v948 = vlaneseq
    %v949 = vshrl.u32 %v948, 7
    %v950 = vsub.s32 4, %v949
    %v951 = vrot.slane %v932, %v950
    %v954 = vlaneseq
    %v955 = vshrl.u32 %v954, 7
    %v956 = vsub.s32 0, %v955
    %v957 = vrot.slane %v947, %v956
    %v958 = vlaneseq
    %v959 = vshrl.u32 %v958, 7
    %v960 = vsub.s32 0, %v959
    %v961 = vrot.slane %v951, %v960
    %v962 = vmul.f32 %v936, %v957
    %v963 = vmul.f32 %v936, %v961
    %v964 = vmul.f32 %v941, %v957
    %v965 = vmul.f32 %v941, %v961
    %966 = vset.pattern.permute.xlu0 1
    %967 = vperm.xlu0 %966, %v930
    %v968 = vpop.permute.xlu0 %967
    %970 = vset.pattern.permute.xlu0 1
    %971 = vperm.xlu0 %970, %v931
    %v972 = vpop.permute.xlu0 %971
    %v974 = vlaneseq
    %v975 = vshrl.u32 %v974, 7
    %v976 = vsub.s32 1, %v975
    %v977 = vrot.slane %v932, %v976
    %v978 = vlaneseq
    %v979 = vshrl.u32 %v978, 7
    %v980 = vsub.s32 5, %v979
    %v981 = vrot.slane %v932, %v980
    %v984 = vlaneseq
    %v985 = vshrl.u32 %v984, 7
    %v986 = vsub.s32 1, %v985
    %v987 = vrot.slane %v977, %v986
    %v988 = vlaneseq
    %v989 = vshrl.u32 %v988, 7
    %v990 = vsub.s32 1, %v989
    %v991 = vrot.slane %v981, %v990
    %v992 = vmul.f32 %v968, %v987
    %v993 = vmul.f32 %v968, %v991
    %v994 = vmul.f32 %v972, %v987
    %v995 = vmul.f32 %v972, %v991
    %v996 = vadd.f32 %v962, %v992
    %v997 = vadd.f32 %v963, %v993
    %v998 = vadd.f32 %v964, %v994
    %v999 = vadd.f32 %v965, %v995
    %1000 = vset.pattern.permute.xlu0 2
    %1001 = vperm.xlu0 %1000, %v930
    %v1002 = vpop.permute.xlu0 %1001
    %1004 = vset.pattern.permute.xlu0 2
    %1005 = vperm.xlu0 %1004, %v931
    %v1006 = vpop.permute.xlu0 %1005
    %v1008 = vlaneseq
    %v1009 = vshrl.u32 %v1008, 7
    %v1010 = vsub.s32 2, %v1009
    %v1011 = vrot.slane %v932, %v1010
    %v1012 = vlaneseq
    %v1013 = vshrl.u32 %v1012, 7
    %v1014 = vsub.s32 6, %v1013
    %v1015 = vrot.slane %v932, %v1014
    %v1018 = vlaneseq
    %v1019 = vshrl.u32 %v1018, 7
    %v1020 = vsub.s32 2, %v1019
    %v1021 = vrot.slane %v1011, %v1020
    %v1022 = vlaneseq
    %v1023 = vshrl.u32 %v1022, 7
    %v1024 = vsub.s32 2, %v1023
    %v1025 = vrot.slane %v1015, %v1024
    %v1026 = vmul.f32 %v1002, %v1021
    %v1027 = vmul.f32 %v1002, %v1025
    %v1028 = vmul.f32 %v1006, %v1021
    %v1029 = vmul.f32 %v1006, %v1025
    %v1030 = vadd.f32 %v996, %v1026
    %v1031 = vadd.f32 %v997, %v1027
    %v1032 = vadd.f32 %v998, %v1028
    %v1033 = vadd.f32 %v999, %v1029
    %v1035 = vlaneseq
    %v1036 = vshrl.u32 %v1035, 7
    %v1037 = vsub.s32 0, %v1036
    %v1038 = vrot.slane %v129, %v1037
    %v1039 = vlaneseq
    %v1040 = vshrl.u32 %v1039, 7
    %v1041 = vsub.s32 4, %v1040
    %v1042 = vrot.slane %v129, %v1041
    %v1045 = vlaneseq
    %v1046 = vshrl.u32 %v1045, 7
    %v1047 = vsub.s32 0, %v1046
    %v1048 = vrot.slane %v1038, %v1047
    %v1049 = vlaneseq
    %v1050 = vshrl.u32 %v1049, 7
    %v1051 = vsub.s32 0, %v1050
    %v1052 = vrot.slane %v1042, %v1051
    %v1053 = vadd.f32 %v1030, %v1048
    %v1054 = vadd.f32 %v1031, %v1052
    %v1055 = vadd.f32 %v1032, %v1048
    %v1056 = vadd.f32 %v1033, %v1052
    %v1057 = vmax.f32 %v1053, 0.0
    %v1058 = vmax.f32 %v1054, 0.0
    %v1059 = vmax.f32 %v1055, 0.0
    %v1060 = vmax.f32 %v1056, 0.0
    %v1061 = vpack.c.bf16 %v1059, %v1057
    %v1062 = vpack.c.bf16 %v1060, %v1058
    %v1065 = vunpack.c.l.b16 %v1061
    %v1066 = vunpack.c.l.b16 %v1062
    %v1067 = vunpack.c.h.b16 %v1061
    %v1068 = vunpack.c.h.b16 %v1062
    %v1069 = vpack.c.b16 %v1066, %v1065
    %v1070 = vpack.c.b16 %v1068, %v1067
    %1073 = vst [vmem:[#allocation2 + $0x10] sm:$0xff] %v1069
    %1074 = vst [vmem:[#allocation2 + $0x30] sm:$0xff] %v1070
    %v1075 = vld [vmem:[#allocation2] sm:$0xff]
    %v1076 = vld [vmem:[#allocation2 + $0x8] sm:$0xff]
    %v1077 = vld [vmem:[#allocation2 + $0x10] sm:$0xff]
    %v1078 = vld [vmem:[#allocation2 + $0x18] sm:$0xff]
    %v1079 = vld [vmem:[#allocation2 + $0x20] sm:$0xff]
    %v1080 = vld [vmem:[#allocation2 + $0x28] sm:$0xff]
    %v1081 = vld [vmem:[#allocation2 + $0x30] sm:$0xff]
    %v1082 = vld [vmem:[#allocation2 + $0x38] sm:$0xff]
    %v1083 = vld [vmem:[#allocation8] sm:$0xff]
    %v1084 = vld [vmem:[#allocation8 + $0x8] sm:$0xff]
    %v1085 = vld [vmem:[#allocation8 + $0x10] sm:$0xff]
    %v1086 = vld [vmem:[#allocation8 + $0x18] sm:$0xff]
    %v1087 = vld [vmem:[#allocation8 + $0x20] sm:$0xff]
    %v1088 = vld [vmem:[#allocation8 + $0x28] sm:$0xff]
    %v1089 = vld [vmem:[#allocation8 + $0x30] sm:$0xff]
    %v1090 = vld [vmem:[#allocation8 + $0x38] sm:$0xff]
    %v1091 = vld [vmem:[#allocation8 + $0x40] sm:$0xff]
    %v1092 = vld [vmem:[#allocation8 + $0x48] sm:$0xff]
    %v1093 = vld [vmem:[#allocation8 + $0x50] sm:$0xff]
    %v1094 = vld [vmem:[#allocation8 + $0x58] sm:$0xff]
    %v1095 = vld [vmem:[#allocation8 + $0x60] sm:$0xff]
    %v1096 = vld [vmem:[#allocation8 + $0x68] sm:$0xff]
    %v1097 = vld [vmem:[#allocation8 + $0x70] sm:$0xff]
    %v1098 = vld [vmem:[#allocation8 + $0x78] sm:$0xff]
    %v1099 = vld [vmem:[#allocation8 + $0x80] sm:$0xff]
    %v1100 = vld [vmem:[#allocation8 + $0x88] sm:$0xff]
    %v1101 = vld [vmem:[#allocation8 + $0x90] sm:$0xff]
    %v1102 = vld [vmem:[#allocation8 + $0x98] sm:$0xff]
    %v1103 = vld [vmem:[#allocation8 + $0xa0] sm:$0xff]
    %v1104 = vld [vmem:[#allocation8 + $0xa8] sm:$0xff]
    %v1105 = vld [vmem:[#allocation8 + $0xb0] sm:$0xff]
    %v1106 = vld [vmem:[#allocation8 + $0xb8] sm:$0xff]
    %v1107 = vld [vmem:[#allocation8 + $0xc0] sm:$0xff]
    %v1108 = vld [vmem:[#allocation8 + $0xc8] sm:$0xff]
    %v1109 = vld [vmem:[#allocation8 + $0xd0] sm:$0xff]
    %v1110 = vld [vmem:[#allocation8 + $0xd8] sm:$0xff]
    %v1111 = vld [vmem:[#allocation8 + $0xe0] sm:$0xff]
    %v1112 = vld [vmem:[#allocation8 + $0xe8] sm:$0xff]
    %v1113 = vld [vmem:[#allocation8 + $0xf0] sm:$0xff]
    %v1114 = vld [vmem:[#allocation8 + $0xf8] sm:$0xff]
    %v1115 = vld [vmem:[#allocation8 + $0x100] sm:$0xff]
    %v1116 = vld [vmem:[#allocation8 + $0x108] sm:$0xff]
    %v1117 = vld [vmem:[#allocation8 + $0x110] sm:$0xff]
    %v1118 = vld [vmem:[#allocation8 + $0x118] sm:$0xff]
    %v1119 = vld [vmem:[#allocation8 + $0x120] sm:$0xff]
    %v1120 = vld [vmem:[#allocation8 + $0x128] sm:$0xff]
    %v1121 = vld [vmem:[#allocation8 + $0x130] sm:$0xff]
    %v1122 = vld [vmem:[#allocation8 + $0x138] sm:$0xff]
    %v1123 = vld [vmem:[#allocation8 + $0x140] sm:$0xff]
    %v1124 = vld [vmem:[#allocation8 + $0x148] sm:$0xff]
    %v1125 = vld [vmem:[#allocation8 + $0x150] sm:$0xff]
    %v1126 = vld [vmem:[#allocation8 + $0x158] sm:$0xff]
    %v1127 = vld [vmem:[#allocation8 + $0x160] sm:$0xff]
    %v1128 = vld [vmem:[#allocation8 + $0x168] sm:$0xff]
    %v1129 = vld [vmem:[#allocation8 + $0x170] sm:$0xff]
    %v1130 = vld [vmem:[#allocation8 + $0x178] sm:$0xff]
    %v1131 = vld [vmem:[#allocation8 + $0x180] sm:$0xff]
    %v1132 = vld [vmem:[#allocation8 + $0x188] sm:$0xff]
    %v1133 = vld [vmem:[#allocation8 + $0x190] sm:$0xff]
    %v1134 = vld [vmem:[#allocation8 + $0x198] sm:$0xff]
    %v1135 = vld [vmem:[#allocation8 + $0x1a0] sm:$0xff]
    %v1136 = vld [vmem:[#allocation8 + $0x1a8] sm:$0xff]
    %v1137 = vld [vmem:[#allocation8 + $0x1b0] sm:$0xff]
    %v1138 = vld [vmem:[#allocation8 + $0x1b8] sm:$0xff]
    %v1139 = vld [vmem:[#allocation8 + $0x1c0] sm:$0xff]
    %v1140 = vld [vmem:[#allocation8 + $0x1c8] sm:$0xff]
    %v1141 = vld [vmem:[#allocation8 + $0x1d0] sm:$0xff]
    %v1142 = vld [vmem:[#allocation8 + $0x1d8] sm:$0xff]
    %v1143 = vld [vmem:[#allocation8 + $0x1e0] sm:$0xff]
    %v1144 = vld [vmem:[#allocation8 + $0x1e8] sm:$0xff]
    %v1145 = vld [vmem:[#allocation8 + $0x1f0] sm:$0xff]
    %v1146 = vld [vmem:[#allocation8 + $0x1f8] sm:$0xff]
    %v1147 = vld [vmem:[#allocation8 + $0x200] sm:$0xff]
    %v1148 = vld [vmem:[#allocation8 + $0x208] sm:$0xff]
    %v1149 = vld [vmem:[#allocation8 + $0x210] sm:$0xff]
    %v1150 = vld [vmem:[#allocation8 + $0x218] sm:$0xff]
    %v1151 = vld [vmem:[#allocation8 + $0x220] sm:$0xff]
    %v1152 = vld [vmem:[#allocation8 + $0x228] sm:$0xff]
    %v1153 = vld [vmem:[#allocation8 + $0x230] sm:$0xff]
    %v1154 = vld [vmem:[#allocation8 + $0x238] sm:$0xff]
    %v1155 = vld [vmem:[#allocation8 + $0x240] sm:$0xff]
    %v1156 = vld [vmem:[#allocation8 + $0x248] sm:$0xff]
    %v1157 = vld [vmem:[#allocation8 + $0x250] sm:$0xff]
    %v1158 = vld [vmem:[#allocation8 + $0x258] sm:$0xff]
    %v1159 = vld [vmem:[#allocation8 + $0x260] sm:$0xff]
    %v1160 = vld [vmem:[#allocation8 + $0x268] sm:$0xff]
    %v1161 = vld [vmem:[#allocation8 + $0x270] sm:$0xff]
    %v1162 = vld [vmem:[#allocation8 + $0x278] sm:$0xff]
    %v1163 = vld [vmem:[#allocation8 + $0x280] sm:$0xff]
    %v1164 = vld [vmem:[#allocation8 + $0x288] sm:$0xff]
    %v1165 = vld [vmem:[#allocation8 + $0x290] sm:$0xff]
    %v1166 = vld [vmem:[#allocation8 + $0x298] sm:$0xff]
    %v1167 = vld [vmem:[#allocation8 + $0x2a0] sm:$0xff]
    %v1168 = vld [vmem:[#allocation8 + $0x2a8] sm:$0xff]
    %v1169 = vld [vmem:[#allocation8 + $0x2b0] sm:$0xff]
    %v1170 = vld [vmem:[#allocation8 + $0x2b8] sm:$0xff]
    %v1171 = vld [vmem:[#allocation8 + $0x2c0] sm:$0xff]
    %v1172 = vld [vmem:[#allocation8 + $0x2c8] sm:$0xff]
    %v1173 = vld [vmem:[#allocation8 + $0x2d0] sm:$0xff]
    %v1174 = vld [vmem:[#allocation8 + $0x2d8] sm:$0xff]
    %v1175 = vld [vmem:[#allocation8 + $0x2e0] sm:$0xff]
    %v1176 = vld [vmem:[#allocation8 + $0x2e8] sm:$0xff]
    %v1177 = vld [vmem:[#allocation8 + $0x2f0] sm:$0xff]
    %v1178 = vld [vmem:[#allocation8 + $0x2f8] sm:$0xff]
    %v1179 = vld [vmem:[#allocation8 + $0x300] sm:$0xff]
    %v1180 = vld [vmem:[#allocation8 + $0x308] sm:$0xff]
    %v1181 = vld [vmem:[#allocation8 + $0x310] sm:$0xff]
    %v1182 = vld [vmem:[#allocation8 + $0x318] sm:$0xff]
    %v1183 = vld [vmem:[#allocation8 + $0x320] sm:$0xff]
    %v1184 = vld [vmem:[#allocation8 + $0x328] sm:$0xff]
    %v1185 = vld [vmem:[#allocation8 + $0x330] sm:$0xff]
    %v1186 = vld [vmem:[#allocation8 + $0x338] sm:$0xff]
    %v1187 = vld [vmem:[#allocation8 + $0x340] sm:$0xff]
    %v1188 = vld [vmem:[#allocation8 + $0x348] sm:$0xff]
    %v1189 = vld [vmem:[#allocation8 + $0x350] sm:$0xff]
    %v1190 = vld [vmem:[#allocation8 + $0x358] sm:$0xff]
    %v1191 = vld [vmem:[#allocation8 + $0x360] sm:$0xff]
    %v1192 = vld [vmem:[#allocation8 + $0x368] sm:$0xff]
    %v1193 = vld [vmem:[#allocation8 + $0x370] sm:$0xff]
    %v1194 = vld [vmem:[#allocation8 + $0x378] sm:$0xff]
    %v1195 = vld [vmem:[#allocation8 + $0x380] sm:$0xff]
    %v1196 = vld [vmem:[#allocation8 + $0x388] sm:$0xff]
    %v1197 = vld [vmem:[#allocation8 + $0x390] sm:$0xff]
    %v1198 = vld [vmem:[#allocation8 + $0x398] sm:$0xff]
    %v1199 = vld [vmem:[#allocation8 + $0x3a0] sm:$0xff]
    %v1200 = vld [vmem:[#allocation8 + $0x3a8] sm:$0xff]
    %v1201 = vld [vmem:[#allocation8 + $0x3b0] sm:$0xff]
    %v1202 = vld [vmem:[#allocation8 + $0x3b8] sm:$0xff]
    %v1203 = vld [vmem:[#allocation8 + $0x3c0] sm:$0xff]
    %v1204 = vld [vmem:[#allocation8 + $0x3c8] sm:$0xff]
    %v1205 = vld [vmem:[#allocation8 + $0x3d0] sm:$0xff]
    %v1206 = vld [vmem:[#allocation8 + $0x3d8] sm:$0xff]
    %v1207 = vld [vmem:[#allocation8 + $0x3e0] sm:$0xff]
    %v1208 = vld [vmem:[#allocation8 + $0x3e8] sm:$0xff]
    %v1209 = vld [vmem:[#allocation8 + $0x3f0] sm:$0xff]
    %v1210 = vld [vmem:[#allocation8 + $0x3f8] sm:$0xff]
    %v1211 = vld [vmem:[#allocation8 + $0x400] sm:$0xff]
    %v1212 = vld [vmem:[#allocation8 + $0x408] sm:$0xff]
    %v1213 = vld [vmem:[#allocation8 + $0x410] sm:$0xff]
    %v1214 = vld [vmem:[#allocation8 + $0x418] sm:$0xff]
    %v1215 = vld [vmem:[#allocation8 + $0x420] sm:$0xff]
    %v1216 = vld [vmem:[#allocation8 + $0x428] sm:$0xff]
    %v1217 = vld [vmem:[#allocation8 + $0x430] sm:$0xff]
    %v1218 = vld [vmem:[#allocation8 + $0x438] sm:$0xff]
    %v1219 = vld [vmem:[#allocation8 + $0x440] sm:$0xff]
    %v1220 = vld [vmem:[#allocation8 + $0x448] sm:$0xff]
    %v1221 = vld [vmem:[#allocation8 + $0x450] sm:$0xff]
    %v1222 = vld [vmem:[#allocation8 + $0x458] sm:$0xff]
    %v1223 = vld [vmem:[#allocation8 + $0x460] sm:$0xff]
    %v1224 = vld [vmem:[#allocation8 + $0x468] sm:$0xff]
    %v1225 = vld [vmem:[#allocation8 + $0x470] sm:$0xff]
    %v1226 = vld [vmem:[#allocation8 + $0x478] sm:$0xff]
    %v1227 = vld [vmem:[#allocation8 + $0x480] sm:$0xff]
    %v1228 = vld [vmem:[#allocation8 + $0x488] sm:$0xff]
    %v1229 = vld [vmem:[#allocation8 + $0x490] sm:$0xff]
    %v1230 = vld [vmem:[#allocation8 + $0x498] sm:$0xff]
    %v1231 = vld [vmem:[#allocation8 + $0x4a0] sm:$0xff]
    %v1232 = vld [vmem:[#allocation8 + $0x4a8] sm:$0xff]
    %v1233 = vld [vmem:[#allocation8 + $0x4b0] sm:$0xff]
    %v1234 = vld [vmem:[#allocation8 + $0x4b8] sm:$0xff]
    %v1235 = vld [vmem:[#allocation8 + $0x4c0] sm:$0xff]
    %v1236 = vld [vmem:[#allocation8 + $0x4c8] sm:$0xff]
    %v1237 = vld [vmem:[#allocation8 + $0x4d0] sm:$0xff]
    %v1238 = vld [vmem:[#allocation8 + $0x4d8] sm:$0xff]
    %v1239 = vld [vmem:[#allocation8 + $0x4e0] sm:$0xff]
    %v1240 = vld [vmem:[#allocation8 + $0x4e8] sm:$0xff]
    %v1241 = vld [vmem:[#allocation8 + $0x4f0] sm:$0xff]
    %v1242 = vld [vmem:[#allocation8 + $0x4f8] sm:$0xff]
    %v1243 = vld [vmem:[#allocation8 + $0x500] sm:$0xff]
    %v1244 = vld [vmem:[#allocation8 + $0x508] sm:$0xff]
    %v1245 = vld [vmem:[#allocation8 + $0x510] sm:$0xff]
    %v1246 = vld [vmem:[#allocation8 + $0x518] sm:$0xff]
    %v1247 = vld [vmem:[#allocation8 + $0x520] sm:$0xff]
    %v1248 = vld [vmem:[#allocation8 + $0x528] sm:$0xff]
    %v1249 = vld [vmem:[#allocation8 + $0x530] sm:$0xff]
    %v1250 = vld [vmem:[#allocation8 + $0x538] sm:$0xff]
    %v1251 = vld [vmem:[#allocation8 + $0x540] sm:$0xff]
    %v1252 = vld [vmem:[#allocation8 + $0x548] sm:$0xff]
    %v1253 = vld [vmem:[#allocation8 + $0x550] sm:$0xff]
    %v1254 = vld [vmem:[#allocation8 + $0x558] sm:$0xff]
    %v1255 = vld [vmem:[#allocation8 + $0x560] sm:$0xff]
    %v1256 = vld [vmem:[#allocation8 + $0x568] sm:$0xff]
    %v1257 = vld [vmem:[#allocation8 + $0x570] sm:$0xff]
    %v1258 = vld [vmem:[#allocation8 + $0x578] sm:$0xff]
    %v1259 = vld [vmem:[#allocation8 + $0x580] sm:$0xff]
    %v1260 = vld [vmem:[#allocation8 + $0x588] sm:$0xff]
    %v1261 = vld [vmem:[#allocation8 + $0x590] sm:$0xff]
    %v1262 = vld [vmem:[#allocation8 + $0x598] sm:$0xff]
    %v1263 = vld [vmem:[#allocation8 + $0x5a0] sm:$0xff]
    %v1264 = vld [vmem:[#allocation8 + $0x5a8] sm:$0xff]
    %v1265 = vld [vmem:[#allocation8 + $0x5b0] sm:$0xff]
    %v1266 = vld [vmem:[#allocation8 + $0x5b8] sm:$0xff]
    %v1267 = vld [vmem:[#allocation8 + $0x5c0] sm:$0xff]
    %v1268 = vld [vmem:[#allocation8 + $0x5c8] sm:$0xff]
    %v1269 = vld [vmem:[#allocation8 + $0x5d0] sm:$0xff]
    %v1270 = vld [vmem:[#allocation8 + $0x5d8] sm:$0xff]
    %v1271 = vld [vmem:[#allocation8 + $0x5e0] sm:$0xff]
    %v1272 = vld [vmem:[#allocation8 + $0x5e8] sm:$0xff]
    %v1273 = vld [vmem:[#allocation8 + $0x5f0] sm:$0xff]
    %v1274 = vld [vmem:[#allocation8 + $0x5f8] sm:$0xff]
    %v1275 = vld [vmem:[#allocation8 + $0x600] sm:$0xff]
    %v1276 = vld [vmem:[#allocation8 + $0x608] sm:$0xff]
    %v1277 = vld [vmem:[#allocation8 + $0x610] sm:$0xff]
    %v1278 = vld [vmem:[#allocation8 + $0x618] sm:$0xff]
    %v1279 = vld [vmem:[#allocation8 + $0x620] sm:$0xff]
    %v1280 = vld [vmem:[#allocation8 + $0x628] sm:$0xff]
    %v1281 = vld [vmem:[#allocation8 + $0x630] sm:$0xff]
    %v1282 = vld [vmem:[#allocation8 + $0x638] sm:$0xff]
    %v1283 = vld [vmem:[#allocation8 + $0x640] sm:$0xff]
    %v1284 = vld [vmem:[#allocation8 + $0x648] sm:$0xff]
    %v1285 = vld [vmem:[#allocation8 + $0x650] sm:$0xff]
    %v1286 = vld [vmem:[#allocation8 + $0x658] sm:$0xff]
    %v1287 = vld [vmem:[#allocation8 + $0x660] sm:$0xff]
    %v1288 = vld [vmem:[#allocation8 + $0x668] sm:$0xff]
    %v1289 = vld [vmem:[#allocation8 + $0x670] sm:$0xff]
    %v1290 = vld [vmem:[#allocation8 + $0x678] sm:$0xff]
    %v1291 = vld [vmem:[#allocation8 + $0x680] sm:$0xff]
    %v1292 = vld [vmem:[#allocation8 + $0x688] sm:$0xff]
    %v1293 = vld [vmem:[#allocation8 + $0x690] sm:$0xff]
    %v1294 = vld [vmem:[#allocation8 + $0x698] sm:$0xff]
    %v1295 = vld [vmem:[#allocation8 + $0x6a0] sm:$0xff]
    %v1296 = vld [vmem:[#allocation8 + $0x6a8] sm:$0xff]
    %v1297 = vld [vmem:[#allocation8 + $0x6b0] sm:$0xff]
    %v1298 = vld [vmem:[#allocation8 + $0x6b8] sm:$0xff]
    %v1299 = vld [vmem:[#allocation8 + $0x6c0] sm:$0xff]
    %v1300 = vld [vmem:[#allocation8 + $0x6c8] sm:$0xff]
    %v1301 = vld [vmem:[#allocation8 + $0x6d0] sm:$0xff]
    %v1302 = vld [vmem:[#allocation8 + $0x6d8] sm:$0xff]
    %v1303 = vld [vmem:[#allocation8 + $0x6e0] sm:$0xff]
    %v1304 = vld [vmem:[#allocation8 + $0x6e8] sm:$0xff]
    %v1305 = vld [vmem:[#allocation8 + $0x6f0] sm:$0xff]
    %v1306 = vld [vmem:[#allocation8 + $0x6f8] sm:$0xff]
    %v1307 = vld [vmem:[#allocation8 + $0x700] sm:$0xff]
    %v1308 = vld [vmem:[#allocation8 + $0x708] sm:$0xff]
    %v1309 = vld [vmem:[#allocation8 + $0x710] sm:$0xff]
    %v1310 = vld [vmem:[#allocation8 + $0x718] sm:$0xff]
    %v1311 = vld [vmem:[#allocation8 + $0x720] sm:$0xff]
    %v1312 = vld [vmem:[#allocation8 + $0x728] sm:$0xff]
    %v1313 = vld [vmem:[#allocation8 + $0x730] sm:$0xff]
    %v1314 = vld [vmem:[#allocation8 + $0x738] sm:$0xff]
    %v1315 = vld [vmem:[#allocation8 + $0x740] sm:$0xff]
    %v1316 = vld [vmem:[#allocation8 + $0x748] sm:$0xff]
    %v1317 = vld [vmem:[#allocation8 + $0x750] sm:$0xff]
    %v1318 = vld [vmem:[#allocation8 + $0x758] sm:$0xff]
    %v1319 = vld [vmem:[#allocation8 + $0x760] sm:$0xff]
    %v1320 = vld [vmem:[#allocation8 + $0x768] sm:$0xff]
    %v1321 = vld [vmem:[#allocation8 + $0x770] sm:$0xff]
    %v1322 = vld [vmem:[#allocation8 + $0x778] sm:$0xff]
    %v1323 = vld [vmem:[#allocation8 + $0x780] sm:$0xff]
    %v1324 = vld [vmem:[#allocation8 + $0x788] sm:$0xff]
    %v1325 = vld [vmem:[#allocation8 + $0x790] sm:$0xff]
    %v1326 = vld [vmem:[#allocation8 + $0x798] sm:$0xff]
    %v1327 = vld [vmem:[#allocation8 + $0x7a0] sm:$0xff]
    %v1328 = vld [vmem:[#allocation8 + $0x7a8] sm:$0xff]
    %v1329 = vld [vmem:[#allocation8 + $0x7b0] sm:$0xff]
    %v1330 = vld [vmem:[#allocation8 + $0x7b8] sm:$0xff]
    %v1331 = vld [vmem:[#allocation8 + $0x7c0] sm:$0xff]
    %v1332 = vld [vmem:[#allocation8 + $0x7c8] sm:$0xff]
    %v1333 = vld [vmem:[#allocation8 + $0x7d0] sm:$0xff]
    %v1334 = vld [vmem:[#allocation8 + $0x7d8] sm:$0xff]
    %v1335 = vld [vmem:[#allocation8 + $0x7e0] sm:$0xff]
    %v1336 = vld [vmem:[#allocation8 + $0x7e8] sm:$0xff]
    %v1337 = vld [vmem:[#allocation8 + $0x7f0] sm:$0xff]
    %v1338 = vld [vmem:[#allocation8 + $0x7f8] sm:$0xff]
    %v1339 = vld [vmem:[#allocation8 + $0x800] sm:$0xff]
    %v1340 = vld [vmem:[#allocation8 + $0x808] sm:$0xff]
    %v1341 = vld [vmem:[#allocation8 + $0x810] sm:$0xff]
    %v1342 = vld [vmem:[#allocation8 + $0x818] sm:$0xff]
    %v1343 = vld [vmem:[#allocation8 + $0x820] sm:$0xff]
    %v1344 = vld [vmem:[#allocation8 + $0x828] sm:$0xff]
    %v1345 = vld [vmem:[#allocation8 + $0x830] sm:$0xff]
    %v1346 = vld [vmem:[#allocation8 + $0x838] sm:$0xff]
    %v1347 = vld [vmem:[#allocation8 + $0x840] sm:$0xff]
    %v1348 = vld [vmem:[#allocation8 + $0x848] sm:$0xff]
    %v1349 = vld [vmem:[#allocation8 + $0x850] sm:$0xff]
    %v1350 = vld [vmem:[#allocation8 + $0x858] sm:$0xff]
    %v1351 = vld [vmem:[#allocation8 + $0x860] sm:$0xff]
    %v1352 = vld [vmem:[#allocation8 + $0x868] sm:$0xff]
    %v1353 = vld [vmem:[#allocation8 + $0x870] sm:$0xff]
    %v1354 = vld [vmem:[#allocation8 + $0x878] sm:$0xff]
    %v1355 = vld [vmem:[#allocation8 + $0x880] sm:$0xff]
    %v1356 = vld [vmem:[#allocation8 + $0x888] sm:$0xff]
    %v1357 = vld [vmem:[#allocation8 + $0x890] sm:$0xff]
    %v1358 = vld [vmem:[#allocation8 + $0x898] sm:$0xff]
    %v1359 = vld [vmem:[#allocation8 + $0x8a0] sm:$0xff]
    %v1360 = vld [vmem:[#allocation8 + $0x8a8] sm:$0xff]
    %v1361 = vld [vmem:[#allocation8 + $0x8b0] sm:$0xff]
    %v1362 = vld [vmem:[#allocation8 + $0x8b8] sm:$0xff]
    %v1363 = vld [vmem:[#allocation8 + $0x8c0] sm:$0xff]
    %v1364 = vld [vmem:[#allocation8 + $0x8c8] sm:$0xff]
    %v1365 = vld [vmem:[#allocation8 + $0x8d0] sm:$0xff]
    %v1366 = vld [vmem:[#allocation8 + $0x8d8] sm:$0xff]
    %v1367 = vld [vmem:[#allocation8 + $0x8e0] sm:$0xff]
    %v1368 = vld [vmem:[#allocation8 + $0x8e8] sm:$0xff]
    %v1369 = vld [vmem:[#allocation8 + $0x8f0] sm:$0xff]
    %v1370 = vld [vmem:[#allocation8 + $0x8f8] sm:$0xff]
    %v1371 = vld [vmem:[#allocation8 + $0x900] sm:$0xff]
    %v1372 = vld [vmem:[#allocation8 + $0x908] sm:$0xff]
    %v1373 = vld [vmem:[#allocation8 + $0x910] sm:$0xff]
    %v1374 = vld [vmem:[#allocation8 + $0x918] sm:$0xff]
    %v1375 = vld [vmem:[#allocation8 + $0x920] sm:$0xff]
    %v1376 = vld [vmem:[#allocation8 + $0x928] sm:$0xff]
    %v1377 = vld [vmem:[#allocation8 + $0x930] sm:$0xff]
    %v1378 = vld [vmem:[#allocation8 + $0x938] sm:$0xff]
    %v1379 = vld [vmem:[#allocation8 + $0x940] sm:$0xff]
    %v1380 = vld [vmem:[#allocation8 + $0x948] sm:$0xff]
    %v1381 = vld [vmem:[#allocation8 + $0x950] sm:$0xff]
    %v1382 = vld [vmem:[#allocation8 + $0x958] sm:$0xff]
    %v1383 = vld [vmem:[#allocation8 + $0x960] sm:$0xff]
    %v1384 = vld [vmem:[#allocation8 + $0x968] sm:$0xff]
    %v1385 = vld [vmem:[#allocation8 + $0x970] sm:$0xff]
    %v1386 = vld [vmem:[#allocation8 + $0x978] sm:$0xff]
    %v1387 = vld [vmem:[#allocation8 + $0x980] sm:$0xff]
    %v1388 = vld [vmem:[#allocation8 + $0x988] sm:$0xff]
    %v1389 = vld [vmem:[#allocation8 + $0x990] sm:$0xff]
    %v1390 = vld [vmem:[#allocation8 + $0x998] sm:$0xff]
    %v1391 = vld [vmem:[#allocation8 + $0x9a0] sm:$0xff]
    %v1392 = vld [vmem:[#allocation8 + $0x9a8] sm:$0xff]
    %v1393 = vld [vmem:[#allocation8 + $0x9b0] sm:$0xff]
    %v1394 = vld [vmem:[#allocation8 + $0x9b8] sm:$0xff]
    %v1395 = vld [vmem:[#allocation8 + $0x9c0] sm:$0xff]
    %v1396 = vld [vmem:[#allocation8 + $0x9c8] sm:$0xff]
    %v1397 = vld [vmem:[#allocation8 + $0x9d0] sm:$0xff]
    %v1398 = vld [vmem:[#allocation8 + $0x9d8] sm:$0xff]
    %v1399 = vld [vmem:[#allocation8 + $0x9e0] sm:$0xff]
    %v1400 = vld [vmem:[#allocation8 + $0x9e8] sm:$0xff]
    %v1401 = vld [vmem:[#allocation8 + $0x9f0] sm:$0xff]
    %v1402 = vld [vmem:[#allocation8 + $0x9f8] sm:$0xff]
    %v1403 = vld [vmem:[#allocation8 + $0xa00] sm:$0xff]
    %v1404 = vld [vmem:[#allocation8 + $0xa08] sm:$0xff]
    %v1405 = vld [vmem:[#allocation8 + $0xa10] sm:$0xff]
    %v1406 = vld [vmem:[#allocation8 + $0xa18] sm:$0xff]
    %v1407 = vld [vmem:[#allocation8 + $0xa20] sm:$0xff]
    %v1408 = vld [vmem:[#allocation8 + $0xa28] sm:$0xff]
    %v1409 = vld [vmem:[#allocation8 + $0xa30] sm:$0xff]
    %v1410 = vld [vmem:[#allocation8 + $0xa38] sm:$0xff]
    %v1411 = vld [vmem:[#allocation8 + $0xa40] sm:$0xff]
    %v1412 = vld [vmem:[#allocation8 + $0xa48] sm:$0xff]
    %v1413 = vld [vmem:[#allocation8 + $0xa50] sm:$0xff]
    %v1414 = vld [vmem:[#allocation8 + $0xa58] sm:$0xff]
    %v1415 = vld [vmem:[#allocation8 + $0xa60] sm:$0xff]
    %v1416 = vld [vmem:[#allocation8 + $0xa68] sm:$0xff]
    %v1417 = vld [vmem:[#allocation8 + $0xa70] sm:$0xff]
    %v1418 = vld [vmem:[#allocation8 + $0xa78] sm:$0xff]
    %v1419 = vld [vmem:[#allocation8 + $0xa80] sm:$0xff]
    %v1420 = vld [vmem:[#allocation8 + $0xa88] sm:$0xff]
    %v1421 = vld [vmem:[#allocation8 + $0xa90] sm:$0xff]
    %v1422 = vld [vmem:[#allocation8 + $0xa98] sm:$0xff]
    %v1423 = vld [vmem:[#allocation8 + $0xaa0] sm:$0xff]
    %v1424 = vld [vmem:[#allocation8 + $0xaa8] sm:$0xff]
    %v1425 = vld [vmem:[#allocation8 + $0xab0] sm:$0xff]
    %v1426 = vld [vmem:[#allocation8 + $0xab8] sm:$0xff]
    %v1427 = vld [vmem:[#allocation8 + $0xac0] sm:$0xff]
    %v1428 = vld [vmem:[#allocation8 + $0xac8] sm:$0xff]
    %v1429 = vld [vmem:[#allocation8 + $0xad0] sm:$0xff]
    %v1430 = vld [vmem:[#allocation8 + $0xad8] sm:$0xff]
    %v1431 = vld [vmem:[#allocation8 + $0xae0] sm:$0xff]
    %v1432 = vld [vmem:[#allocation8 + $0xae8] sm:$0xff]
    %v1433 = vld [vmem:[#allocation8 + $0xaf0] sm:$0xff]
    %v1434 = vld [vmem:[#allocation8 + $0xaf8] sm:$0xff]
    %v1435 = vld [vmem:[#allocation8 + $0xb00] sm:$0xff]
    %v1436 = vld [vmem:[#allocation8 + $0xb08] sm:$0xff]
    %v1437 = vld [vmem:[#allocation8 + $0xb10] sm:$0xff]
    %v1438 = vld [vmem:[#allocation8 + $0xb18] sm:$0xff]
    %v1439 = vld [vmem:[#allocation8 + $0xb20] sm:$0xff]
    %v1440 = vld [vmem:[#allocation8 + $0xb28] sm:$0xff]
    %v1441 = vld [vmem:[#allocation8 + $0xb30] sm:$0xff]
    %v1442 = vld [vmem:[#allocation8 + $0xb38] sm:$0xff]
    %v1443 = vld [vmem:[#allocation8 + $0xb40] sm:$0xff]
    %v1444 = vld [vmem:[#allocation8 + $0xb48] sm:$0xff]
    %v1445 = vld [vmem:[#allocation8 + $0xb50] sm:$0xff]
    %v1446 = vld [vmem:[#allocation8 + $0xb58] sm:$0xff]
    %v1447 = vld [vmem:[#allocation8 + $0xb60] sm:$0xff]
    %v1448 = vld [vmem:[#allocation8 + $0xb68] sm:$0xff]
    %v1449 = vld [vmem:[#allocation8 + $0xb70] sm:$0xff]
    %v1450 = vld [vmem:[#allocation8 + $0xb78] sm:$0xff]
    %v1451 = vld [vmem:[#allocation8 + $0xb80] sm:$0xff]
    %v1452 = vld [vmem:[#allocation8 + $0xb88] sm:$0xff]
    %v1453 = vld [vmem:[#allocation8 + $0xb90] sm:$0xff]
    %v1454 = vld [vmem:[#allocation8 + $0xb98] sm:$0xff]
    %v1455 = vld [vmem:[#allocation8 + $0xba0] sm:$0xff]
    %v1456 = vld [vmem:[#allocation8 + $0xba8] sm:$0xff]
    %v1457 = vld [vmem:[#allocation8 + $0xbb0] sm:$0xff]
    %v1458 = vld [vmem:[#allocation8 + $0xbb8] sm:$0xff]
    %v1459 = vld [vmem:[#allocation8 + $0xbc0] sm:$0xff]
    %v1460 = vld [vmem:[#allocation8 + $0xbc8] sm:$0xff]
    %v1461 = vld [vmem:[#allocation8 + $0xbd0] sm:$0xff]
    %v1462 = vld [vmem:[#allocation8 + $0xbd8] sm:$0xff]
    %v1463 = vld [vmem:[#allocation8 + $0xbe0] sm:$0xff]
    %v1464 = vld [vmem:[#allocation8 + $0xbe8] sm:$0xff]
    %v1465 = vld [vmem:[#allocation8 + $0xbf0] sm:$0xff]
    %v1466 = vld [vmem:[#allocation8 + $0xbf8] sm:$0xff]
    %v1467 = vld [vmem:[#allocation8 + $0xc00] sm:$0xff]
    %v1468 = vld [vmem:[#allocation8 + $0xc08] sm:$0xff]
    %v1469 = vld [vmem:[#allocation8 + $0xc10] sm:$0xff]
    %v1470 = vld [vmem:[#allocation8 + $0xc18] sm:$0xff]
    %v1471 = vld [vmem:[#allocation8 + $0xc20] sm:$0xff]
    %v1472 = vld [vmem:[#allocation8 + $0xc28] sm:$0xff]
    %v1473 = vld [vmem:[#allocation8 + $0xc30] sm:$0xff]
    %v1474 = vld [vmem:[#allocation8 + $0xc38] sm:$0xff]
    %v1475 = vld [vmem:[#allocation8 + $0xc40] sm:$0xff]
    %v1476 = vld [vmem:[#allocation8 + $0xc48] sm:$0xff]
    %v1477 = vld [vmem:[#allocation8 + $0xc50] sm:$0xff]
    %v1478 = vld [vmem:[#allocation8 + $0xc58] sm:$0xff]
    %v1479 = vld [vmem:[#allocation8 + $0xc60] sm:$0xff]
    %v1480 = vld [vmem:[#allocation8 + $0xc68] sm:$0xff]
    %v1481 = vld [vmem:[#allocation8 + $0xc70] sm:$0xff]
    %v1482 = vld [vmem:[#allocation8 + $0xc78] sm:$0xff]
    %v1483 = vld [vmem:[#allocation8 + $0xc80] sm:$0xff]
    %v1484 = vld [vmem:[#allocation8 + $0xc88] sm:$0xff]
    %v1485 = vld [vmem:[#allocation8 + $0xc90] sm:$0xff]
    %v1486 = vld [vmem:[#allocation8 + $0xc98] sm:$0xff]
    %v1487 = vld [vmem:[#allocation8 + $0xca0] sm:$0xff]
    %v1488 = vld [vmem:[#allocation8 + $0xca8] sm:$0xff]
    %v1489 = vld [vmem:[#allocation8 + $0xcb0] sm:$0xff]
    %v1490 = vld [vmem:[#allocation8 + $0xcb8] sm:$0xff]
    %v1491 = vld [vmem:[#allocation8 + $0xcc0] sm:$0xff]
    %v1492 = vld [vmem:[#allocation8 + $0xcc8] sm:$0xff]
    %v1493 = vld [vmem:[#allocation8 + $0xcd0] sm:$0xff]
    %v1494 = vld [vmem:[#allocation8 + $0xcd8] sm:$0xff]
    %v1495 = vld [vmem:[#allocation8 + $0xce0] sm:$0xff]
    %v1496 = vld [vmem:[#allocation8 + $0xce8] sm:$0xff]
    %v1497 = vld [vmem:[#allocation8 + $0xcf0] sm:$0xff]
    %v1498 = vld [vmem:[#allocation8 + $0xcf8] sm:$0xff]
    %v1499 = vld [vmem:[#allocation8 + $0xd00] sm:$0xff]
    %v1500 = vld [vmem:[#allocation8 + $0xd08] sm:$0xff]
    %v1501 = vld [vmem:[#allocation8 + $0xd10] sm:$0xff]
    %v1502 = vld [vmem:[#allocation8 + $0xd18] sm:$0xff]
    %v1503 = vld [vmem:[#allocation8 + $0xd20] sm:$0xff]
    %v1504 = vld [vmem:[#allocation8 + $0xd28] sm:$0xff]
    %v1505 = vld [vmem:[#allocation8 + $0xd30] sm:$0xff]
    %v1506 = vld [vmem:[#allocation8 + $0xd38] sm:$0xff]
    %v1507 = vld [vmem:[#allocation8 + $0xd40] sm:$0xff]
    %v1508 = vld [vmem:[#allocation8 + $0xd48] sm:$0xff]
    %v1509 = vld [vmem:[#allocation8 + $0xd50] sm:$0xff]
    %v1510 = vld [vmem:[#allocation8 + $0xd58] sm:$0xff]
    %v1511 = vld [vmem:[#allocation8 + $0xd60] sm:$0xff]
    %v1512 = vld [vmem:[#allocation8 + $0xd68] sm:$0xff]
    %v1513 = vld [vmem:[#allocation8 + $0xd70] sm:$0xff]
    %v1514 = vld [vmem:[#allocation8 + $0xd78] sm:$0xff]
    %v1515 = vld [vmem:[#allocation8 + $0xd80] sm:$0xff]
    %v1516 = vld [vmem:[#allocation8 + $0xd88] sm:$0xff]
    %v1517 = vld [vmem:[#allocation8 + $0xd90] sm:$0xff]
    %v1518 = vld [vmem:[#allocation8 + $0xd98] sm:$0xff]
    %v1519 = vld [vmem:[#allocation8 + $0xda0] sm:$0xff]
    %v1520 = vld [vmem:[#allocation8 + $0xda8] sm:$0xff]
    %v1521 = vld [vmem:[#allocation8 + $0xdb0] sm:$0xff]
    %v1522 = vld [vmem:[#allocation8 + $0xdb8] sm:$0xff]
    %v1523 = vld [vmem:[#allocation8 + $0xdc0] sm:$0xff]
    %v1524 = vld [vmem:[#allocation8 + $0xdc8] sm:$0xff]
    %v1525 = vld [vmem:[#allocation8 + $0xdd0] sm:$0xff]
    %v1526 = vld [vmem:[#allocation8 + $0xdd8] sm:$0xff]
    %v1527 = vld [vmem:[#allocation8 + $0xde0] sm:$0xff]
    %v1528 = vld [vmem:[#allocation8 + $0xde8] sm:$0xff]
    %v1529 = vld [vmem:[#allocation8 + $0xdf0] sm:$0xff]
    %v1530 = vld [vmem:[#allocation8 + $0xdf8] sm:$0xff]
    %v1531 = vld [vmem:[#allocation8 + $0xe00] sm:$0xff]
    %v1532 = vld [vmem:[#allocation8 + $0xe08] sm:$0xff]
    %v1533 = vld [vmem:[#allocation8 + $0xe10] sm:$0xff]
    %v1534 = vld [vmem:[#allocation8 + $0xe18] sm:$0xff]
    %v1535 = vld [vmem:[#allocation8 + $0xe20] sm:$0xff]
    %v1536 = vld [vmem:[#allocation8 + $0xe28] sm:$0xff]
    %v1537 = vld [vmem:[#allocation8 + $0xe30] sm:$0xff]
    %v1538 = vld [vmem:[#allocation8 + $0xe38] sm:$0xff]
    %v1539 = vld [vmem:[#allocation8 + $0xe40] sm:$0xff]
    %v1540 = vld [vmem:[#allocation8 + $0xe48] sm:$0xff]
    %v1541 = vld [vmem:[#allocation8 + $0xe50] sm:$0xff]
    %v1542 = vld [vmem:[#allocation8 + $0xe58] sm:$0xff]
    %v1543 = vld [vmem:[#allocation8 + $0xe60] sm:$0xff]
    %v1544 = vld [vmem:[#allocation8 + $0xe68] sm:$0xff]
    %v1545 = vld [vmem:[#allocation8 + $0xe70] sm:$0xff]
    %v1546 = vld [vmem:[#allocation8 + $0xe78] sm:$0xff]
    %v1547 = vld [vmem:[#allocation8 + $0xe80] sm:$0xff]
    %v1548 = vld [vmem:[#allocation8 + $0xe88] sm:$0xff]
    %v1549 = vld [vmem:[#allocation8 + $0xe90] sm:$0xff]
    %v1550 = vld [vmem:[#allocation8 + $0xe98] sm:$0xff]
    %v1551 = vld [vmem:[#allocation8 + $0xea0] sm:$0xff]
    %v1552 = vld [vmem:[#allocation8 + $0xea8] sm:$0xff]
    %v1553 = vld [vmem:[#allocation8 + $0xeb0] sm:$0xff]
    %v1554 = vld [vmem:[#allocation8 + $0xeb8] sm:$0xff]
    %v1555 = vld [vmem:[#allocation8 + $0xec0] sm:$0xff]
    %v1556 = vld [vmem:[#allocation8 + $0xec8] sm:$0xff]
    %v1557 = vld [vmem:[#allocation8 + $0xed0] sm:$0xff]
    %v1558 = vld [vmem:[#allocation8 + $0xed8] sm:$0xff]
    %v1559 = vld [vmem:[#allocation8 + $0xee0] sm:$0xff]
    %v1560 = vld [vmem:[#allocation8 + $0xee8] sm:$0xff]
    %v1561 = vld [vmem:[#allocation8 + $0xef0] sm:$0xff]
    %v1562 = vld [vmem:[#allocation8 + $0xef8] sm:$0xff]
    %v1563 = vld [vmem:[#allocation8 + $0xf00] sm:$0xff]
    %v1564 = vld [vmem:[#allocation8 + $0xf08] sm:$0xff]
    %v1565 = vld [vmem:[#allocation8 + $0xf10] sm:$0xff]
    %v1566 = vld [vmem:[#allocation8 + $0xf18] sm:$0xff]
    %v1567 = vld [vmem:[#allocation8 + $0xf20] sm:$0xff]
    %v1568 = vld [vmem:[#allocation8 + $0xf28] sm:$0xff]
    %v1569 = vld [vmem:[#allocation8 + $0xf30] sm:$0xff]
    %v1570 = vld [vmem:[#allocation8 + $0xf38] sm:$0xff]
    %v1571 = vld [vmem:[#allocation8 + $0xf40] sm:$0xff]
    %v1572 = vld [vmem:[#allocation8 + $0xf48] sm:$0xff]
    %v1573 = vld [vmem:[#allocation8 + $0xf50] sm:$0xff]
    %v1574 = vld [vmem:[#allocation8 + $0xf58] sm:$0xff]
    %v1575 = vld [vmem:[#allocation8 + $0xf60] sm:$0xff]
    %v1576 = vld [vmem:[#allocation8 + $0xf68] sm:$0xff]
    %v1577 = vld [vmem:[#allocation8 + $0xf70] sm:$0xff]
    %v1578 = vld [vmem:[#allocation8 + $0xf78] sm:$0xff]
    %v1579 = vld [vmem:[#allocation8 + $0xf80] sm:$0xff]
    %v1580 = vld [vmem:[#allocation8 + $0xf88] sm:$0xff]
    %v1581 = vld [vmem:[#allocation8 + $0xf90] sm:$0xff]
    %v1582 = vld [vmem:[#allocation8 + $0xf98] sm:$0xff]
    %v1583 = vld [vmem:[#allocation8 + $0xfa0] sm:$0xff]
    %v1584 = vld [vmem:[#allocation8 + $0xfa8] sm:$0xff]
    %v1585 = vld [vmem:[#allocation8 + $0xfb0] sm:$0xff]
    %v1586 = vld [vmem:[#allocation8 + $0xfb8] sm:$0xff]
    %v1587 = vld [vmem:[#allocation8 + $0xfc0] sm:$0xff]
    %v1588 = vld [vmem:[#allocation8 + $0xfc8] sm:$0xff]
    %v1589 = vld [vmem:[#allocation8 + $0xfd0] sm:$0xff]
    %v1590 = vld [vmem:[#allocation8 + $0xfd8] sm:$0xff]
    %v1591 = vld [vmem:[#allocation8 + $0xfe0] sm:$0xff]
    %v1592 = vld [vmem:[#allocation8 + $0xfe8] sm:$0xff]
    %v1593 = vld [vmem:[#allocation8 + $0xff0] sm:$0xff]
    %v1594 = vld [vmem:[#allocation8 + $0xff8] sm:$0xff]
    %v1595 = vlaneseq
    %v1596 = vshrl.u32 %v1595, 7
    %v1597 = vsub.s32 1, %v1596
    %v1598 = vrot.slane %v127, %v1597
    %v1599 = vlaneseq
    %v1600 = vshrl.u32 %v1599, 7
    %v1601 = vsub.s32 5, %v1600
    %v1602 = vrot.slane %v127, %v1601
    %v1603 = vlaneseq
    %v1604 = vshrl.u32 %v1603, 7
    %v1605 = vsub.s32 1, %v1604
    %v1606 = vrot.slane %v128, %v1605
    %v1607 = vlaneseq
    %v1608 = vshrl.u32 %v1607, 7
    %v1609 = vsub.s32 5, %v1608
    %v1610 = vrot.slane %v128, %v1609
    %v1611 = vlaneseq
    %v1612 = vshrl.u32 %v1611, 7
    %v1613 = vsub.s32 1, %v1612
    %v1614 = vrot.slane %v129, %v1613
    %v1615 = vlaneseq
    %v1616 = vshrl.u32 %v1615, 7
    %v1617 = vsub.s32 5, %v1616
    %v1618 = vrot.slane %v129, %v1617
    %v1619 = vlaneseq
    %v1620 = vshrl.u32 %v1619, 7
    %v1621 = vsub.s32 1, %v1620
    %v1622 = vrot.slane %v130, %v1621
    %v1623 = vlaneseq
    %v1624 = vshrl.u32 %v1623, 7
    %v1625 = vsub.s32 5, %v1624
    %v1626 = vrot.slane %v130, %v1625
    %v1635 = vlaneseq
    %v1636 = vshrl.u32 %v1635, 7
    %v1637 = vsub.s32 1, %v1636
    %v1638 = vrot.slane %v1598, %v1637
    %v1639 = vlaneseq
    %v1640 = vshrl.u32 %v1639, 7
    %v1641 = vsub.s32 1, %v1640
    %v1642 = vrot.slane %v1602, %v1641
    %v1643 = vlaneseq
    %v1644 = vshrl.u32 %v1643, 7
    %v1645 = vsub.s32 1, %v1644
    %v1646 = vrot.slane %v1606, %v1645
    %v1647 = vlaneseq
    %v1648 = vshrl.u32 %v1647, 7
    %v1649 = vsub.s32 1, %v1648
    %v1650 = vrot.slane %v1610, %v1649
    %v1651 = vlaneseq
    %v1652 = vshrl.u32 %v1651, 7
    %v1653 = vsub.s32 1, %v1652
    %v1654 = vrot.slane %v1614, %v1653
    %v1655 = vlaneseq
    %v1656 = vshrl.u32 %v1655, 7
    %v1657 = vsub.s32 1, %v1656
    %v1658 = vrot.slane %v1618, %v1657
    %v1659 = vlaneseq
    %v1660 = vshrl.u32 %v1659, 7
    %v1661 = vsub.s32 1, %v1660
    %v1662 = vrot.slane %v1622, %v1661
    %v1663 = vlaneseq
    %v1664 = vshrl.u32 %v1663, 7
    %v1665 = vsub.s32 1, %v1664
    %v1666 = vrot.slane %v1626, %v1665
    %v1675 = vunpack.c.l.b16 %v1075
    %v1676 = vunpack.c.h.b16 %v1075
    %v1677 = vunpack.c.l.b16 %v1076
    %v1678 = vunpack.c.h.b16 %v1076
    %v1679 = vunpack.c.l.b16 %v1077
    %v1680 = vunpack.c.h.b16 %v1077
    %v1681 = vunpack.c.l.b16 %v1078
    %v1682 = vunpack.c.h.b16 %v1078
    %v1683 = vunpack.c.l.b16 %v1079
    %v1684 = vunpack.c.h.b16 %v1079
    %v1685 = vunpack.c.l.b16 %v1080
    %v1686 = vunpack.c.h.b16 %v1080
    %v1687 = vunpack.c.l.b16 %v1081
    %v1688 = vunpack.c.h.b16 %v1081
    %v1689 = vunpack.c.l.b16 %v1082
    %v1690 = vunpack.c.h.b16 %v1082
    %v1691 = vpack.c.b16 %v1683, %v1675
    %v1692 = vpack.c.b16 %v1684, %v1676
    %v1693 = vpack.c.b16 %v1685, %v1677
    %v1694 = vpack.c.b16 %v1686, %v1678
    %v1695 = vpack.c.b16 %v1687, %v1679
    %v1696 = vpack.c.b16 %v1688, %v1680
    %v1697 = vpack.c.b16 %v1689, %v1681
    %v1698 = vpack.c.b16 %v1690, %v1682
    %v2219 = vunpack.c.l.b16 %v1083
    %v2220 = vunpack.c.h.b16 %v1083
    %v2221 = vunpack.c.l.b16 %v1084
    %v2222 = vunpack.c.h.b16 %v1084
    %v2223 = vunpack.c.l.b16 %v1085
    %v2224 = vunpack.c.h.b16 %v1085
    %v2225 = vunpack.c.l.b16 %v1086
    %v2226 = vunpack.c.h.b16 %v1086
    %v2227 = vunpack.c.l.b16 %v1087
    %v2228 = vunpack.c.h.b16 %v1087
    %v2229 = vunpack.c.l.b16 %v1088
    %v2230 = vunpack.c.h.b16 %v1088
    %v2231 = vunpack.c.l.b16 %v1089
    %v2232 = vunpack.c.h.b16 %v1089
    %v2233 = vunpack.c.l.b16 %v1090
    %v2234 = vunpack.c.h.b16 %v1090
    %v2235 = vunpack.c.l.b16 %v1091
    %v2236 = vunpack.c.h.b16 %v1091
    %v2237 = vunpack.c.l.b16 %v1092
    %v2238 = vunpack.c.h.b16 %v1092
    %v2239 = vunpack.c.l.b16 %v1093
    %v2240 = vunpack.c.h.b16 %v1093
    %v2241 = vunpack.c.l.b16 %v1094
    %v2242 = vunpack.c.h.b16 %v1094
    %v2243 = vunpack.c.l.b16 %v1095
    %v2244 = vunpack.c.h.b16 %v1095
    %v2245 = vunpack.c.l.b16 %v1096
    %v2246 = vunpack.c.h.b16 %v1096
    %v2247 = vunpack.c.l.b16 %v1097
    %v2248 = vunpack.c.h.b16 %v1097
    %v2249 = vunpack.c.l.b16 %v1098
    %v2250 = vunpack.c.h.b16 %v1098
    %v2251 = vunpack.c.l.b16 %v1099
    %v2252 = vunpack.c.h.b16 %v1099
    %v2253 = vunpack.c.l.b16 %v1100
    %v2254 = vunpack.c.h.b16 %v1100
    %v2255 = vunpack.c.l.b16 %v1101
    %v2256 = vunpack.c.h.b16 %v1101
    %v2257 = vunpack.c.l.b16 %v1102
    %v2258 = vunpack.c.h.b16 %v1102
    %v2259 = vunpack.c.l.b16 %v1103
    %v2260 = vunpack.c.h.b16 %v1103
    %v2261 = vunpack.c.l.b16 %v1104
    %v2262 = vunpack.c.h.b16 %v1104
    %v2263 = vunpack.c.l.b16 %v1105
    %v2264 = vunpack.c.h.b16 %v1105
    %v2265 = vunpack.c.l.b16 %v1106
    %v2266 = vunpack.c.h.b16 %v1106
    %v2267 = vunpack.c.l.b16 %v1107
    %v2268 = vunpack.c.h.b16 %v1107
    %v2269 = vunpack.c.l.b16 %v1108
    %v2270 = vunpack.c.h.b16 %v1108
    %v2271 = vunpack.c.l.b16 %v1109
    %v2272 = vunpack.c.h.b16 %v1109
    %v2273 = vunpack.c.l.b16 %v1110
    %v2274 = vunpack.c.h.b16 %v1110
    %v2275 = vunpack.c.l.b16 %v1111
    %v2276 = vunpack.c.h.b16 %v1111
    %v2277 = vunpack.c.l.b16 %v1112
    %v2278 = vunpack.c.h.b16 %v1112
    %v2279 = vunpack.c.l.b16 %v1113
    %v2280 = vunpack.c.h.b16 %v1113
    %v2281 = vunpack.c.l.b16 %v1114
    %v2282 = vunpack.c.h.b16 %v1114
    %v2283 = vunpack.c.l.b16 %v1115
    %v2284 = vunpack.c.h.b16 %v1115
    %v2285 = vunpack.c.l.b16 %v1116
    %v2286 = vunpack.c.h.b16 %v1116
    %v2287 = vunpack.c.l.b16 %v1117
    %v2288 = vunpack.c.h.b16 %v1117
    %v2289 = vunpack.c.l.b16 %v1118
    %v2290 = vunpack.c.h.b16 %v1118
    %v2291 = vunpack.c.l.b16 %v1119
    %v2292 = vunpack.c.h.b16 %v1119
    %v2293 = vunpack.c.l.b16 %v1120
    %v2294 = vunpack.c.h.b16 %v1120
    %v2295 = vunpack.c.l.b16 %v1121
    %v2296 = vunpack.c.h.b16 %v1121
    %v2297 = vunpack.c.l.b16 %v1122
    %v2298 = vunpack.c.h.b16 %v1122
    %v2299 = vunpack.c.l.b16 %v1123
    %v2300 = vunpack.c.h.b16 %v1123
    %v2301 = vunpack.c.l.b16 %v1124
    %v2302 = vunpack.c.h.b16 %v1124
    %v2303 = vunpack.c.l.b16 %v1125
    %v2304 = vunpack.c.h.b16 %v1125
    %v2305 = vunpack.c.l.b16 %v1126
    %v2306 = vunpack.c.h.b16 %v1126
    %v2307 = vunpack.c.l.b16 %v1127
    %v2308 = vunpack.c.h.b16 %v1127
    %v2309 = vunpack.c.l.b16 %v1128
    %v2310 = vunpack.c.h.b16 %v1128
    %v2311 = vunpack.c.l.b16 %v1129
    %v2312 = vunpack.c.h.b16 %v1129
    %v2313 = vunpack.c.l.b16 %v1130
    %v2314 = vunpack.c.h.b16 %v1130
    %v2315 = vunpack.c.l.b16 %v1131
    %v2316 = vunpack.c.h.b16 %v1131
    %v2317 = vunpack.c.l.b16 %v1132
    %v2318 = vunpack.c.h.b16 %v1132
    %v2319 = vunpack.c.l.b16 %v1133
    %v2320 = vunpack.c.h.b16 %v1133
    %v2321 = vunpack.c.l.b16 %v1134
    %v2322 = vunpack.c.h.b16 %v1134
    %v2323 = vunpack.c.l.b16 %v1135
    %v2324 = vunpack.c.h.b16 %v1135
    %v2325 = vunpack.c.l.b16 %v1136
    %v2326 = vunpack.c.h.b16 %v1136
    %v2327 = vunpack.c.l.b16 %v1137
    %v2328 = vunpack.c.h.b16 %v1137
    %v2329 = vunpack.c.l.b16 %v1138
    %v2330 = vunpack.c.h.b16 %v1138
    %v2331 = vunpack.c.l.b16 %v1139
    %v2332 = vunpack.c.h.b16 %v1139
    %v2333 = vunpack.c.l.b16 %v1140
    %v2334 = vunpack.c.h.b16 %v1140
    %v2335 = vunpack.c.l.b16 %v1141
    %v2336 = vunpack.c.h.b16 %v1141
    %v2337 = vunpack.c.l.b16 %v1142
    %v2338 = vunpack.c.h.b16 %v1142
    %v2339 = vunpack.c.l.b16 %v1143
    %v2340 = vunpack.c.h.b16 %v1143
    %v2341 = vunpack.c.l.b16 %v1144
    %v2342 = vunpack.c.h.b16 %v1144
    %v2343 = vunpack.c.l.b16 %v1145
    %v2344 = vunpack.c.h.b16 %v1145
    %v2345 = vunpack.c.l.b16 %v1146
    %v2346 = vunpack.c.h.b16 %v1146
    %v2347 = vunpack.c.l.b16 %v1147
    %v2348 = vunpack.c.h.b16 %v1147
    %v2349 = vunpack.c.l.b16 %v1148
    %v2350 = vunpack.c.h.b16 %v1148
    %v2351 = vunpack.c.l.b16 %v1149
    %v2352 = vunpack.c.h.b16 %v1149
    %v2353 = vunpack.c.l.b16 %v1150
    %v2354 = vunpack.c.h.b16 %v1150
    %v2355 = vunpack.c.l.b16 %v1151
    %v2356 = vunpack.c.h.b16 %v1151
    %v2357 = vunpack.c.l.b16 %v1152
    %v2358 = vunpack.c.h.b16 %v1152
    %v2359 = vunpack.c.l.b16 %v1153
    %v2360 = vunpack.c.h.b16 %v1153
    %v2361 = vunpack.c.l.b16 %v1154
    %v2362 = vunpack.c.h.b16 %v1154
    %v2363 = vunpack.c.l.b16 %v1155
    %v2364 = vunpack.c.h.b16 %v1155
    %v2365 = vunpack.c.l.b16 %v1156
    %v2366 = vunpack.c.h.b16 %v1156
    %v2367 = vunpack.c.l.b16 %v1157
    %v2368 = vunpack.c.h.b16 %v1157
    %v2369 = vunpack.c.l.b16 %v1158
    %v2370 = vunpack.c.h.b16 %v1158
    %v2371 = vunpack.c.l.b16 %v1159
    %v2372 = vunpack.c.h.b16 %v1159
    %v2373 = vunpack.c.l.b16 %v1160
    %v2374 = vunpack.c.h.b16 %v1160
    %v2375 = vunpack.c.l.b16 %v1161
    %v2376 = vunpack.c.h.b16 %v1161
    %v2377 = vunpack.c.l.b16 %v1162
    %v2378 = vunpack.c.h.b16 %v1162
    %v2379 = vunpack.c.l.b16 %v1163
    %v2380 = vunpack.c.h.b16 %v1163
    %v2381 = vunpack.c.l.b16 %v1164
    %v2382 = vunpack.c.h.b16 %v1164
    %v2383 = vunpack.c.l.b16 %v1165
    %v2384 = vunpack.c.h.b16 %v1165
    %v2385 = vunpack.c.l.b16 %v1166
    %v2386 = vunpack.c.h.b16 %v1166
    %v2387 = vunpack.c.l.b16 %v1167
    %v2388 = vunpack.c.h.b16 %v1167
    %v2389 = vunpack.c.l.b16 %v1168
    %v2390 = vunpack.c.h.b16 %v1168
    %v2391 = vunpack.c.l.b16 %v1169
    %v2392 = vunpack.c.h.b16 %v1169
    %v2393 = vunpack.c.l.b16 %v1170
    %v2394 = vunpack.c.h.b16 %v1170
    %v2395 = vunpack.c.l.b16 %v1171
    %v2396 = vunpack.c.h.b16 %v1171
    %v2397 = vunpack.c.l.b16 %v1172
    %v2398 = vunpack.c.h.b16 %v1172
    %v2399 = vunpack.c.l.b16 %v1173
    %v2400 = vunpack.c.h.b16 %v1173
    %v2401 = vunpack.c.l.b16 %v1174
    %v2402 = vunpack.c.h.b16 %v1174
    %v2403 = vunpack.c.l.b16 %v1175
    %v2404 = vunpack.c.h.b16 %v1175
    %v2405 = vunpack.c.l.b16 %v1176
    %v2406 = vunpack.c.h.b16 %v1176
    %v2407 = vunpack.c.l.b16 %v1177
    %v2408 = vunpack.c.h.b16 %v1177
    %v2409 = vunpack.c.l.b16 %v1178
    %v2410 = vunpack.c.h.b16 %v1178
    %v2411 = vunpack.c.l.b16 %v1179
    %v2412 = vunpack.c.h.b16 %v1179
    %v2413 = vunpack.c.l.b16 %v1180
    %v2414 = vunpack.c.h.b16 %v1180
    %v2415 = vunpack.c.l.b16 %v1181
    %v2416 = vunpack.c.h.b16 %v1181
    %v2417 = vunpack.c.l.b16 %v1182
    %v2418 = vunpack.c.h.b16 %v1182
    %v2419 = vunpack.c.l.b16 %v1183
    %v2420 = vunpack.c.h.b16 %v1183
    %v2421 = vunpack.c.l.b16 %v1184
    %v2422 = vunpack.c.h.b16 %v1184
    %v2423 = vunpack.c.l.b16 %v1185
    %v2424 = vunpack.c.h.b16 %v1185
    %v2425 = vunpack.c.l.b16 %v1186
    %v2426 = vunpack.c.h.b16 %v1186
    %v2427 = vunpack.c.l.b16 %v1187
    %v2428 = vunpack.c.h.b16 %v1187
    %v2429 = vunpack.c.l.b16 %v1188
    %v2430 = vunpack.c.h.b16 %v1188
    %v2431 = vunpack.c.l.b16 %v1189
    %v2432 = vunpack.c.h.b16 %v1189
    %v2433 = vunpack.c.l.b16 %v1190
    %v2434 = vunpack.c.h.b16 %v1190
    %v2435 = vunpack.c.l.b16 %v1191
    %v2436 = vunpack.c.h.b16 %v1191
    %v2437 = vunpack.c.l.b16 %v1192
    %v2438 = vunpack.c.h.b16 %v1192
    %v2439 = vunpack.c.l.b16 %v1193
    %v2440 = vunpack.c.h.b16 %v1193
    %v2441 = vunpack.c.l.b16 %v1194
    %v2442 = vunpack.c.h.b16 %v1194
    %v2443 = vunpack.c.l.b16 %v1195
    %v2444 = vunpack.c.h.b16 %v1195
    %v2445 = vunpack.c.l.b16 %v1196
    %v2446 = vunpack.c.h.b16 %v1196
    %v2447 = vunpack.c.l.b16 %v1197
    %v2448 = vunpack.c.h.b16 %v1197
    %v2449 = vunpack.c.l.b16 %v1198
    %v2450 = vunpack.c.h.b16 %v1198
    %v2451 = vunpack.c.l.b16 %v1199
    %v2452 = vunpack.c.h.b16 %v1199
    %v2453 = vunpack.c.l.b16 %v1200
    %v2454 = vunpack.c.h.b16 %v1200
    %v2455 = vunpack.c.l.b16 %v1201
    %v2456 = vunpack.c.h.b16 %v1201
    %v2457 = vunpack.c.l.b16 %v1202
    %v2458 = vunpack.c.h.b16 %v1202
    %v2459 = vunpack.c.l.b16 %v1203
    %v2460 = vunpack.c.h.b16 %v1203
    %v2461 = vunpack.c.l.b16 %v1204
    %v2462 = vunpack.c.h.b16 %v1204
    %v2463 = vunpack.c.l.b16 %v1205
    %v2464 = vunpack.c.h.b16 %v1205
    %v2465 = vunpack.c.l.b16 %v1206
    %v2466 = vunpack.c.h.b16 %v1206
    %v2467 = vunpack.c.l.b16 %v1207
    %v2468 = vunpack.c.h.b16 %v1207
    %v2469 = vunpack.c.l.b16 %v1208
    %v2470 = vunpack.c.h.b16 %v1208
    %v2471 = vunpack.c.l.b16 %v1209
    %v2472 = vunpack.c.h.b16 %v1209
    %v2473 = vunpack.c.l.b16 %v1210
    %v2474 = vunpack.c.h.b16 %v1210
    %v2475 = vunpack.c.l.b16 %v1211
    %v2476 = vunpack.c.h.b16 %v1211
    %v2477 = vunpack.c.l.b16 %v1212
    %v2478 = vunpack.c.h.b16 %v1212
    %v2479 = vunpack.c.l.b16 %v1213
    %v2480 = vunpack.c.h.b16 %v1213
    %v2481 = vunpack.c.l.b16 %v1214
    %v2482 = vunpack.c.h.b16 %v1214
    %v2483 = vunpack.c.l.b16 %v1215
    %v2484 = vunpack.c.h.b16 %v1215
    %v2485 = vunpack.c.l.b16 %v1216
    %v2486 = vunpack.c.h.b16 %v1216
    %v2487 = vunpack.c.l.b16 %v1217
    %v2488 = vunpack.c.h.b16 %v1217
    %v2489 = vunpack.c.l.b16 %v1218
    %v2490 = vunpack.c.h.b16 %v1218
    %v2491 = vunpack.c.l.b16 %v1219
    %v2492 = vunpack.c.h.b16 %v1219
    %v2493 = vunpack.c.l.b16 %v1220
    %v2494 = vunpack.c.h.b16 %v1220
    %v2495 = vunpack.c.l.b16 %v1221
    %v2496 = vunpack.c.h.b16 %v1221
    %v2497 = vunpack.c.l.b16 %v1222
    %v2498 = vunpack.c.h.b16 %v1222
    %v2499 = vunpack.c.l.b16 %v1223
    %v2500 = vunpack.c.h.b16 %v1223
    %v2501 = vunpack.c.l.b16 %v1224
    %v2502 = vunpack.c.h.b16 %v1224
    %v2503 = vunpack.c.l.b16 %v1225
    %v2504 = vunpack.c.h.b16 %v1225
    %v2505 = vunpack.c.l.b16 %v1226
    %v2506 = vunpack.c.h.b16 %v1226
    %v2507 = vunpack.c.l.b16 %v1227
    %v2508 = vunpack.c.h.b16 %v1227
    %v2509 = vunpack.c.l.b16 %v1228
    %v2510 = vunpack.c.h.b16 %v1228
    %v2511 = vunpack.c.l.b16 %v1229
    %v2512 = vunpack.c.h.b16 %v1229
    %v2513 = vunpack.c.l.b16 %v1230
    %v2514 = vunpack.c.h.b16 %v1230
    %v2515 = vunpack.c.l.b16 %v1231
    %v2516 = vunpack.c.h.b16 %v1231
    %v2517 = vunpack.c.l.b16 %v1232
    %v2518 = vunpack.c.h.b16 %v1232
    %v2519 = vunpack.c.l.b16 %v1233
    %v2520 = vunpack.c.h.b16 %v1233
    %v2521 = vunpack.c.l.b16 %v1234
    %v2522 = vunpack.c.h.b16 %v1234
    %v2523 = vunpack.c.l.b16 %v1235
    %v2524 = vunpack.c.h.b16 %v1235
    %v2525 = vunpack.c.l.b16 %v1236
    %v2526 = vunpack.c.h.b16 %v1236
    %v2527 = vunpack.c.l.b16 %v1237
    %v2528 = vunpack.c.h.b16 %v1237
    %v2529 = vunpack.c.l.b16 %v1238
    %v2530 = vunpack.c.h.b16 %v1238
    %v2531 = vunpack.c.l.b16 %v1239
    %v2532 = vunpack.c.h.b16 %v1239
    %v2533 = vunpack.c.l.b16 %v1240
    %v2534 = vunpack.c.h.b16 %v1240
    %v2535 = vunpack.c.l.b16 %v1241
    %v2536 = vunpack.c.h.b16 %v1241
    %v2537 = vunpack.c.l.b16 %v1242
    %v2538 = vunpack.c.h.b16 %v1242
    %v2539 = vunpack.c.l.b16 %v1243
    %v2540 = vunpack.c.h.b16 %v1243
    %v2541 = vunpack.c.l.b16 %v1244
    %v2542 = vunpack.c.h.b16 %v1244
    %v2543 = vunpack.c.l.b16 %v1245
    %v2544 = vunpack.c.h.b16 %v1245
    %v2545 = vunpack.c.l.b16 %v1246
    %v2546 = vunpack.c.h.b16 %v1246
    %v2547 = vunpack.c.l.b16 %v1247
    %v2548 = vunpack.c.h.b16 %v1247
    %v2549 = vunpack.c.l.b16 %v1248
    %v2550 = vunpack.c.h.b16 %v1248
    %v2551 = vunpack.c.l.b16 %v1249
    %v2552 = vunpack.c.h.b16 %v1249
    %v2553 = vunpack.c.l.b16 %v1250
    %v2554 = vunpack.c.h.b16 %v1250
    %v2555 = vunpack.c.l.b16 %v1251
    %v2556 = vunpack.c.h.b16 %v1251
    %v2557 = vunpack.c.l.b16 %v1252
    %v2558 = vunpack.c.h.b16 %v1252
    %v2559 = vunpack.c.l.b16 %v1253
    %v2560 = vunpack.c.h.b16 %v1253
    %v2561 = vunpack.c.l.b16 %v1254
    %v2562 = vunpack.c.h.b16 %v1254
    %v2563 = vunpack.c.l.b16 %v1255
    %v2564 = vunpack.c.h.b16 %v1255
    %v2565 = vunpack.c.l.b16 %v1256
    %v2566 = vunpack.c.h.b16 %v1256
    %v2567 = vunpack.c.l.b16 %v1257
    %v2568 = vunpack.c.h.b16 %v1257
    %v2569 = vunpack.c.l.b16 %v1258
    %v2570 = vunpack.c.h.b16 %v1258
    %v2571 = vunpack.c.l.b16 %v1259
    %v2572 = vunpack.c.h.b16 %v1259
    %v2573 = vunpack.c.l.b16 %v1260
    %v2574 = vunpack.c.h.b16 %v1260
    %v2575 = vunpack.c.l.b16 %v1261
    %v2576 = vunpack.c.h.b16 %v1261
    %v2577 = vunpack.c.l.b16 %v1262
    %v2578 = vunpack.c.h.b16 %v1262
    %v2579 = vunpack.c.l.b16 %v1263
    %v2580 = vunpack.c.h.b16 %v1263
    %v2581 = vunpack.c.l.b16 %v1264
    %v2582 = vunpack.c.h.b16 %v1264
    %v2583 = vunpack.c.l.b16 %v1265
    %v2584 = vunpack.c.h.b16 %v1265
    %v2585 = vunpack.c.l.b16 %v1266
    %v2586 = vunpack.c.h.b16 %v1266
    %v2587 = vunpack.c.l.b16 %v1267
    %v2588 = vunpack.c.h.b16 %v1267
    %v2589 = vunpack.c.l.b16 %v1268
    %v2590 = vunpack.c.h.b16 %v1268
    %v2591 = vunpack.c.l.b16 %v1269
    %v2592 = vunpack.c.h.b16 %v1269
    %v2593 = vunpack.c.l.b16 %v1270
    %v2594 = vunpack.c.h.b16 %v1270
    %v2595 = vunpack.c.l.b16 %v1271
    %v2596 = vunpack.c.h.b16 %v1271
    %v2597 = vunpack.c.l.b16 %v1272
    %v2598 = vunpack.c.h.b16 %v1272
    %v2599 = vunpack.c.l.b16 %v1273
    %v2600 = vunpack.c.h.b16 %v1273
    %v2601 = vunpack.c.l.b16 %v1274
    %v2602 = vunpack.c.h.b16 %v1274
    %v2603 = vunpack.c.l.b16 %v1275
    %v2604 = vunpack.c.h.b16 %v1275
    %v2605 = vunpack.c.l.b16 %v1276
    %v2606 = vunpack.c.h.b16 %v1276
    %v2607 = vunpack.c.l.b16 %v1277
    %v2608 = vunpack.c.h.b16 %v1277
    %v2609 = vunpack.c.l.b16 %v1278
    %v2610 = vunpack.c.h.b16 %v1278
    %v2611 = vunpack.c.l.b16 %v1279
    %v2612 = vunpack.c.h.b16 %v1279
    %v2613 = vunpack.c.l.b16 %v1280
    %v2614 = vunpack.c.h.b16 %v1280
    %v2615 = vunpack.c.l.b16 %v1281
    %v2616 = vunpack.c.h.b16 %v1281
    %v2617 = vunpack.c.l.b16 %v1282
    %v2618 = vunpack.c.h.b16 %v1282
    %v2619 = vunpack.c.l.b16 %v1283
    %v2620 = vunpack.c.h.b16 %v1283
    %v2621 = vunpack.c.l.b16 %v1284
    %v2622 = vunpack.c.h.b16 %v1284
    %v2623 = vunpack.c.l.b16 %v1285
    %v2624 = vunpack.c.h.b16 %v1285
    %v2625 = vunpack.c.l.b16 %v1286
    %v2626 = vunpack.c.h.b16 %v1286
    %v2627 = vunpack.c.l.b16 %v1287
    %v2628 = vunpack.c.h.b16 %v1287
    %v2629 = vunpack.c.l.b16 %v1288
    %v2630 = vunpack.c.h.b16 %v1288
    %v2631 = vunpack.c.l.b16 %v1289
    %v2632 = vunpack.c.h.b16 %v1289
    %v2633 = vunpack.c.l.b16 %v1290
    %v2634 = vunpack.c.h.b16 %v1290
    %v2635 = vunpack.c.l.b16 %v1291
    %v2636 = vunpack.c.h.b16 %v1291
    %v2637 = vunpack.c.l.b16 %v1292
    %v2638 = vunpack.c.h.b16 %v1292
    %v2639 = vunpack.c.l.b16 %v1293
    %v2640 = vunpack.c.h.b16 %v1293
    %v2641 = vunpack.c.l.b16 %v1294
    %v2642 = vunpack.c.h.b16 %v1294
    %v2643 = vunpack.c.l.b16 %v1295
    %v2644 = vunpack.c.h.b16 %v1295
    %v2645 = vunpack.c.l.b16 %v1296
    %v2646 = vunpack.c.h.b16 %v1296
    %v2647 = vunpack.c.l.b16 %v1297
    %v2648 = vunpack.c.h.b16 %v1297
    %v2649 = vunpack.c.l.b16 %v1298
    %v2650 = vunpack.c.h.b16 %v1298
    %v2651 = vunpack.c.l.b16 %v1299
    %v2652 = vunpack.c.h.b16 %v1299
    %v2653 = vunpack.c.l.b16 %v1300
    %v2654 = vunpack.c.h.b16 %v1300
    %v2655 = vunpack.c.l.b16 %v1301
    %v2656 = vunpack.c.h.b16 %v1301
    %v2657 = vunpack.c.l.b16 %v1302
    %v2658 = vunpack.c.h.b16 %v1302
    %v2659 = vunpack.c.l.b16 %v1303
    %v2660 = vunpack.c.h.b16 %v1303
    %v2661 = vunpack.c.l.b16 %v1304
    %v2662 = vunpack.c.h.b16 %v1304
    %v2663 = vunpack.c.l.b16 %v1305
    %v2664 = vunpack.c.h.b16 %v1305
    %v2665 = vunpack.c.l.b16 %v1306
    %v2666 = vunpack.c.h.b16 %v1306
    %v2667 = vunpack.c.l.b16 %v1307
    %v2668 = vunpack.c.h.b16 %v1307
    %v2669 = vunpack.c.l.b16 %v1308
    %v2670 = vunpack.c.h.b16 %v1308
    %v2671 = vunpack.c.l.b16 %v1309
    %v2672 = vunpack.c.h.b16 %v1309
    %v2673 = vunpack.c.l.b16 %v1310
    %v2674 = vunpack.c.h.b16 %v1310
    %v2675 = vunpack.c.l.b16 %v1311
    %v2676 = vunpack.c.h.b16 %v1311
    %v2677 = vunpack.c.l.b16 %v1312
    %v2678 = vunpack.c.h.b16 %v1312
    %v2679 = vunpack.c.l.b16 %v1313
    %v2680 = vunpack.c.h.b16 %v1313
    %v2681 = vunpack.c.l.b16 %v1314
    %v2682 = vunpack.c.h.b16 %v1314
    %v2683 = vunpack.c.l.b16 %v1315
    %v2684 = vunpack.c.h.b16 %v1315
    %v2685 = vunpack.c.l.b16 %v1316
    %v2686 = vunpack.c.h.b16 %v1316
    %v2687 = vunpack.c.l.b16 %v1317
    %v2688 = vunpack.c.h.b16 %v1317
    %v2689 = vunpack.c.l.b16 %v1318
    %v2690 = vunpack.c.h.b16 %v1318
    %v2691 = vunpack.c.l.b16 %v1319
    %v2692 = vunpack.c.h.b16 %v1319
    %v2693 = vunpack.c.l.b16 %v1320
    %v2694 = vunpack.c.h.b16 %v1320
    %v2695 = vunpack.c.l.b16 %v1321
    %v2696 = vunpack.c.h.b16 %v1321
    %v2697 = vunpack.c.l.b16 %v1322
    %v2698 = vunpack.c.h.b16 %v1322
    %v2699 = vunpack.c.l.b16 %v1323
    %v2700 = vunpack.c.h.b16 %v1323
    %v2701 = vunpack.c.l.b16 %v1324
    %v2702 = vunpack.c.h.b16 %v1324
    %v2703 = vunpack.c.l.b16 %v1325
    %v2704 = vunpack.c.h.b16 %v1325
    %v2705 = vunpack.c.l.b16 %v1326
    %v2706 = vunpack.c.h.b16 %v1326
    %v2707 = vunpack.c.l.b16 %v1327
    %v2708 = vunpack.c.h.b16 %v1327
    %v2709 = vunpack.c.l.b16 %v1328
    %v2710 = vunpack.c.h.b16 %v1328
    %v2711 = vunpack.c.l.b16 %v1329
    %v2712 = vunpack.c.h.b16 %v1329
    %v2713 = vunpack.c.l.b16 %v1330
    %v2714 = vunpack.c.h.b16 %v1330
    %v2715 = vunpack.c.l.b16 %v1331
    %v2716 = vunpack.c.h.b16 %v1331
    %v2717 = vunpack.c.l.b16 %v1332
    %v2718 = vunpack.c.h.b16 %v1332
    %v2719 = vunpack.c.l.b16 %v1333
    %v2720 = vunpack.c.h.b16 %v1333
    %v2721 = vunpack.c.l.b16 %v1334
    %v2722 = vunpack.c.h.b16 %v1334
    %v2723 = vunpack.c.l.b16 %v1335
    %v2724 = vunpack.c.h.b16 %v1335
    %v2725 = vunpack.c.l.b16 %v1336
    %v2726 = vunpack.c.h.b16 %v1336
    %v2727 = vunpack.c.l.b16 %v1337
    %v2728 = vunpack.c.h.b16 %v1337
    %v2729 = vunpack.c.l.b16 %v1338
    %v2730 = vunpack.c.h.b16 %v1338
    %v2731 = vunpack.c.l.b16 %v1339
    %v2732 = vunpack.c.h.b16 %v1339
    %v2733 = vunpack.c.l.b16 %v1340
    %v2734 = vunpack.c.h.b16 %v1340
    %v2735 = vunpack.c.l.b16 %v1341
    %v2736 = vunpack.c.h.b16 %v1341
    %v2737 = vunpack.c.l.b16 %v1342
    %v2738 = vunpack.c.h.b16 %v1342
    %v2739 = vunpack.c.l.b16 %v1343
    %v2740 = vunpack.c.h.b16 %v1343
    %v2741 = vunpack.c.l.b16 %v1344
    %v2742 = vunpack.c.h.b16 %v1344
    %v2743 = vunpack.c.l.b16 %v1345
    %v2744 = vunpack.c.h.b16 %v1345
    %v2745 = vunpack.c.l.b16 %v1346
    %v2746 = vunpack.c.h.b16 %v1346
    %v2747 = vunpack.c.l.b16 %v1347
    %v2748 = vunpack.c.h.b16 %v1347
    %v2749 = vunpack.c.l.b16 %v1348
    %v2750 = vunpack.c.h.b16 %v1348
    %v2751 = vunpack.c.l.b16 %v1349
    %v2752 = vunpack.c.h.b16 %v1349
    %v2753 = vunpack.c.l.b16 %v1350
    %v2754 = vunpack.c.h.b16 %v1350
    %v2755 = vunpack.c.l.b16 %v1351
    %v2756 = vunpack.c.h.b16 %v1351
    %v2757 = vunpack.c.l.b16 %v1352
    %v2758 = vunpack.c.h.b16 %v1352
    %v2759 = vunpack.c.l.b16 %v1353
    %v2760 = vunpack.c.h.b16 %v1353
    %v2761 = vunpack.c.l.b16 %v1354
    %v2762 = vunpack.c.h.b16 %v1354
    %v2763 = vunpack.c.l.b16 %v1355
    %v2764 = vunpack.c.h.b16 %v1355
    %v2765 = vunpack.c.l.b16 %v1356
    %v2766 = vunpack.c.h.b16 %v1356
    %v2767 = vunpack.c.l.b16 %v1357
    %v2768 = vunpack.c.h.b16 %v1357
    %v2769 = vunpack.c.l.b16 %v1358
    %v2770 = vunpack.c.h.b16 %v1358
    %v2771 = vunpack.c.l.b16 %v1359
    %v2772 = vunpack.c.h.b16 %v1359
    %v2773 = vunpack.c.l.b16 %v1360
    %v2774 = vunpack.c.h.b16 %v1360
    %v2775 = vunpack.c.l.b16 %v1361
    %v2776 = vunpack.c.h.b16 %v1361
    %v2777 = vunpack.c.l.b16 %v1362
    %v2778 = vunpack.c.h.b16 %v1362
    %v2779 = vunpack.c.l.b16 %v1363
    %v2780 = vunpack.c.h.b16 %v1363
    %v2781 = vunpack.c.l.b16 %v1364
    %v2782 = vunpack.c.h.b16 %v1364
    %v2783 = vunpack.c.l.b16 %v1365
    %v2784 = vunpack.c.h.b16 %v1365
    %v2785 = vunpack.c.l.b16 %v1366
    %v2786 = vunpack.c.h.b16 %v1366
    %v2787 = vunpack.c.l.b16 %v1367
    %v2788 = vunpack.c.h.b16 %v1367
    %v2789 = vunpack.c.l.b16 %v1368
    %v2790 = vunpack.c.h.b16 %v1368
    %v2791 = vunpack.c.l.b16 %v1369
    %v2792 = vunpack.c.h.b16 %v1369
    %v2793 = vunpack.c.l.b16 %v1370
    %v2794 = vunpack.c.h.b16 %v1370
    %v2795 = vunpack.c.l.b16 %v1371
    %v2796 = vunpack.c.h.b16 %v1371
    %v2797 = vunpack.c.l.b16 %v1372
    %v2798 = vunpack.c.h.b16 %v1372
    %v2799 = vunpack.c.l.b16 %v1373
    %v2800 = vunpack.c.h.b16 %v1373
    %v2801 = vunpack.c.l.b16 %v1374
    %v2802 = vunpack.c.h.b16 %v1374
    %v2803 = vunpack.c.l.b16 %v1375
    %v2804 = vunpack.c.h.b16 %v1375
    %v2805 = vunpack.c.l.b16 %v1376
    %v2806 = vunpack.c.h.b16 %v1376
    %v2807 = vunpack.c.l.b16 %v1377
    %v2808 = vunpack.c.h.b16 %v1377
    %v2809 = vunpack.c.l.b16 %v1378
    %v2810 = vunpack.c.h.b16 %v1378
    %v2811 = vunpack.c.l.b16 %v1379
    %v2812 = vunpack.c.h.b16 %v1379
    %v2813 = vunpack.c.l.b16 %v1380
    %v2814 = vunpack.c.h.b16 %v1380
    %v2815 = vunpack.c.l.b16 %v1381
    %v2816 = vunpack.c.h.b16 %v1381
    %v2817 = vunpack.c.l.b16 %v1382
    %v2818 = vunpack.c.h.b16 %v1382
    %v2819 = vunpack.c.l.b16 %v1383
    %v2820 = vunpack.c.h.b16 %v1383
    %v2821 = vunpack.c.l.b16 %v1384
    %v2822 = vunpack.c.h.b16 %v1384
    %v2823 = vunpack.c.l.b16 %v1385
    %v2824 = vunpack.c.h.b16 %v1385
    %v2825 = vunpack.c.l.b16 %v1386
    %v2826 = vunpack.c.h.b16 %v1386
    %v2827 = vunpack.c.l.b16 %v1387
    %v2828 = vunpack.c.h.b16 %v1387
    %v2829 = vunpack.c.l.b16 %v1388
    %v2830 = vunpack.c.h.b16 %v1388
    %v2831 = vunpack.c.l.b16 %v1389
    %v2832 = vunpack.c.h.b16 %v1389
    %v2833 = vunpack.c.l.b16 %v1390
    %v2834 = vunpack.c.h.b16 %v1390
    %v2835 = vunpack.c.l.b16 %v1391
    %v2836 = vunpack.c.h.b16 %v1391
    %v2837 = vunpack.c.l.b16 %v1392
    %v2838 = vunpack.c.h.b16 %v1392
    %v2839 = vunpack.c.l.b16 %v1393
    %v2840 = vunpack.c.h.b16 %v1393
    %v2841 = vunpack.c.l.b16 %v1394
    %v2842 = vunpack.c.h.b16 %v1394
    %v2843 = vunpack.c.l.b16 %v1395
    %v2844 = vunpack.c.h.b16 %v1395
    %v2845 = vunpack.c.l.b16 %v1396
    %v2846 = vunpack.c.h.b16 %v1396
    %v2847 = vunpack.c.l.b16 %v1397
    %v2848 = vunpack.c.h.b16 %v1397
    %v2849 = vunpack.c.l.b16 %v1398
    %v2850 = vunpack.c.h.b16 %v1398
    %v2851 = vunpack.c.l.b16 %v1399
    %v2852 = vunpack.c.h.b16 %v1399
    %v2853 = vunpack.c.l.b16 %v1400
    %v2854 = vunpack.c.h.b16 %v1400
    %v2855 = vunpack.c.l.b16 %v1401
    %v2856 = vunpack.c.h.b16 %v1401
    %v2857 = vunpack.c.l.b16 %v1402
    %v2858 = vunpack.c.h.b16 %v1402
    %v2859 = vunpack.c.l.b16 %v1403
    %v2860 = vunpack.c.h.b16 %v1403
    %v2861 = vunpack.c.l.b16 %v1404
    %v2862 = vunpack.c.h.b16 %v1404
    %v2863 = vunpack.c.l.b16 %v1405
    %v2864 = vunpack.c.h.b16 %v1405
    %v2865 = vunpack.c.l.b16 %v1406
    %v2866 = vunpack.c.h.b16 %v1406
    %v2867 = vunpack.c.l.b16 %v1407
    %v2868 = vunpack.c.h.b16 %v1407
    %v2869 = vunpack.c.l.b16 %v1408
    %v2870 = vunpack.c.h.b16 %v1408
    %v2871 = vunpack.c.l.b16 %v1409
    %v2872 = vunpack.c.h.b16 %v1409
    %v2873 = vunpack.c.l.b16 %v1410
    %v2874 = vunpack.c.h.b16 %v1410
    %v2875 = vunpack.c.l.b16 %v1411
    %v2876 = vunpack.c.h.b16 %v1411
    %v2877 = vunpack.c.l.b16 %v1412
    %v2878 = vunpack.c.h.b16 %v1412
    %v2879 = vunpack.c.l.b16 %v1413
    %v2880 = vunpack.c.h.b16 %v1413
    %v2881 = vunpack.c.l.b16 %v1414
    %v2882 = vunpack.c.h.b16 %v1414
    %v2883 = vunpack.c.l.b16 %v1415
    %v2884 = vunpack.c.h.b16 %v1415
    %v2885 = vunpack.c.l.b16 %v1416
    %v2886 = vunpack.c.h.b16 %v1416
    %v2887 = vunpack.c.l.b16 %v1417
    %v2888 = vunpack.c.h.b16 %v1417
    %v2889 = vunpack.c.l.b16 %v1418
    %v2890 = vunpack.c.h.b16 %v1418
    %v2891 = vunpack.c.l.b16 %v1419
    %v2892 = vunpack.c.h.b16 %v1419
    %v2893 = vunpack.c.l.b16 %v1420
    %v2894 = vunpack.c.h.b16 %v1420
    %v2895 = vunpack.c.l.b16 %v1421
    %v2896 = vunpack.c.h.b16 %v1421
    %v2897 = vunpack.c.l.b16 %v1422
    %v2898 = vunpack.c.h.b16 %v1422
    %v2899 = vunpack.c.l.b16 %v1423
    %v2900 = vunpack.c.h.b16 %v1423
    %v2901 = vunpack.c.l.b16 %v1424
    %v2902 = vunpack.c.h.b16 %v1424
    %v2903 = vunpack.c.l.b16 %v1425
    %v2904 = vunpack.c.h.b16 %v1425
    %v2905 = vunpack.c.l.b16 %v1426
    %v2906 = vunpack.c.h.b16 %v1426
    %v2907 = vunpack.c.l.b16 %v1427
    %v2908 = vunpack.c.h.b16 %v1427
    %v2909 = vunpack.c.l.b16 %v1428
    %v2910 = vunpack.c.h.b16 %v1428
    %v2911 = vunpack.c.l.b16 %v1429
    %v2912 = vunpack.c.h.b16 %v1429
    %v2913 = vunpack.c.l.b16 %v1430
    %v2914 = vunpack.c.h.b16 %v1430
    %v2915 = vunpack.c.l.b16 %v1431
    %v2916 = vunpack.c.h.b16 %v1431
    %v2917 = vunpack.c.l.b16 %v1432
    %v2918 = vunpack.c.h.b16 %v1432
    %v2919 = vunpack.c.l.b16 %v1433
    %v2920 = vunpack.c.h.b16 %v1433
    %v2921 = vunpack.c.l.b16 %v1434
    %v2922 = vunpack.c.h.b16 %v1434
    %v2923 = vunpack.c.l.b16 %v1435
    %v2924 = vunpack.c.h.b16 %v1435
    %v2925 = vunpack.c.l.b16 %v1436
    %v2926 = vunpack.c.h.b16 %v1436
    %v2927 = vunpack.c.l.b16 %v1437
    %v2928 = vunpack.c.h.b16 %v1437
    %v2929 = vunpack.c.l.b16 %v1438
    %v2930 = vunpack.c.h.b16 %v1438
    %v2931 = vunpack.c.l.b16 %v1439
    %v2932 = vunpack.c.h.b16 %v1439
    %v2933 = vunpack.c.l.b16 %v1440
    %v2934 = vunpack.c.h.b16 %v1440
    %v2935 = vunpack.c.l.b16 %v1441
    %v2936 = vunpack.c.h.b16 %v1441
    %v2937 = vunpack.c.l.b16 %v1442
    %v2938 = vunpack.c.h.b16 %v1442
    %v2939 = vunpack.c.l.b16 %v1443
    %v2940 = vunpack.c.h.b16 %v1443
    %v2941 = vunpack.c.l.b16 %v1444
    %v2942 = vunpack.c.h.b16 %v1444
    %v2943 = vunpack.c.l.b16 %v1445
    %v2944 = vunpack.c.h.b16 %v1445
    %v2945 = vunpack.c.l.b16 %v1446
    %v2946 = vunpack.c.h.b16 %v1446
    %v2947 = vunpack.c.l.b16 %v1447
    %v2948 = vunpack.c.h.b16 %v1447
    %v2949 = vunpack.c.l.b16 %v1448
    %v2950 = vunpack.c.h.b16 %v1448
    %v2951 = vunpack.c.l.b16 %v1449
    %v2952 = vunpack.c.h.b16 %v1449
    %v2953 = vunpack.c.l.b16 %v1450
    %v2954 = vunpack.c.h.b16 %v1450
    %v2955 = vunpack.c.l.b16 %v1451
    %v2956 = vunpack.c.h.b16 %v1451
    %v2957 = vunpack.c.l.b16 %v1452
    %v2958 = vunpack.c.h.b16 %v1452
    %v2959 = vunpack.c.l.b16 %v1453
    %v2960 = vunpack.c.h.b16 %v1453
    %v2961 = vunpack.c.l.b16 %v1454
    %v2962 = vunpack.c.h.b16 %v1454
    %v2963 = vunpack.c.l.b16 %v1455
    %v2964 = vunpack.c.h.b16 %v1455
    %v2965 = vunpack.c.l.b16 %v1456
    %v2966 = vunpack.c.h.b16 %v1456
    %v2967 = vunpack.c.l.b16 %v1457
    %v2968 = vunpack.c.h.b16 %v1457
    %v2969 = vunpack.c.l.b16 %v1458
    %v2970 = vunpack.c.h.b16 %v1458
    %v2971 = vunpack.c.l.b16 %v1459
    %v2972 = vunpack.c.h.b16 %v1459
    %v2973 = vunpack.c.l.b16 %v1460
    %v2974 = vunpack.c.h.b16 %v1460
    %v2975 = vunpack.c.l.b16 %v1461
    %v2976 = vunpack.c.h.b16 %v1461
    %v2977 = vunpack.c.l.b16 %v1462
    %v2978 = vunpack.c.h.b16 %v1462
    %v2979 = vunpack.c.l.b16 %v1463
    %v2980 = vunpack.c.h.b16 %v1463
    %v2981 = vunpack.c.l.b16 %v1464
    %v2982 = vunpack.c.h.b16 %v1464
    %v2983 = vunpack.c.l.b16 %v1465
    %v2984 = vunpack.c.h.b16 %v1465
    %v2985 = vunpack.c.l.b16 %v1466
    %v2986 = vunpack.c.h.b16 %v1466
    %v2987 = vunpack.c.l.b16 %v1467
    %v2988 = vunpack.c.h.b16 %v1467
    %v2989 = vunpack.c.l.b16 %v1468
    %v2990 = vunpack.c.h.b16 %v1468
    %v2991 = vunpack.c.l.b16 %v1469
    %v2992 = vunpack.c.h.b16 %v1469
    %v2993 = vunpack.c.l.b16 %v1470
    %v2994 = vunpack.c.h.b16 %v1470
    %v2995 = vunpack.c.l.b16 %v1471
    %v2996 = vunpack.c.h.b16 %v1471
    %v2997 = vunpack.c.l.b16 %v1472
    %v2998 = vunpack.c.h.b16 %v1472
    %v2999 = vunpack.c.l.b16 %v1473
    %v3000 = vunpack.c.h.b16 %v1473
    %v3001 = vunpack.c.l.b16 %v1474
    %v3002 = vunpack.c.h.b16 %v1474
    %v3003 = vunpack.c.l.b16 %v1475
    %v3004 = vunpack.c.h.b16 %v1475
    %v3005 = vunpack.c.l.b16 %v1476
    %v3006 = vunpack.c.h.b16 %v1476
    %v3007 = vunpack.c.l.b16 %v1477
    %v3008 = vunpack.c.h.b16 %v1477
    %v3009 = vunpack.c.l.b16 %v1478
    %v3010 = vunpack.c.h.b16 %v1478
    %v3011 = vunpack.c.l.b16 %v1479
    %v3012 = vunpack.c.h.b16 %v1479
    %v3013 = vunpack.c.l.b16 %v1480
    %v3014 = vunpack.c.h.b16 %v1480
    %v3015 = vunpack.c.l.b16 %v1481
    %v3016 = vunpack.c.h.b16 %v1481
    %v3017 = vunpack.c.l.b16 %v1482
    %v3018 = vunpack.c.h.b16 %v1482
    %v3019 = vunpack.c.l.b16 %v1483
    %v3020 = vunpack.c.h.b16 %v1483
    %v3021 = vunpack.c.l.b16 %v1484
    %v3022 = vunpack.c.h.b16 %v1484
    %v3023 = vunpack.c.l.b16 %v1485
    %v3024 = vunpack.c.h.b16 %v1485
    %v3025 = vunpack.c.l.b16 %v1486
    %v3026 = vunpack.c.h.b16 %v1486
    %v3027 = vunpack.c.l.b16 %v1487
    %v3028 = vunpack.c.h.b16 %v1487
    %v3029 = vunpack.c.l.b16 %v1488
    %v3030 = vunpack.c.h.b16 %v1488
    %v3031 = vunpack.c.l.b16 %v1489
    %v3032 = vunpack.c.h.b16 %v1489
    %v3033 = vunpack.c.l.b16 %v1490
    %v3034 = vunpack.c.h.b16 %v1490
    %v3035 = vunpack.c.l.b16 %v1491
    %v3036 = vunpack.c.h.b16 %v1491
    %v3037 = vunpack.c.l.b16 %v1492
    %v3038 = vunpack.c.h.b16 %v1492
    %v3039 = vunpack.c.l.b16 %v1493
    %v3040 = vunpack.c.h.b16 %v1493
    %v3041 = vunpack.c.l.b16 %v1494
    %v3042 = vunpack.c.h.b16 %v1494
    %v3043 = vunpack.c.l.b16 %v1495
    %v3044 = vunpack.c.h.b16 %v1495
    %v3045 = vunpack.c.l.b16 %v1496
    %v3046 = vunpack.c.h.b16 %v1496
    %v3047 = vunpack.c.l.b16 %v1497
    %v3048 = vunpack.c.h.b16 %v1497
    %v3049 = vunpack.c.l.b16 %v1498
    %v3050 = vunpack.c.h.b16 %v1498
    %v3051 = vunpack.c.l.b16 %v1499
    %v3052 = vunpack.c.h.b16 %v1499
    %v3053 = vunpack.c.l.b16 %v1500
    %v3054 = vunpack.c.h.b16 %v1500
    %v3055 = vunpack.c.l.b16 %v1501
    %v3056 = vunpack.c.h.b16 %v1501
    %v3057 = vunpack.c.l.b16 %v1502
    %v3058 = vunpack.c.h.b16 %v1502
    %v3059 = vunpack.c.l.b16 %v1503
    %v3060 = vunpack.c.h.b16 %v1503
    %v3061 = vunpack.c.l.b16 %v1504
    %v3062 = vunpack.c.h.b16 %v1504
    %v3063 = vunpack.c.l.b16 %v1505
    %v3064 = vunpack.c.h.b16 %v1505
    %v3065 = vunpack.c.l.b16 %v1506
    %v3066 = vunpack.c.h.b16 %v1506
    %v3067 = vunpack.c.l.b16 %v1507
    %v3068 = vunpack.c.h.b16 %v1507
    %v3069 = vunpack.c.l.b16 %v1508
    %v3070 = vunpack.c.h.b16 %v1508
    %v3071 = vunpack.c.l.b16 %v1509
    %v3072 = vunpack.c.h.b16 %v1509
    %v3073 = vunpack.c.l.b16 %v1510
    %v3074 = vunpack.c.h.b16 %v1510
    %v3075 = vunpack.c.l.b16 %v1511
    %v3076 = vunpack.c.h.b16 %v1511
    %v3077 = vunpack.c.l.b16 %v1512
    %v3078 = vunpack.c.h.b16 %v1512
    %v3079 = vunpack.c.l.b16 %v1513
    %v3080 = vunpack.c.h.b16 %v1513
    %v3081 = vunpack.c.l.b16 %v1514
    %v3082 = vunpack.c.h.b16 %v1514
    %v3083 = vunpack.c.l.b16 %v1515
    %v3084 = vunpack.c.h.b16 %v1515
    %v3085 = vunpack.c.l.b16 %v1516
    %v3086 = vunpack.c.h.b16 %v1516
    %v3087 = vunpack.c.l.b16 %v1517
    %v3088 = vunpack.c.h.b16 %v1517
    %v3089 = vunpack.c.l.b16 %v1518
    %v3090 = vunpack.c.h.b16 %v1518
    %v3091 = vunpack.c.l.b16 %v1519
    %v3092 = vunpack.c.h.b16 %v1519
    %v3093 = vunpack.c.l.b16 %v1520
    %v3094 = vunpack.c.h.b16 %v1520
    %v3095 = vunpack.c.l.b16 %v1521
    %v3096 = vunpack.c.h.b16 %v1521
    %v3097 = vunpack.c.l.b16 %v1522
    %v3098 = vunpack.c.h.b16 %v1522
    %v3099 = vunpack.c.l.b16 %v1523
    %v3100 = vunpack.c.h.b16 %v1523
    %v3101 = vunpack.c.l.b16 %v1524
    %v3102 = vunpack.c.h.b16 %v1524
    %v3103 = vunpack.c.l.b16 %v1525
    %v3104 = vunpack.c.h.b16 %v1525
    %v3105 = vunpack.c.l.b16 %v1526
    %v3106 = vunpack.c.h.b16 %v1526
    %v3107 = vunpack.c.l.b16 %v1527
    %v3108 = vunpack.c.h.b16 %v1527
    %v3109 = vunpack.c.l.b16 %v1528
    %v3110 = vunpack.c.h.b16 %v1528
    %v3111 = vunpack.c.l.b16 %v1529
    %v3112 = vunpack.c.h.b16 %v1529
    %v3113 = vunpack.c.l.b16 %v1530
    %v3114 = vunpack.c.h.b16 %v1530
    %v3115 = vunpack.c.l.b16 %v1531
    %v3116 = vunpack.c.h.b16 %v1531
    %v3117 = vunpack.c.l.b16 %v1532
    %v3118 = vunpack.c.h.b16 %v1532
    %v3119 = vunpack.c.l.b16 %v1533
    %v3120 = vunpack.c.h.b16 %v1533
    %v3121 = vunpack.c.l.b16 %v1534
    %v3122 = vunpack.c.h.b16 %v1534
    %v3123 = vunpack.c.l.b16 %v1535
    %v3124 = vunpack.c.h.b16 %v1535
    %v3125 = vunpack.c.l.b16 %v1536
    %v3126 = vunpack.c.h.b16 %v1536
    %v3127 = vunpack.c.l.b16 %v1537
    %v3128 = vunpack.c.h.b16 %v1537
    %v3129 = vunpack.c.l.b16 %v1538
    %v3130 = vunpack.c.h.b16 %v1538
    %v3131 = vunpack.c.l.b16 %v1539
    %v3132 = vunpack.c.h.b16 %v1539
    %v3133 = vunpack.c.l.b16 %v1540
    %v3134 = vunpack.c.h.b16 %v1540
    %v3135 = vunpack.c.l.b16 %v1541
    %v3136 = vunpack.c.h.b16 %v1541
    %v3137 = vunpack.c.l.b16 %v1542
    %v3138 = vunpack.c.h.b16 %v1542
    %v3139 = vunpack.c.l.b16 %v1543
    %v3140 = vunpack.c.h.b16 %v1543
    %v3141 = vunpack.c.l.b16 %v1544
    %v3142 = vunpack.c.h.b16 %v1544
    %v3143 = vunpack.c.l.b16 %v1545
    %v3144 = vunpack.c.h.b16 %v1545
    %v3145 = vunpack.c.l.b16 %v1546
    %v3146 = vunpack.c.h.b16 %v1546
    %v3147 = vunpack.c.l.b16 %v1547
    %v3148 = vunpack.c.h.b16 %v1547
    %v3149 = vunpack.c.l.b16 %v1548
    %v3150 = vunpack.c.h.b16 %v1548
    %v3151 = vunpack.c.l.b16 %v1549
    %v3152 = vunpack.c.h.b16 %v1549
    %v3153 = vunpack.c.l.b16 %v1550
    %v3154 = vunpack.c.h.b16 %v1550
    %v3155 = vunpack.c.l.b16 %v1551
    %v3156 = vunpack.c.h.b16 %v1551
    %v3157 = vunpack.c.l.b16 %v1552
    %v3158 = vunpack.c.h.b16 %v1552
    %v3159 = vunpack.c.l.b16 %v1553
    %v3160 = vunpack.c.h.b16 %v1553
    %v3161 = vunpack.c.l.b16 %v1554
    %v3162 = vunpack.c.h.b16 %v1554
    %v3163 = vunpack.c.l.b16 %v1555
    %v3164 = vunpack.c.h.b16 %v1555
    %v3165 = vunpack.c.l.b16 %v1556
    %v3166 = vunpack.c.h.b16 %v1556
    %v3167 = vunpack.c.l.b16 %v1557
    %v3168 = vunpack.c.h.b16 %v1557
    %v3169 = vunpack.c.l.b16 %v1558
    %v3170 = vunpack.c.h.b16 %v1558
    %v3171 = vunpack.c.l.b16 %v1559
    %v3172 = vunpack.c.h.b16 %v1559
    %v3173 = vunpack.c.l.b16 %v1560
    %v3174 = vunpack.c.h.b16 %v1560
    %v3175 = vunpack.c.l.b16 %v1561
    %v3176 = vunpack.c.h.b16 %v1561
    %v3177 = vunpack.c.l.b16 %v1562
    %v3178 = vunpack.c.h.b16 %v1562
    %v3179 = vunpack.c.l.b16 %v1563
    %v3180 = vunpack.c.h.b16 %v1563
    %v3181 = vunpack.c.l.b16 %v1564
    %v3182 = vunpack.c.h.b16 %v1564
    %v3183 = vunpack.c.l.b16 %v1565
    %v3184 = vunpack.c.h.b16 %v1565
    %v3185 = vunpack.c.l.b16 %v1566
    %v3186 = vunpack.c.h.b16 %v1566
    %v3187 = vunpack.c.l.b16 %v1567
    %v3188 = vunpack.c.h.b16 %v1567
    %v3189 = vunpack.c.l.b16 %v1568
    %v3190 = vunpack.c.h.b16 %v1568
    %v3191 = vunpack.c.l.b16 %v1569
    %v3192 = vunpack.c.h.b16 %v1569
    %v3193 = vunpack.c.l.b16 %v1570
    %v3194 = vunpack.c.h.b16 %v1570
    %v3195 = vunpack.c.l.b16 %v1571
    %v3196 = vunpack.c.h.b16 %v1571
    %v3197 = vunpack.c.l.b16 %v1572
    %v3198 = vunpack.c.h.b16 %v1572
    %v3199 = vunpack.c.l.b16 %v1573
    %v3200 = vunpack.c.h.b16 %v1573
    %v3201 = vunpack.c.l.b16 %v1574
    %v3202 = vunpack.c.h.b16 %v1574
    %v3203 = vunpack.c.l.b16 %v1575
    %v3204 = vunpack.c.h.b16 %v1575
    %v3205 = vunpack.c.l.b16 %v1576
    %v3206 = vunpack.c.h.b16 %v1576
    %v3207 = vunpack.c.l.b16 %v1577
    %v3208 = vunpack.c.h.b16 %v1577
    %v3209 = vunpack.c.l.b16 %v1578
    %v3210 = vunpack.c.h.b16 %v1578
    %v3211 = vunpack.c.l.b16 %v1579
    %v3212 = vunpack.c.h.b16 %v1579
    %v3213 = vunpack.c.l.b16 %v1580
    %v3214 = vunpack.c.h.b16 %v1580
    %v3215 = vunpack.c.l.b16 %v1581
    %v3216 = vunpack.c.h.b16 %v1581
    %v3217 = vunpack.c.l.b16 %v1582
    %v3218 = vunpack.c.h.b16 %v1582
    %v3219 = vunpack.c.l.b16 %v1583
    %v3220 = vunpack.c.h.b16 %v1583
    %v3221 = vunpack.c.l.b16 %v1584
    %v3222 = vunpack.c.h.b16 %v1584
    %v3223 = vunpack.c.l.b16 %v1585
    %v3224 = vunpack.c.h.b16 %v1585
    %v3225 = vunpack.c.l.b16 %v1586
    %v3226 = vunpack.c.h.b16 %v1586
    %v3227 = vunpack.c.l.b16 %v1587
    %v3228 = vunpack.c.h.b16 %v1587
    %v3229 = vunpack.c.l.b16 %v1588
    %v3230 = vunpack.c.h.b16 %v1588
    %v3231 = vunpack.c.l.b16 %v1589
    %v3232 = vunpack.c.h.b16 %v1589
    %v3233 = vunpack.c.l.b16 %v1590
    %v3234 = vunpack.c.h.b16 %v1590
    %v3235 = vunpack.c.l.b16 %v1591
    %v3236 = vunpack.c.h.b16 %v1591
    %v3237 = vunpack.c.l.b16 %v1592
    %v3238 = vunpack.c.h.b16 %v1592
    %v3239 = vunpack.c.l.b16 %v1593
    %v3240 = vunpack.c.h.b16 %v1593
    %v3241 = vunpack.c.l.b16 %v1594
    %v3242 = vunpack.c.h.b16 %v1594
    %v3243 = vpack.c.b16 %v2227, %v2219
    %v3244 = vpack.c.b16 %v2228, %v2220
    %v3245 = vpack.c.b16 %v2229, %v2221
    %v3246 = vpack.c.b16 %v2230, %v2222
    %v3247 = vpack.c.b16 %v2231, %v2223
    %v3248 = vpack.c.b16 %v2232, %v2224
    %v3249 = vpack.c.b16 %v2233, %v2225
    %v3250 = vpack.c.b16 %v2234, %v2226
    %v3251 = vpack.c.b16 %v2243, %v2235
    %v3252 = vpack.c.b16 %v2244, %v2236
    %v3253 = vpack.c.b16 %v2245, %v2237
    %v3254 = vpack.c.b16 %v2246, %v2238
    %v3255 = vpack.c.b16 %v2247, %v2239
    %v3256 = vpack.c.b16 %v2248, %v2240
    %v3257 = vpack.c.b16 %v2249, %v2241
    %v3258 = vpack.c.b16 %v2250, %v2242
    %v3259 = vpack.c.b16 %v2259, %v2251
    %v3260 = vpack.c.b16 %v2260, %v2252
    %v3261 = vpack.c.b16 %v2261, %v2253
    %v3262 = vpack.c.b16 %v2262, %v2254
    %v3263 = vpack.c.b16 %v2263, %v2255
    %v3264 = vpack.c.b16 %v2264, %v2256
    %v3265 = vpack.c.b16 %v2265, %v2257
    %v3266 = vpack.c.b16 %v2266, %v2258
    %v3267 = vpack.c.b16 %v2275, %v2267
    %v3268 = vpack.c.b16 %v2276, %v2268
    %v3269 = vpack.c.b16 %v2277, %v2269
    %v3270 = vpack.c.b16 %v2278, %v2270
    %v3271 = vpack.c.b16 %v2279, %v2271
    %v3272 = vpack.c.b16 %v2280, %v2272
    %v3273 = vpack.c.b16 %v2281, %v2273
    %v3274 = vpack.c.b16 %v2282, %v2274
    %v3275 = vpack.c.b16 %v2291, %v2283
    %v3276 = vpack.c.b16 %v2292, %v2284
    %v3277 = vpack.c.b16 %v2293, %v2285
    %v3278 = vpack.c.b16 %v2294, %v2286
    %v3279 = vpack.c.b16 %v2295, %v2287
    %v3280 = vpack.c.b16 %v2296, %v2288
    %v3281 = vpack.c.b16 %v2297, %v2289
    %v3282 = vpack.c.b16 %v2298, %v2290
    %v3283 = vpack.c.b16 %v2307, %v2299
    %v3284 = vpack.c.b16 %v2308, %v2300
    %v3285 = vpack.c.b16 %v2309, %v2301
    %v3286 = vpack.c.b16 %v2310, %v2302
    %v3287 = vpack.c.b16 %v2311, %v2303
    %v3288 = vpack.c.b16 %v2312, %v2304
    %v3289 = vpack.c.b16 %v2313, %v2305
    %v3290 = vpack.c.b16 %v2314, %v2306
    %v3291 = vpack.c.b16 %v2323, %v2315
    %v3292 = vpack.c.b16 %v2324, %v2316
    %v3293 = vpack.c.b16 %v2325, %v2317
    %v3294 = vpack.c.b16 %v2326, %v2318
    %v3295 = vpack.c.b16 %v2327, %v2319
    %v3296 = vpack.c.b16 %v2328, %v2320
    %v3297 = vpack.c.b16 %v2329, %v2321
    %v3298 = vpack.c.b16 %v2330, %v2322
    %v3299 = vpack.c.b16 %v2339, %v2331
    %v3300 = vpack.c.b16 %v2340, %v2332
    %v3301 = vpack.c.b16 %v2341, %v2333
    %v3302 = vpack.c.b16 %v2342, %v2334
    %v3303 = vpack.c.b16 %v2343, %v2335
    %v3304 = vpack.c.b16 %v2344, %v2336
    %v3305 = vpack.c.b16 %v2345, %v2337
    %v3306 = vpack.c.b16 %v2346, %v2338
    %v3307 = vpack.c.b16 %v2355, %v2347
    %v3308 = vpack.c.b16 %v2356, %v2348
    %v3309 = vpack.c.b16 %v2357, %v2349
    %v3310 = vpack.c.b16 %v2358, %v2350
    %v3311 = vpack.c.b16 %v2359, %v2351
    %v3312 = vpack.c.b16 %v2360, %v2352
    %v3313 = vpack.c.b16 %v2361, %v2353
    %v3314 = vpack.c.b16 %v2362, %v2354
    %v3315 = vpack.c.b16 %v2371, %v2363
    %v3316 = vpack.c.b16 %v2372, %v2364
    %v3317 = vpack.c.b16 %v2373, %v2365
    %v3318 = vpack.c.b16 %v2374, %v2366
    %v3319 = vpack.c.b16 %v2375, %v2367
    %v3320 = vpack.c.b16 %v2376, %v2368
    %v3321 = vpack.c.b16 %v2377, %v2369
    %v3322 = vpack.c.b16 %v2378, %v2370
    %v3323 = vpack.c.b16 %v2387, %v2379
    %v3324 = vpack.c.b16 %v2388, %v2380
    %v3325 = vpack.c.b16 %v2389, %v2381
    %v3326 = vpack.c.b16 %v2390, %v2382
    %v3327 = vpack.c.b16 %v2391, %v2383
    %v3328 = vpack.c.b16 %v2392, %v2384
    %v3329 = vpack.c.b16 %v2393, %v2385
    %v3330 = vpack.c.b16 %v2394, %v2386
    %v3331 = vpack.c.b16 %v2403, %v2395
    %v3332 = vpack.c.b16 %v2404, %v2396
    %v3333 = vpack.c.b16 %v2405, %v2397
    %v3334 = vpack.c.b16 %v2406, %v2398
    %v3335 = vpack.c.b16 %v2407, %v2399
    %v3336 = vpack.c.b16 %v2408, %v2400
    %v3337 = vpack.c.b16 %v2409, %v2401
    %v3338 = vpack.c.b16 %v2410, %v2402
    %v3339 = vpack.c.b16 %v2419, %v2411
    %v3340 = vpack.c.b16 %v2420, %v2412
    %v3341 = vpack.c.b16 %v2421, %v2413
    %v3342 = vpack.c.b16 %v2422, %v2414
    %v3343 = vpack.c.b16 %v2423, %v2415
    %v3344 = vpack.c.b16 %v2424, %v2416
    %v3345 = vpack.c.b16 %v2425, %v2417
    %v3346 = vpack.c.b16 %v2426, %v2418
    %v3347 = vpack.c.b16 %v2435, %v2427
    %v3348 = vpack.c.b16 %v2436, %v2428
    %v3349 = vpack.c.b16 %v2437, %v2429
    %v3350 = vpack.c.b16 %v2438, %v2430
    %v3351 = vpack.c.b16 %v2439, %v2431
    %v3352 = vpack.c.b16 %v2440, %v2432
    %v3353 = vpack.c.b16 %v2441, %v2433
    %v3354 = vpack.c.b16 %v2442, %v2434
    %v3355 = vpack.c.b16 %v2451, %v2443
    %v3356 = vpack.c.b16 %v2452, %v2444
    %v3357 = vpack.c.b16 %v2453, %v2445
    %v3358 = vpack.c.b16 %v2454, %v2446
    %v3359 = vpack.c.b16 %v2455, %v2447
    %v3360 = vpack.c.b16 %v2456, %v2448
    %v3361 = vpack.c.b16 %v2457, %v2449
    %v3362 = vpack.c.b16 %v2458, %v2450
    %v3363 = vpack.c.b16 %v2467, %v2459
    %v3364 = vpack.c.b16 %v2468, %v2460
    %v3365 = vpack.c.b16 %v2469, %v2461
    %v3366 = vpack.c.b16 %v2470, %v2462
    %v3367 = vpack.c.b16 %v2471, %v2463
    %v3368 = vpack.c.b16 %v2472, %v2464
    %v3369 = vpack.c.b16 %v2473, %v2465
    %v3370 = vpack.c.b16 %v2474, %v2466
    %v3371 = vpack.c.b16 %v2483, %v2475
    %v3372 = vpack.c.b16 %v2484, %v2476
    %v3373 = vpack.c.b16 %v2485, %v2477
    %v3374 = vpack.c.b16 %v2486, %v2478
    %v3375 = vpack.c.b16 %v2487, %v2479
    %v3376 = vpack.c.b16 %v2488, %v2480
    %v3377 = vpack.c.b16 %v2489, %v2481
    %v3378 = vpack.c.b16 %v2490, %v2482
    %v3379 = vpack.c.b16 %v2499, %v2491
    %v3380 = vpack.c.b16 %v2500, %v2492
    %v3381 = vpack.c.b16 %v2501, %v2493
    %v3382 = vpack.c.b16 %v2502, %v2494
    %v3383 = vpack.c.b16 %v2503, %v2495
    %v3384 = vpack.c.b16 %v2504, %v2496
    %v3385 = vpack.c.b16 %v2505, %v2497
    %v3386 = vpack.c.b16 %v2506, %v2498
    %v3387 = vpack.c.b16 %v2515, %v2507
    %v3388 = vpack.c.b16 %v2516, %v2508
    %v3389 = vpack.c.b16 %v2517, %v2509
    %v3390 = vpack.c.b16 %v2518, %v2510
    %v3391 = vpack.c.b16 %v2519, %v2511
    %v3392 = vpack.c.b16 %v2520, %v2512
    %v3393 = vpack.c.b16 %v2521, %v2513
    %v3394 = vpack.c.b16 %v2522, %v2514
    %v3395 = vpack.c.b16 %v2531, %v2523
    %v3396 = vpack.c.b16 %v2532, %v2524
    %v3397 = vpack.c.b16 %v2533, %v2525
    %v3398 = vpack.c.b16 %v2534, %v2526
    %v3399 = vpack.c.b16 %v2535, %v2527
    %v3400 = vpack.c.b16 %v2536, %v2528
    %v3401 = vpack.c.b16 %v2537, %v2529
    %v3402 = vpack.c.b16 %v2538, %v2530
    %v3403 = vpack.c.b16 %v2547, %v2539
    %v3404 = vpack.c.b16 %v2548, %v2540
    %v3405 = vpack.c.b16 %v2549, %v2541
    %v3406 = vpack.c.b16 %v2550, %v2542
    %v3407 = vpack.c.b16 %v2551, %v2543
    %v3408 = vpack.c.b16 %v2552, %v2544
    %v3409 = vpack.c.b16 %v2553, %v2545
    %v3410 = vpack.c.b16 %v2554, %v2546
    %v3411 = vpack.c.b16 %v2563, %v2555
    %v3412 = vpack.c.b16 %v2564, %v2556
    %v3413 = vpack.c.b16 %v2565, %v2557
    %v3414 = vpack.c.b16 %v2566, %v2558
    %v3415 = vpack.c.b16 %v2567, %v2559
    %v3416 = vpack.c.b16 %v2568, %v2560
    %v3417 = vpack.c.b16 %v2569, %v2561
    %v3418 = vpack.c.b16 %v2570, %v2562
    %v3419 = vpack.c.b16 %v2579, %v2571
    %v3420 = vpack.c.b16 %v2580, %v2572
    %v3421 = vpack.c.b16 %v2581, %v2573
    %v3422 = vpack.c.b16 %v2582, %v2574
    %v3423 = vpack.c.b16 %v2583, %v2575
    %v3424 = vpack.c.b16 %v2584, %v2576
    %v3425 = vpack.c.b16 %v2585, %v2577
    %v3426 = vpack.c.b16 %v2586, %v2578
    %v3427 = vpack.c.b16 %v2595, %v2587
    %v3428 = vpack.c.b16 %v2596, %v2588
    %v3429 = vpack.c.b16 %v2597, %v2589
    %v3430 = vpack.c.b16 %v2598, %v2590
    %v3431 = vpack.c.b16 %v2599, %v2591
    %v3432 = vpack.c.b16 %v2600, %v2592
    %v3433 = vpack.c.b16 %v2601, %v2593
    %v3434 = vpack.c.b16 %v2602, %v2594
    %v3435 = vpack.c.b16 %v2611, %v2603
    %v3436 = vpack.c.b16 %v2612, %v2604
    %v3437 = vpack.c.b16 %v2613, %v2605
    %v3438 = vpack.c.b16 %v2614, %v2606
    %v3439 = vpack.c.b16 %v2615, %v2607
    %v3440 = vpack.c.b16 %v2616, %v2608
    %v3441 = vpack.c.b16 %v2617, %v2609
    %v3442 = vpack.c.b16 %v2618, %v2610
    %v3443 = vpack.c.b16 %v2627, %v2619
    %v3444 = vpack.c.b16 %v2628, %v2620
    %v3445 = vpack.c.b16 %v2629, %v2621
    %v3446 = vpack.c.b16 %v2630, %v2622
    %v3447 = vpack.c.b16 %v2631, %v2623
    %v3448 = vpack.c.b16 %v2632, %v2624
    %v3449 = vpack.c.b16 %v2633, %v2625
    %v3450 = vpack.c.b16 %v2634, %v2626
    %v3451 = vpack.c.b16 %v2643, %v2635
    %v3452 = vpack.c.b16 %v2644, %v2636
    %v3453 = vpack.c.b16 %v2645, %v2637
    %v3454 = vpack.c.b16 %v2646, %v2638
    %v3455 = vpack.c.b16 %v2647, %v2639
    %v3456 = vpack.c.b16 %v2648, %v2640
    %v3457 = vpack.c.b16 %v2649, %v2641
    %v3458 = vpack.c.b16 %v2650, %v2642
    %v3459 = vpack.c.b16 %v2659, %v2651
    %v3460 = vpack.c.b16 %v2660, %v2652
    %v3461 = vpack.c.b16 %v2661, %v2653
    %v3462 = vpack.c.b16 %v2662, %v2654
    %v3463 = vpack.c.b16 %v2663, %v2655
    %v3464 = vpack.c.b16 %v2664, %v2656
    %v3465 = vpack.c.b16 %v2665, %v2657
    %v3466 = vpack.c.b16 %v2666, %v2658
    %v3467 = vpack.c.b16 %v2675, %v2667
    %v3468 = vpack.c.b16 %v2676, %v2668
    %v3469 = vpack.c.b16 %v2677, %v2669
    %v3470 = vpack.c.b16 %v2678, %v2670
    %v3471 = vpack.c.b16 %v2679, %v2671
    %v3472 = vpack.c.b16 %v2680, %v2672
    %v3473 = vpack.c.b16 %v2681, %v2673
    %v3474 = vpack.c.b16 %v2682, %v2674
    %v3475 = vpack.c.b16 %v2691, %v2683
    %v3476 = vpack.c.b16 %v2692, %v2684
    %v3477 = vpack.c.b16 %v2693, %v2685
    %v3478 = vpack.c.b16 %v2694, %v2686
    %v3479 = vpack.c.b16 %v2695, %v2687
    %v3480 = vpack.c.b16 %v2696, %v2688
    %v3481 = vpack.c.b16 %v2697, %v2689
    %v3482 = vpack.c.b16 %v2698, %v2690
    %v3483 = vpack.c.b16 %v2707, %v2699
    %v3484 = vpack.c.b16 %v2708, %v2700
    %v3485 = vpack.c.b16 %v2709, %v2701
    %v3486 = vpack.c.b16 %v2710, %v2702
    %v3487 = vpack.c.b16 %v2711, %v2703
    %v3488 = vpack.c.b16 %v2712, %v2704
    %v3489 = vpack.c.b16 %v2713, %v2705
    %v3490 = vpack.c.b16 %v2714, %v2706
    %v3491 = vpack.c.b16 %v2723, %v2715
    %v3492 = vpack.c.b16 %v2724, %v2716
    %v3493 = vpack.c.b16 %v2725, %v2717
    %v3494 = vpack.c.b16 %v2726, %v2718
    %v3495 = vpack.c.b16 %v2727, %v2719
    %v3496 = vpack.c.b16 %v2728, %v2720
    %v3497 = vpack.c.b16 %v2729, %v2721
    %v3498 = vpack.c.b16 %v2730, %v2722
    %v3499 = vpack.c.b16 %v2739, %v2731
    %v3500 = vpack.c.b16 %v2740, %v2732
    %v3501 = vpack.c.b16 %v2741, %v2733
    %v3502 = vpack.c.b16 %v2742, %v2734
    %v3503 = vpack.c.b16 %v2743, %v2735
    %v3504 = vpack.c.b16 %v2744, %v2736
    %v3505 = vpack.c.b16 %v2745, %v2737
    %v3506 = vpack.c.b16 %v2746, %v2738
    %v3507 = vpack.c.b16 %v2755, %v2747
    %v3508 = vpack.c.b16 %v2756, %v2748
    %v3509 = vpack.c.b16 %v2757, %v2749
    %v3510 = vpack.c.b16 %v2758, %v2750
    %v3511 = vpack.c.b16 %v2759, %v2751
    %v3512 = vpack.c.b16 %v2760, %v2752
    %v3513 = vpack.c.b16 %v2761, %v2753
    %v3514 = vpack.c.b16 %v2762, %v2754
    %v3515 = vpack.c.b16 %v2771, %v2763
    %v3516 = vpack.c.b16 %v2772, %v2764
    %v3517 = vpack.c.b16 %v2773, %v2765
    %v3518 = vpack.c.b16 %v2774, %v2766
    %v3519 = vpack.c.b16 %v2775, %v2767
    %v3520 = vpack.c.b16 %v2776, %v2768
    %v3521 = vpack.c.b16 %v2777, %v2769
    %v3522 = vpack.c.b16 %v2778, %v2770
    %v3523 = vpack.c.b16 %v2787, %v2779
    %v3524 = vpack.c.b16 %v2788, %v2780
    %v3525 = vpack.c.b16 %v2789, %v2781
    %v3526 = vpack.c.b16 %v2790, %v2782
    %v3527 = vpack.c.b16 %v2791, %v2783
    %v3528 = vpack.c.b16 %v2792, %v2784
    %v3529 = vpack.c.b16 %v2793, %v2785
    %v3530 = vpack.c.b16 %v2794, %v2786
    %v3531 = vpack.c.b16 %v2803, %v2795
    %v3532 = vpack.c.b16 %v2804, %v2796
    %v3533 = vpack.c.b16 %v2805, %v2797
    %v3534 = vpack.c.b16 %v2806, %v2798
    %v3535 = vpack.c.b16 %v2807, %v2799
    %v3536 = vpack.c.b16 %v2808, %v2800
    %v3537 = vpack.c.b16 %v2809, %v2801
    %v3538 = vpack.c.b16 %v2810, %v2802
    %v3539 = vpack.c.b16 %v2819, %v2811
    %v3540 = vpack.c.b16 %v2820, %v2812
    %v3541 = vpack.c.b16 %v2821, %v2813
    %v3542 = vpack.c.b16 %v2822, %v2814
    %v3543 = vpack.c.b16 %v2823, %v2815
    %v3544 = vpack.c.b16 %v2824, %v2816
    %v3545 = vpack.c.b16 %v2825, %v2817
    %v3546 = vpack.c.b16 %v2826, %v2818
    %v3547 = vpack.c.b16 %v2835, %v2827
    %v3548 = vpack.c.b16 %v2836, %v2828
    %v3549 = vpack.c.b16 %v2837, %v2829
    %v3550 = vpack.c.b16 %v2838, %v2830
    %v3551 = vpack.c.b16 %v2839, %v2831
    %v3552 = vpack.c.b16 %v2840, %v2832
    %v3553 = vpack.c.b16 %v2841, %v2833
    %v3554 = vpack.c.b16 %v2842, %v2834
    %v3555 = vpack.c.b16 %v2851, %v2843
    %v3556 = vpack.c.b16 %v2852, %v2844
    %v3557 = vpack.c.b16 %v2853, %v2845
    %v3558 = vpack.c.b16 %v2854, %v2846
    %v3559 = vpack.c.b16 %v2855, %v2847
    %v3560 = vpack.c.b16 %v2856, %v2848
    %v3561 = vpack.c.b16 %v2857, %v2849
    %v3562 = vpack.c.b16 %v2858, %v2850
    %v3563 = vpack.c.b16 %v2867, %v2859
    %v3564 = vpack.c.b16 %v2868, %v2860
    %v3565 = vpack.c.b16 %v2869, %v2861
    %v3566 = vpack.c.b16 %v2870, %v2862
    %v3567 = vpack.c.b16 %v2871, %v2863
    %v3568 = vpack.c.b16 %v2872, %v2864
    %v3569 = vpack.c.b16 %v2873, %v2865
    %v3570 = vpack.c.b16 %v2874, %v2866
    %v3571 = vpack.c.b16 %v2883, %v2875
    %v3572 = vpack.c.b16 %v2884, %v2876
    %v3573 = vpack.c.b16 %v2885, %v2877
    %v3574 = vpack.c.b16 %v2886, %v2878
    %v3575 = vpack.c.b16 %v2887, %v2879
    %v3576 = vpack.c.b16 %v2888, %v2880
    %v3577 = vpack.c.b16 %v2889, %v2881
    %v3578 = vpack.c.b16 %v2890, %v2882
    %v3579 = vpack.c.b16 %v2899, %v2891
    %v3580 = vpack.c.b16 %v2900, %v2892
    %v3581 = vpack.c.b16 %v2901, %v2893
    %v3582 = vpack.c.b16 %v2902, %v2894
    %v3583 = vpack.c.b16 %v2903, %v2895
    %v3584 = vpack.c.b16 %v2904, %v2896
    %v3585 = vpack.c.b16 %v2905, %v2897
    %v3586 = vpack.c.b16 %v2906, %v2898
    %v3587 = vpack.c.b16 %v2915, %v2907
    %v3588 = vpack.c.b16 %v2916, %v2908
    %v3589 = vpack.c.b16 %v2917, %v2909
    %v3590 = vpack.c.b16 %v2918, %v2910
    %v3591 = vpack.c.b16 %v2919, %v2911
    %v3592 = vpack.c.b16 %v2920, %v2912
    %v3593 = vpack.c.b16 %v2921, %v2913
    %v3594 = vpack.c.b16 %v2922, %v2914
    %v3595 = vpack.c.b16 %v2931, %v2923
    %v3596 = vpack.c.b16 %v2932, %v2924
    %v3597 = vpack.c.b16 %v2933, %v2925
    %v3598 = vpack.c.b16 %v2934, %v2926
    %v3599 = vpack.c.b16 %v2935, %v2927
    %v3600 = vpack.c.b16 %v2936, %v2928
    %v3601 = vpack.c.b16 %v2937, %v2929
    %v3602 = vpack.c.b16 %v2938, %v2930
    %v3603 = vpack.c.b16 %v2947, %v2939
    %v3604 = vpack.c.b16 %v2948, %v2940
    %v3605 = vpack.c.b16 %v2949, %v2941
    %v3606 = vpack.c.b16 %v2950, %v2942
    %v3607 = vpack.c.b16 %v2951, %v2943
    %v3608 = vpack.c.b16 %v2952, %v2944
    %v3609 = vpack.c.b16 %v2953, %v2945
    %v3610 = vpack.c.b16 %v2954, %v2946
    %v3611 = vpack.c.b16 %v2963, %v2955
    %v3612 = vpack.c.b16 %v2964, %v2956
    %v3613 = vpack.c.b16 %v2965, %v2957
    %v3614 = vpack.c.b16 %v2966, %v2958
    %v3615 = vpack.c.b16 %v2967, %v2959
    %v3616 = vpack.c.b16 %v2968, %v2960
    %v3617 = vpack.c.b16 %v2969, %v2961
    %v3618 = vpack.c.b16 %v2970, %v2962
    %v3619 = vpack.c.b16 %v2979, %v2971
    %v3620 = vpack.c.b16 %v2980, %v2972
    %v3621 = vpack.c.b16 %v2981, %v2973
    %v3622 = vpack.c.b16 %v2982, %v2974
    %v3623 = vpack.c.b16 %v2983, %v2975
    %v3624 = vpack.c.b16 %v2984, %v2976
    %v3625 = vpack.c.b16 %v2985, %v2977
    %v3626 = vpack.c.b16 %v2986, %v2978
    %v3627 = vpack.c.b16 %v2995, %v2987
    %v3628 = vpack.c.b16 %v2996, %v2988
    %v3629 = vpack.c.b16 %v2997, %v2989
    %v3630 = vpack.c.b16 %v2998, %v2990
    %v3631 = vpack.c.b16 %v2999, %v2991
    %v3632 = vpack.c.b16 %v3000, %v2992
    %v3633 = vpack.c.b16 %v3001, %v2993
    %v3634 = vpack.c.b16 %v3002, %v2994
    %v3635 = vpack.c.b16 %v3011, %v3003
    %v3636 = vpack.c.b16 %v3012, %v3004
    %v3637 = vpack.c.b16 %v3013, %v3005
    %v3638 = vpack.c.b16 %v3014, %v3006
    %v3639 = vpack.c.b16 %v3015, %v3007
    %v3640 = vpack.c.b16 %v3016, %v3008
    %v3641 = vpack.c.b16 %v3017, %v3009
    %v3642 = vpack.c.b16 %v3018, %v3010
    %v3643 = vpack.c.b16 %v3027, %v3019
    %v3644 = vpack.c.b16 %v3028, %v3020
    %v3645 = vpack.c.b16 %v3029, %v3021
    %v3646 = vpack.c.b16 %v3030, %v3022
    %v3647 = vpack.c.b16 %v3031, %v3023
    %v3648 = vpack.c.b16 %v3032, %v3024
    %v3649 = vpack.c.b16 %v3033, %v3025
    %v3650 = vpack.c.b16 %v3034, %v3026
    %v3651 = vpack.c.b16 %v3043, %v3035
    %v3652 = vpack.c.b16 %v3044, %v3036
    %v3653 = vpack.c.b16 %v3045, %v3037
    %v3654 = vpack.c.b16 %v3046, %v3038
    %v3655 = vpack.c.b16 %v3047, %v3039
    %v3656 = vpack.c.b16 %v3048, %v3040
    %v3657 = vpack.c.b16 %v3049, %v3041
    %v3658 = vpack.c.b16 %v3050, %v3042
    %v3659 = vpack.c.b16 %v3059, %v3051
    %v3660 = vpack.c.b16 %v3060, %v3052
    %v3661 = vpack.c.b16 %v3061, %v3053
    %v3662 = vpack.c.b16 %v3062, %v3054
    %v3663 = vpack.c.b16 %v3063, %v3055
    %v3664 = vpack.c.b16 %v3064, %v3056
    %v3665 = vpack.c.b16 %v3065, %v3057
    %v3666 = vpack.c.b16 %v3066, %v3058
    %v3667 = vpack.c.b16 %v3075, %v3067
    %v3668 = vpack.c.b16 %v3076, %v3068
    %v3669 = vpack.c.b16 %v3077, %v3069
    %v3670 = vpack.c.b16 %v3078, %v3070
    %v3671 = vpack.c.b16 %v3079, %v3071
    %v3672 = vpack.c.b16 %v3080, %v3072
    %v3673 = vpack.c.b16 %v3081, %v3073
    %v3674 = vpack.c.b16 %v3082, %v3074
    %v3675 = vpack.c.b16 %v3091, %v3083
    %v3676 = vpack.c.b16 %v3092, %v3084
    %v3677 = vpack.c.b16 %v3093, %v3085
    %v3678 = vpack.c.b16 %v3094, %v3086
    %v3679 = vpack.c.b16 %v3095, %v3087
    %v3680 = vpack.c.b16 %v3096, %v3088
    %v3681 = vpack.c.b16 %v3097, %v3089
    %v3682 = vpack.c.b16 %v3098, %v3090
    %v3683 = vpack.c.b16 %v3107, %v3099
    %v3684 = vpack.c.b16 %v3108, %v3100
    %v3685 = vpack.c.b16 %v3109, %v3101
    %v3686 = vpack.c.b16 %v3110, %v3102
    %v3687 = vpack.c.b16 %v3111, %v3103
    %v3688 = vpack.c.b16 %v3112, %v3104
    %v3689 = vpack.c.b16 %v3113, %v3105
    %v3690 = vpack.c.b16 %v3114, %v3106
    %v3691 = vpack.c.b16 %v3123, %v3115
    %v3692 = vpack.c.b16 %v3124, %v3116
    %v3693 = vpack.c.b16 %v3125, %v3117
    %v3694 = vpack.c.b16 %v3126, %v3118
    %v3695 = vpack.c.b16 %v3127, %v3119
    %v3696 = vpack.c.b16 %v3128, %v3120
    %v3697 = vpack.c.b16 %v3129, %v3121
    %v3698 = vpack.c.b16 %v3130, %v3122
    %v3699 = vpack.c.b16 %v3139, %v3131
    %v3700 = vpack.c.b16 %v3140, %v3132
    %v3701 = vpack.c.b16 %v3141, %v3133
    %v3702 = vpack.c.b16 %v3142, %v3134
    %v3703 = vpack.c.b16 %v3143, %v3135
    %v3704 = vpack.c.b16 %v3144, %v3136
    %v3705 = vpack.c.b16 %v3145, %v3137
    %v3706 = vpack.c.b16 %v3146, %v3138
    %v3707 = vpack.c.b16 %v3155, %v3147
    %v3708 = vpack.c.b16 %v3156, %v3148
    %v3709 = vpack.c.b16 %v3157, %v3149
    %v3710 = vpack.c.b16 %v3158, %v3150
    %v3711 = vpack.c.b16 %v3159, %v3151
    %v3712 = vpack.c.b16 %v3160, %v3152
    %v3713 = vpack.c.b16 %v3161, %v3153
    %v3714 = vpack.c.b16 %v3162, %v3154
    %v3715 = vpack.c.b16 %v3171, %v3163
    %v3716 = vpack.c.b16 %v3172, %v3164
    %v3717 = vpack.c.b16 %v3173, %v3165
    %v3718 = vpack.c.b16 %v3174, %v3166
    %v3719 = vpack.c.b16 %v3175, %v3167
    %v3720 = vpack.c.b16 %v3176, %v3168
    %v3721 = vpack.c.b16 %v3177, %v3169
    %v3722 = vpack.c.b16 %v3178, %v3170
    %v3723 = vpack.c.b16 %v3187, %v3179
    %v3724 = vpack.c.b16 %v3188, %v3180
    %v3725 = vpack.c.b16 %v3189, %v3181
    %v3726 = vpack.c.b16 %v3190, %v3182
    %v3727 = vpack.c.b16 %v3191, %v3183
    %v3728 = vpack.c.b16 %v3192, %v3184
    %v3729 = vpack.c.b16 %v3193, %v3185
    %v3730 = vpack.c.b16 %v3194, %v3186
    %v3731 = vpack.c.b16 %v3203, %v3195
    %v3732 = vpack.c.b16 %v3204, %v3196
    %v3733 = vpack.c.b16 %v3205, %v3197
    %v3734 = vpack.c.b16 %v3206, %v3198
    %v3735 = vpack.c.b16 %v3207, %v3199
    %v3736 = vpack.c.b16 %v3208, %v3200
    %v3737 = vpack.c.b16 %v3209, %v3201
    %v3738 = vpack.c.b16 %v3210, %v3202
    %v3739 = vpack.c.b16 %v3219, %v3211
    %v3740 = vpack.c.b16 %v3220, %v3212
    %v3741 = vpack.c.b16 %v3221, %v3213
    %v3742 = vpack.c.b16 %v3222, %v3214
    %v3743 = vpack.c.b16 %v3223, %v3215
    %v3744 = vpack.c.b16 %v3224, %v3216
    %v3745 = vpack.c.b16 %v3225, %v3217
    %v3746 = vpack.c.b16 %v3226, %v3218
    %v3747 = vpack.c.b16 %v3235, %v3227
    %v3748 = vpack.c.b16 %v3236, %v3228
    %v3749 = vpack.c.b16 %v3237, %v3229
    %v3750 = vpack.c.b16 %v3238, %v3230
    %v3751 = vpack.c.b16 %v3239, %v3231
    %v3752 = vpack.c.b16 %v3240, %v3232
    %v3753 = vpack.c.b16 %v3241, %v3233
    %v3754 = vpack.c.b16 %v3242, %v3234
    %4267 = vmatprep.subr.bf16.mxu0 %v3300
    %4268 = vmatpush1.bf16.msra.mxu0 %v3299
    %4269 = vmatprep.subr.bf16.mxu0 %v3292
    %4270 = vmatpush1.bf16.msra.mxu0 %v3291
    %4271 = vmatprep.subr.bf16.mxu0 %v3284
    %4272 = vmatpush1.bf16.msra.mxu0 %v3283
    %4273 = vmatprep.subr.bf16.mxu0 %v3276
    %4274 = vmatpush1.bf16.msra.mxu0 %v3275
    %4275 = vmatprep.subr.bf16.mxu0 %v3268
    %4276 = vmatpush1.bf16.msra.mxu0 %v3267
    %4277 = vmatprep.subr.bf16.mxu0 %v3260
    %4278 = vmatpush1.bf16.msra.mxu0 %v3259
    %4279 = vmatprep.subr.bf16.mxu0 %v3252
    %4280 = vmatpush1.bf16.msra.mxu0 %v3251
    %4281 = vmatprep.subr.bf16.mxu0 %v3244
    %4282 = vmatpush1.bf16.msra.mxu0 %v3243
    %4283 = vmatprep.subr.bf16.mxu0 %v3364
    %4284 = vmatpush2.bf16.msra.mxu0 %v3363
    %4285 = vmatprep.subr.bf16.mxu0 %v3356
    %4286 = vmatpush2.bf16.msra.mxu0 %v3355
    %4287 = vmatprep.subr.bf16.mxu0 %v3348
    %4288 = vmatpush2.bf16.msra.mxu0 %v3347
    %4289 = vmatprep.subr.bf16.mxu0 %v3340
    %4290 = vmatpush2.bf16.msra.mxu0 %v3339
    %4291 = vmatprep.subr.bf16.mxu0 %v3332
    %4292 = vmatpush2.bf16.msra.mxu0 %v3331
    %4293 = vmatprep.subr.bf16.mxu0 %v3324
    %4294 = vmatpush2.bf16.msra.mxu0 %v3323
    %4295 = vmatprep.subr.bf16.mxu0 %v3316
    %4296 = vmatpush2.bf16.msra.mxu0 %v3315
    %4297 = vmatprep.subr.bf16.mxu0 %v3308
    %4298 = vmatpush2.bf16.msra.mxu0 %v3307
    %4299 = vmatprep.mubr.bf16.mxu0 %v1692
    %4300 = vmatmul.mubr.bf16.gmra.mxu0 %v1691
    %v4301 = vpop.f32.mrf.mxu0
    %v4302 = vadd.f32 %v1638, %v4301
    %v4303 = vpop.f32.mrf.mxu0
    %v4304 = vadd.f32 %v1642, %v4303
    %v4305 = vpop.f32.mrf.mxu0
    %v4306 = vadd.f32 %v1638, %v4305
    %v4307 = vpop.f32.mrf.mxu0
    %v4308 = vadd.f32 %v1642, %v4307
    %4309 = vdwg.mxu0
    %4310 = vmatprep.subr.bf16.mxu0 %v3428
    %4311 = vmatpush1.bf16.msra.mxu0 %v3427
    %4312 = vmatprep.subr.bf16.mxu0 %v3420
    %4313 = vmatpush1.bf16.msra.mxu0 %v3419
    %4314 = vmatprep.subr.bf16.mxu0 %v3412
    %4315 = vmatpush1.bf16.msra.mxu0 %v3411
    %4316 = vmatprep.subr.bf16.mxu0 %v3404
    %4317 = vmatpush1.bf16.msra.mxu0 %v3403
    %4318 = vmatprep.subr.bf16.mxu0 %v3396
    %4319 = vmatpush1.bf16.msra.mxu0 %v3395
    %4320 = vmatprep.subr.bf16.mxu0 %v3388
    %4321 = vmatpush1.bf16.msra.mxu0 %v3387
    %4322 = vmatprep.subr.bf16.mxu0 %v3380
    %4323 = vmatpush1.bf16.msra.mxu0 %v3379
    %4324 = vmatprep.subr.bf16.mxu0 %v3372
    %4325 = vmatpush1.bf16.msra.mxu0 %v3371
    %4326 = vmatprep.subr.bf16.mxu0 %v3492
    %4327 = vmatpush2.bf16.msra.mxu0 %v3491
    %4328 = vmatprep.subr.bf16.mxu0 %v3484
    %4329 = vmatpush2.bf16.msra.mxu0 %v3483
    %4330 = vmatprep.subr.bf16.mxu0 %v3476
    %4331 = vmatpush2.bf16.msra.mxu0 %v3475
    %4332 = vmatprep.subr.bf16.mxu0 %v3468
    %4333 = vmatpush2.bf16.msra.mxu0 %v3467
    %4334 = vmatprep.subr.bf16.mxu0 %v3460
    %4335 = vmatpush2.bf16.msra.mxu0 %v3459
    %4336 = vmatprep.subr.bf16.mxu0 %v3452
    %4337 = vmatpush2.bf16.msra.mxu0 %v3451
    %4338 = vmatprep.subr.bf16.mxu0 %v3444
    %4339 = vmatpush2.bf16.msra.mxu0 %v3443
    %4340 = vmatprep.subr.bf16.mxu0 %v3436
    %4341 = vmatpush2.bf16.msra.mxu0 %v3435
    %4342 = vmatprep.mubr.bf16.mxu0 %v1694
    %4343 = vmatmul.mubr.bf16.gmra.mxu0 %v1693
    %v4344 = vpop.f32.mrf.mxu0
    %v4345 = vadd.f32 %v4302, %v4344
    %v4346 = vpop.f32.mrf.mxu0
    %v4347 = vadd.f32 %v4304, %v4346
    %v4348 = vpop.f32.mrf.mxu0
    %v4349 = vadd.f32 %v4306, %v4348
    %v4350 = vpop.f32.mrf.mxu0
    %v4351 = vadd.f32 %v4308, %v4350
    %4352 = vdwg.mxu0
    %4353 = vmatprep.subr.bf16.mxu0 %v3556
    %4354 = vmatpush1.bf16.msra.mxu0 %v3555
    %4355 = vmatprep.subr.bf16.mxu0 %v3548
    %4356 = vmatpush1.bf16.msra.mxu0 %v3547
    %4357 = vmatprep.subr.bf16.mxu0 %v3540
    %4358 = vmatpush1.bf16.msra.mxu0 %v3539
    %4359 = vmatprep.subr.bf16.mxu0 %v3532
    %4360 = vmatpush1.bf16.msra.mxu0 %v3531
    %4361 = vmatprep.subr.bf16.mxu0 %v3524
    %4362 = vmatpush1.bf16.msra.mxu0 %v3523
    %4363 = vmatprep.subr.bf16.mxu0 %v3516
    %4364 = vmatpush1.bf16.msra.mxu0 %v3515
    %4365 = vmatprep.subr.bf16.mxu0 %v3508
    %4366 = vmatpush1.bf16.msra.mxu0 %v3507
    %4367 = vmatprep.subr.bf16.mxu0 %v3500
    %4368 = vmatpush1.bf16.msra.mxu0 %v3499
    %4369 = vmatprep.subr.bf16.mxu0 %v3620
    %4370 = vmatpush2.bf16.msra.mxu0 %v3619
    %4371 = vmatprep.subr.bf16.mxu0 %v3612
    %4372 = vmatpush2.bf16.msra.mxu0 %v3611
    %4373 = vmatprep.subr.bf16.mxu0 %v3604
    %4374 = vmatpush2.bf16.msra.mxu0 %v3603
    %4375 = vmatprep.subr.bf16.mxu0 %v3596
    %4376 = vmatpush2.bf16.msra.mxu0 %v3595
    %4377 = vmatprep.subr.bf16.mxu0 %v3588
    %4378 = vmatpush2.bf16.msra.mxu0 %v3587
    %4379 = vmatprep.subr.bf16.mxu0 %v3580
    %4380 = vmatpush2.bf16.msra.mxu0 %v3579
    %4381 = vmatprep.subr.bf16.mxu0 %v3572
    %4382 = vmatpush2.bf16.msra.mxu0 %v3571
    %4383 = vmatprep.subr.bf16.mxu0 %v3564
    %4384 = vmatpush2.bf16.msra.mxu0 %v3563
    %4385 = vmatprep.mubr.bf16.mxu0 %v1696
    %4386 = vmatmul.mubr.bf16.gmra.mxu0 %v1695
    %v4387 = vpop.f32.mrf.mxu0
    %v4388 = vadd.f32 %v4345, %v4387
    %v4389 = vpop.f32.mrf.mxu0
    %v4390 = vadd.f32 %v4347, %v4389
    %v4391 = vpop.f32.mrf.mxu0
    %v4392 = vadd.f32 %v4349, %v4391
    %v4393 = vpop.f32.mrf.mxu0
    %v4394 = vadd.f32 %v4351, %v4393
    %4395 = vdwg.mxu0
    %4396 = vmatprep.subr.bf16.mxu0 %v3684
    %4397 = vmatpush1.bf16.msra.mxu0 %v3683
    %4398 = vmatprep.subr.bf16.mxu0 %v3676
    %4399 = vmatpush1.bf16.msra.mxu0 %v3675
    %4400 = vmatprep.subr.bf16.mxu0 %v3668
    %4401 = vmatpush1.bf16.msra.mxu0 %v3667
    %4402 = vmatprep.subr.bf16.mxu0 %v3660
    %4403 = vmatpush1.bf16.msra.mxu0 %v3659
    %4404 = vmatprep.subr.bf16.mxu0 %v3652
    %4405 = vmatpush1.bf16.msra.mxu0 %v3651
    %4406 = vmatprep.subr.bf16.mxu0 %v3644
    %4407 = vmatpush1.bf16.msra.mxu0 %v3643
    %4408 = vmatprep.subr.bf16.mxu0 %v3636
    %4409 = vmatpush1.bf16.msra.mxu0 %v3635
    %4410 = vmatprep.subr.bf16.mxu0 %v3628
    %4411 = vmatpush1.bf16.msra.mxu0 %v3627
    %4412 = vmatprep.subr.bf16.mxu0 %v3748
    %4413 = vmatpush2.bf16.msra.mxu0 %v3747
    %4414 = vmatprep.subr.bf16.mxu0 %v3740
    %4415 = vmatpush2.bf16.msra.mxu0 %v3739
    %4416 = vmatprep.subr.bf16.mxu0 %v3732
    %4417 = vmatpush2.bf16.msra.mxu0 %v3731
    %4418 = vmatprep.subr.bf16.mxu0 %v3724
    %4419 = vmatpush2.bf16.msra.mxu0 %v3723
    %4420 = vmatprep.subr.bf16.mxu0 %v3716
    %4421 = vmatpush2.bf16.msra.mxu0 %v3715
    %4422 = vmatprep.subr.bf16.mxu0 %v3708
    %4423 = vmatpush2.bf16.msra.mxu0 %v3707
    %4424 = vmatprep.subr.bf16.mxu0 %v3700
    %4425 = vmatpush2.bf16.msra.mxu0 %v3699
    %4426 = vmatprep.subr.bf16.mxu0 %v3692
    %4427 = vmatpush2.bf16.msra.mxu0 %v3691
    %4428 = vmatprep.mubr.bf16.mxu0 %v1698
    %4429 = vmatmul.mubr.bf16.gmra.mxu0 %v1697
    %v4430 = vpop.f32.mrf.mxu0
    %v4431 = vadd.f32 %v4388, %v4430
    %v4432 = vpop.f32.mrf.mxu0
    %v4433 = vadd.f32 %v4390, %v4432
    %v4434 = vpop.f32.mrf.mxu0
    %v4435 = vadd.f32 %v4392, %v4434
    %v4436 = vpop.f32.mrf.mxu0
    %v4437 = vadd.f32 %v4394, %v4436
    %4438 = vdwg.mxu0
    %4439 = vmatprep.subr.bf16.mxu0 %v3302
    %4440 = vmatpush1.bf16.msra.mxu0 %v3301
    %4441 = vmatprep.subr.bf16.mxu0 %v3294
    %4442 = vmatpush1.bf16.msra.mxu0 %v3293
    %4443 = vmatprep.subr.bf16.mxu0 %v3286
    %4444 = vmatpush1.bf16.msra.mxu0 %v3285
    %4445 = vmatprep.subr.bf16.mxu0 %v3278
    %4446 = vmatpush1.bf16.msra.mxu0 %v3277
    %4447 = vmatprep.subr.bf16.mxu0 %v3270
    %4448 = vmatpush1.bf16.msra.mxu0 %v3269
    %4449 = vmatprep.subr.bf16.mxu0 %v3262
    %4450 = vmatpush1.bf16.msra.mxu0 %v3261
    %4451 = vmatprep.subr.bf16.mxu0 %v3254
    %4452 = vmatpush1.bf16.msra.mxu0 %v3253
    %4453 = vmatprep.subr.bf16.mxu0 %v3246
    %4454 = vmatpush1.bf16.msra.mxu0 %v3245
    %4455 = vmatprep.subr.bf16.mxu0 %v3366
    %4456 = vmatpush2.bf16.msra.mxu0 %v3365
    %4457 = vmatprep.subr.bf16.mxu0 %v3358
    %4458 = vmatpush2.bf16.msra.mxu0 %v3357
    %4459 = vmatprep.subr.bf16.mxu0 %v3350
    %4460 = vmatpush2.bf16.msra.mxu0 %v3349
    %4461 = vmatprep.subr.bf16.mxu0 %v3342
    %4462 = vmatpush2.bf16.msra.mxu0 %v3341
    %4463 = vmatprep.subr.bf16.mxu0 %v3334
    %4464 = vmatpush2.bf16.msra.mxu0 %v3333
    %4465 = vmatprep.subr.bf16.mxu0 %v3326
    %4466 = vmatpush2.bf16.msra.mxu0 %v3325
    %4467 = vmatprep.subr.bf16.mxu0 %v3318
    %4468 = vmatpush2.bf16.msra.mxu0 %v3317
    %4469 = vmatprep.subr.bf16.mxu0 %v3310
    %4470 = vmatpush2.bf16.msra.mxu0 %v3309
    %4471 = vmatprep.mubr.bf16.mxu0 %v1692
    %4472 = vmatmul.mubr.bf16.gmra.mxu0 %v1691
    %v4473 = vpop.f32.mrf.mxu0
    %v4474 = vadd.f32 %v1646, %v4473
    %v4475 = vpop.f32.mrf.mxu0
    %v4476 = vadd.f32 %v1650, %v4475
    %v4477 = vpop.f32.mrf.mxu0
    %v4478 = vadd.f32 %v1646, %v4477
    %v4479 = vpop.f32.mrf.mxu0
    %v4480 = vadd.f32 %v1650, %v4479
    %4481 = vdwg.mxu0
    %4482 = vmatprep.subr.bf16.mxu0 %v3430
    %4483 = vmatpush1.bf16.msra.mxu0 %v3429
    %4484 = vmatprep.subr.bf16.mxu0 %v3422
    %4485 = vmatpush1.bf16.msra.mxu0 %v3421
    %4486 = vmatprep.subr.bf16.mxu0 %v3414
    %4487 = vmatpush1.bf16.msra.mxu0 %v3413
    %4488 = vmatprep.subr.bf16.mxu0 %v3406
    %4489 = vmatpush1.bf16.msra.mxu0 %v3405
    %4490 = vmatprep.subr.bf16.mxu0 %v3398
    %4491 = vmatpush1.bf16.msra.mxu0 %v3397
    %4492 = vmatprep.subr.bf16.mxu0 %v3390
    %4493 = vmatpush1.bf16.msra.mxu0 %v3389
    %4494 = vmatprep.subr.bf16.mxu0 %v3382
    %4495 = vmatpush1.bf16.msra.mxu0 %v3381
    %4496 = vmatprep.subr.bf16.mxu0 %v3374
    %4497 = vmatpush1.bf16.msra.mxu0 %v3373
    %4498 = vmatprep.subr.bf16.mxu0 %v3494
    %4499 = vmatpush2.bf16.msra.mxu0 %v3493
    %4500 = vmatprep.subr.bf16.mxu0 %v3486
    %4501 = vmatpush2.bf16.msra.mxu0 %v3485
    %4502 = vmatprep.subr.bf16.mxu0 %v3478
    %4503 = vmatpush2.bf16.msra.mxu0 %v3477
    %4504 = vmatprep.subr.bf16.mxu0 %v3470
    %4505 = vmatpush2.bf16.msra.mxu0 %v3469
    %4506 = vmatprep.subr.bf16.mxu0 %v3462
    %4507 = vmatpush2.bf16.msra.mxu0 %v3461
    %4508 = vmatprep.subr.bf16.mxu0 %v3454
    %4509 = vmatpush2.bf16.msra.mxu0 %v3453
    %4510 = vmatprep.subr.bf16.mxu0 %v3446
    %4511 = vmatpush2.bf16.msra.mxu0 %v3445
    %4512 = vmatprep.subr.bf16.mxu0 %v3438
    %4513 = vmatpush2.bf16.msra.mxu0 %v3437
    %4514 = vmatprep.mubr.bf16.mxu0 %v1694
    %4515 = vmatmul.mubr.bf16.gmra.mxu0 %v1693
    %v4516 = vpop.f32.mrf.mxu0
    %v4517 = vadd.f32 %v4474, %v4516
    %v4518 = vpop.f32.mrf.mxu0
    %v4519 = vadd.f32 %v4476, %v4518
    %v4520 = vpop.f32.mrf.mxu0
    %v4521 = vadd.f32 %v4478, %v4520
    %v4522 = vpop.f32.mrf.mxu0
    %v4523 = vadd.f32 %v4480, %v4522
    %4524 = vdwg.mxu0
    %4525 = vmatprep.subr.bf16.mxu0 %v3558
    %4526 = vmatpush1.bf16.msra.mxu0 %v3557
    %4527 = vmatprep.subr.bf16.mxu0 %v3550
    %4528 = vmatpush1.bf16.msra.mxu0 %v3549
    %4529 = vmatprep.subr.bf16.mxu0 %v3542
    %4530 = vmatpush1.bf16.msra.mxu0 %v3541
    %4531 = vmatprep.subr.bf16.mxu0 %v3534
    %4532 = vmatpush1.bf16.msra.mxu0 %v3533
    %4533 = vmatprep.subr.bf16.mxu0 %v3526
    %4534 = vmatpush1.bf16.msra.mxu0 %v3525
    %4535 = vmatprep.subr.bf16.mxu0 %v3518
    %4536 = vmatpush1.bf16.msra.mxu0 %v3517
    %4537 = vmatprep.subr.bf16.mxu0 %v3510
    %4538 = vmatpush1.bf16.msra.mxu0 %v3509
    %4539 = vmatprep.subr.bf16.mxu0 %v3502
    %4540 = vmatpush1.bf16.msra.mxu0 %v3501
    %4541 = vmatprep.subr.bf16.mxu0 %v3622
    %4542 = vmatpush2.bf16.msra.mxu0 %v3621
    %4543 = vmatprep.subr.bf16.mxu0 %v3614
    %4544 = vmatpush2.bf16.msra.mxu0 %v3613
    %4545 = vmatprep.subr.bf16.mxu0 %v3606
    %4546 = vmatpush2.bf16.msra.mxu0 %v3605
    %4547 = vmatprep.subr.bf16.mxu0 %v3598
    %4548 = vmatpush2.bf16.msra.mxu0 %v3597
    %4549 = vmatprep.subr.bf16.mxu0 %v3590
    %4550 = vmatpush2.bf16.msra.mxu0 %v3589
    %4551 = vmatprep.subr.bf16.mxu0 %v3582
    %4552 = vmatpush2.bf16.msra.mxu0 %v3581
    %4553 = vmatprep.subr.bf16.mxu0 %v3574
    %4554 = vmatpush2.bf16.msra.mxu0 %v3573
    %4555 = vmatprep.subr.bf16.mxu0 %v3566
    %4556 = vmatpush2.bf16.msra.mxu0 %v3565
    %4557 = vmatprep.mubr.bf16.mxu0 %v1696
    %4558 = vmatmul.mubr.bf16.gmra.mxu0 %v1695
    %v4559 = vpop.f32.mrf.mxu0
    %v4560 = vadd.f32 %v4517, %v4559
    %v4561 = vpop.f32.mrf.mxu0
    %v4562 = vadd.f32 %v4519, %v4561
    %v4563 = vpop.f32.mrf.mxu0
    %v4564 = vadd.f32 %v4521, %v4563
    %v4565 = vpop.f32.mrf.mxu0
    %v4566 = vadd.f32 %v4523, %v4565
    %4567 = vdwg.mxu0
    %4568 = vmatprep.subr.bf16.mxu0 %v3686
    %4569 = vmatpush1.bf16.msra.mxu0 %v3685
    %4570 = vmatprep.subr.bf16.mxu0 %v3678
    %4571 = vmatpush1.bf16.msra.mxu0 %v3677
    %4572 = vmatprep.subr.bf16.mxu0 %v3670
    %4573 = vmatpush1.bf16.msra.mxu0 %v3669
    %4574 = vmatprep.subr.bf16.mxu0 %v3662
    %4575 = vmatpush1.bf16.msra.mxu0 %v3661
    %4576 = vmatprep.subr.bf16.mxu0 %v3654
    %4577 = vmatpush1.bf16.msra.mxu0 %v3653
    %4578 = vmatprep.subr.bf16.mxu0 %v3646
    %4579 = vmatpush1.bf16.msra.mxu0 %v3645
    %4580 = vmatprep.subr.bf16.mxu0 %v3638
    %4581 = vmatpush1.bf16.msra.mxu0 %v3637
    %4582 = vmatprep.subr.bf16.mxu0 %v3630
    %4583 = vmatpush1.bf16.msra.mxu0 %v3629
    %4584 = vmatprep.subr.bf16.mxu0 %v3750
    %4585 = vmatpush2.bf16.msra.mxu0 %v3749
    %4586 = vmatprep.subr.bf16.mxu0 %v3742
    %4587 = vmatpush2.bf16.msra.mxu0 %v3741
    %4588 = vmatprep.subr.bf16.mxu0 %v3734
    %4589 = vmatpush2.bf16.msra.mxu0 %v3733
    %4590 = vmatprep.subr.bf16.mxu0 %v3726
    %4591 = vmatpush2.bf16.msra.mxu0 %v3725
    %4592 = vmatprep.subr.bf16.mxu0 %v3718
    %4593 = vmatpush2.bf16.msra.mxu0 %v3717
    %4594 = vmatprep.subr.bf16.mxu0 %v3710
    %4595 = vmatpush2.bf16.msra.mxu0 %v3709
    %4596 = vmatprep.subr.bf16.mxu0 %v3702
    %4597 = vmatpush2.bf16.msra.mxu0 %v3701
    %4598 = vmatprep.subr.bf16.mxu0 %v3694
    %4599 = vmatpush2.bf16.msra.mxu0 %v3693
    %4600 = vmatprep.mubr.bf16.mxu0 %v1698
    %4601 = vmatmul.mubr.bf16.gmra.mxu0 %v1697
    %v4602 = vpop.f32.mrf.mxu0
    %v4603 = vadd.f32 %v4560, %v4602
    %v4604 = vpop.f32.mrf.mxu0
    %v4605 = vadd.f32 %v4562, %v4604
    %v4606 = vpop.f32.mrf.mxu0
    %v4607 = vadd.f32 %v4564, %v4606
    %v4608 = vpop.f32.mrf.mxu0
    %v4609 = vadd.f32 %v4566, %v4608
    %4610 = vdwg.mxu0
    %4611 = vmatprep.subr.bf16.mxu0 %v3304
    %4612 = vmatpush1.bf16.msra.mxu0 %v3303
    %4613 = vmatprep.subr.bf16.mxu0 %v3296
    %4614 = vmatpush1.bf16.msra.mxu0 %v3295
    %4615 = vmatprep.subr.bf16.mxu0 %v3288
    %4616 = vmatpush1.bf16.msra.mxu0 %v3287
    %4617 = vmatprep.subr.bf16.mxu0 %v3280
    %4618 = vmatpush1.bf16.msra.mxu0 %v3279
    %4619 = vmatprep.subr.bf16.mxu0 %v3272
    %4620 = vmatpush1.bf16.msra.mxu0 %v3271
    %4621 = vmatprep.subr.bf16.mxu0 %v3264
    %4622 = vmatpush1.bf16.msra.mxu0 %v3263
    %4623 = vmatprep.subr.bf16.mxu0 %v3256
    %4624 = vmatpush1.bf16.msra.mxu0 %v3255
    %4625 = vmatprep.subr.bf16.mxu0 %v3248
    %4626 = vmatpush1.bf16.msra.mxu0 %v3247
    %4627 = vmatprep.subr.bf16.mxu0 %v3368
    %4628 = vmatpush2.bf16.msra.mxu0 %v3367
    %4629 = vmatprep.subr.bf16.mxu0 %v3360
    %4630 = vmatpush2.bf16.msra.mxu0 %v3359
    %4631 = vmatprep.subr.bf16.mxu0 %v3352
    %4632 = vmatpush2.bf16.msra.mxu0 %v3351
    %4633 = vmatprep.subr.bf16.mxu0 %v3344
    %4634 = vmatpush2.bf16.msra.mxu0 %v3343
    %4635 = vmatprep.subr.bf16.mxu0 %v3336
    %4636 = vmatpush2.bf16.msra.mxu0 %v3335
    %4637 = vmatprep.subr.bf16.mxu0 %v3328
    %4638 = vmatpush2.bf16.msra.mxu0 %v3327
    %4639 = vmatprep.subr.bf16.mxu0 %v3320
    %4640 = vmatpush2.bf16.msra.mxu0 %v3319
    %4641 = vmatprep.subr.bf16.mxu0 %v3312
    %4642 = vmatpush2.bf16.msra.mxu0 %v3311
    %4643 = vmatprep.mubr.bf16.mxu0 %v1692
    %4644 = vmatmul.mubr.bf16.gmra.mxu0 %v1691
    %v4645 = vpop.f32.mrf.mxu0
    %v4646 = vadd.f32 %v1654, %v4645
    %v4647 = vpop.f32.mrf.mxu0
    %v4648 = vadd.f32 %v1658, %v4647
    %v4649 = vpop.f32.mrf.mxu0
    %v4650 = vadd.f32 %v1654, %v4649
    %v4651 = vpop.f32.mrf.mxu0
    %v4652 = vadd.f32 %v1658, %v4651
    %4653 = vdwg.mxu0
    %4654 = vmatprep.subr.bf16.mxu0 %v3432
    %4655 = vmatpush1.bf16.msra.mxu0 %v3431
    %4656 = vmatprep.subr.bf16.mxu0 %v3424
    %4657 = vmatpush1.bf16.msra.mxu0 %v3423
    %4658 = vmatprep.subr.bf16.mxu0 %v3416
    %4659 = vmatpush1.bf16.msra.mxu0 %v3415
    %4660 = vmatprep.subr.bf16.mxu0 %v3408
    %4661 = vmatpush1.bf16.msra.mxu0 %v3407
    %4662 = vmatprep.subr.bf16.mxu0 %v3400
    %4663 = vmatpush1.bf16.msra.mxu0 %v3399
    %4664 = vmatprep.subr.bf16.mxu0 %v3392
    %4665 = vmatpush1.bf16.msra.mxu0 %v3391
    %4666 = vmatprep.subr.bf16.mxu0 %v3384
    %4667 = vmatpush1.bf16.msra.mxu0 %v3383
    %4668 = vmatprep.subr.bf16.mxu0 %v3376
    %4669 = vmatpush1.bf16.msra.mxu0 %v3375
    %4670 = vmatprep.subr.bf16.mxu0 %v3496
    %4671 = vmatpush2.bf16.msra.mxu0 %v3495
    %4672 = vmatprep.subr.bf16.mxu0 %v3488
    %4673 = vmatpush2.bf16.msra.mxu0 %v3487
    %4674 = vmatprep.subr.bf16.mxu0 %v3480
    %4675 = vmatpush2.bf16.msra.mxu0 %v3479
    %4676 = vmatprep.subr.bf16.mxu0 %v3472
    %4677 = vmatpush2.bf16.msra.mxu0 %v3471
    %4678 = vmatprep.subr.bf16.mxu0 %v3464
    %4679 = vmatpush2.bf16.msra.mxu0 %v3463
    %4680 = vmatprep.subr.bf16.mxu0 %v3456
    %4681 = vmatpush2.bf16.msra.mxu0 %v3455
    %4682 = vmatprep.subr.bf16.mxu0 %v3448
    %4683 = vmatpush2.bf16.msra.mxu0 %v3447
    %4684 = vmatprep.subr.bf16.mxu0 %v3440
    %4685 = vmatpush2.bf16.msra.mxu0 %v3439
    %4686 = vmatprep.mubr.bf16.mxu0 %v1694
    %4687 = vmatmul.mubr.bf16.gmra.mxu0 %v1693
    %v4688 = vpop.f32.mrf.mxu0
    %v4689 = vadd.f32 %v4646, %v4688
    %v4690 = vpop.f32.mrf.mxu0
    %v4691 = vadd.f32 %v4648, %v4690
    %v4692 = vpop.f32.mrf.mxu0
    %v4693 = vadd.f32 %v4650, %v4692
    %v4694 = vpop.f32.mrf.mxu0
    %v4695 = vadd.f32 %v4652, %v4694
    %4696 = vdwg.mxu0
    %4697 = vmatprep.subr.bf16.mxu0 %v3560
    %4698 = vmatpush1.bf16.msra.mxu0 %v3559
    %4699 = vmatprep.subr.bf16.mxu0 %v3552
    %4700 = vmatpush1.bf16.msra.mxu0 %v3551
    %4701 = vmatprep.subr.bf16.mxu0 %v3544
    %4702 = vmatpush1.bf16.msra.mxu0 %v3543
    %4703 = vmatprep.subr.bf16.mxu0 %v3536
    %4704 = vmatpush1.bf16.msra.mxu0 %v3535
    %4705 = vmatprep.subr.bf16.mxu0 %v3528
    %4706 = vmatpush1.bf16.msra.mxu0 %v3527
    %4707 = vmatprep.subr.bf16.mxu0 %v3520
    %4708 = vmatpush1.bf16.msra.mxu0 %v3519
    %4709 = vmatprep.subr.bf16.mxu0 %v3512
    %4710 = vmatpush1.bf16.msra.mxu0 %v3511
    %4711 = vmatprep.subr.bf16.mxu0 %v3504
    %4712 = vmatpush1.bf16.msra.mxu0 %v3503
    %4713 = vmatprep.subr.bf16.mxu0 %v3624
    %4714 = vmatpush2.bf16.msra.mxu0 %v3623
    %4715 = vmatprep.subr.bf16.mxu0 %v3616
    %4716 = vmatpush2.bf16.msra.mxu0 %v3615
    %4717 = vmatprep.subr.bf16.mxu0 %v3608
    %4718 = vmatpush2.bf16.msra.mxu0 %v3607
    %4719 = vmatprep.subr.bf16.mxu0 %v3600
    %4720 = vmatpush2.bf16.msra.mxu0 %v3599
    %4721 = vmatprep.subr.bf16.mxu0 %v3592
    %4722 = vmatpush2.bf16.msra.mxu0 %v3591
    %4723 = vmatprep.subr.bf16.mxu0 %v3584
    %4724 = vmatpush2.bf16.msra.mxu0 %v3583
    %4725 = vmatprep.subr.bf16.mxu0 %v3576
    %4726 = vmatpush2.bf16.msra.mxu0 %v3575
    %4727 = vmatprep.subr.bf16.mxu0 %v3568
    %4728 = vmatpush2.bf16.msra.mxu0 %v3567
    %4729 = vmatprep.mubr.bf16.mxu0 %v1696
    %4730 = vmatmul.mubr.bf16.gmra.mxu0 %v1695
    %v4731 = vpop.f32.mrf.mxu0
    %v4732 = vadd.f32 %v4689, %v4731
    %v4733 = vpop.f32.mrf.mxu0
    %v4734 = vadd.f32 %v4691, %v4733
    %v4735 = vpop.f32.mrf.mxu0
    %v4736 = vadd.f32 %v4693, %v4735
    %v4737 = vpop.f32.mrf.mxu0
    %v4738 = vadd.f32 %v4695, %v4737
    %4739 = vdwg.mxu0
    %4740 = vmatprep.subr.bf16.mxu0 %v3688
    %4741 = vmatpush1.bf16.msra.mxu0 %v3687
    %4742 = vmatprep.subr.bf16.mxu0 %v3680
    %4743 = vmatpush1.bf16.msra.mxu0 %v3679
    %4744 = vmatprep.subr.bf16.mxu0 %v3672
    %4745 = vmatpush1.bf16.msra.mxu0 %v3671
    %4746 = vmatprep.subr.bf16.mxu0 %v3664
    %4747 = vmatpush1.bf16.msra.mxu0 %v3663
    %4748 = vmatprep.subr.bf16.mxu0 %v3656
    %4749 = vmatpush1.bf16.msra.mxu0 %v3655
    %4750 = vmatprep.subr.bf16.mxu0 %v3648
    %4751 = vmatpush1.bf16.msra.mxu0 %v3647
    %4752 = vmatprep.subr.bf16.mxu0 %v3640
    %4753 = vmatpush1.bf16.msra.mxu0 %v3639
    %4754 = vmatprep.subr.bf16.mxu0 %v3632
    %4755 = vmatpush1.bf16.msra.mxu0 %v3631
    %4756 = vmatprep.subr.bf16.mxu0 %v3752
    %4757 = vmatpush2.bf16.msra.mxu0 %v3751
    %4758 = vmatprep.subr.bf16.mxu0 %v3744
    %4759 = vmatpush2.bf16.msra.mxu0 %v3743
    %4760 = vmatprep.subr.bf16.mxu0 %v3736
    %4761 = vmatpush2.bf16.msra.mxu0 %v3735
    %4762 = vmatprep.subr.bf16.mxu0 %v3728
    %4763 = vmatpush2.bf16.msra.mxu0 %v3727
    %4764 = vmatprep.subr.bf16.mxu0 %v3720
    %4765 = vmatpush2.bf16.msra.mxu0 %v3719
    %4766 = vmatprep.subr.bf16.mxu0 %v3712
    %4767 = vmatpush2.bf16.msra.mxu0 %v3711
    %4768 = vmatprep.subr.bf16.mxu0 %v3704
    %4769 = vmatpush2.bf16.msra.mxu0 %v3703
    %4770 = vmatprep.subr.bf16.mxu0 %v3696
    %4771 = vmatpush2.bf16.msra.mxu0 %v3695
    %4772 = vmatprep.mubr.bf16.mxu0 %v1698
    %4773 = vmatmul.mubr.bf16.gmra.mxu0 %v1697
    %v4774 = vpop.f32.mrf.mxu0
    %v4775 = vadd.f32 %v4732, %v4774
    %v4776 = vpop.f32.mrf.mxu0
    %v4777 = vadd.f32 %v4734, %v4776
    %v4778 = vpop.f32.mrf.mxu0
    %v4779 = vadd.f32 %v4736, %v4778
    %v4780 = vpop.f32.mrf.mxu0
    %v4781 = vadd.f32 %v4738, %v4780
    %4782 = vdwg.mxu0
    %4783 = vmatprep.subr.bf16.mxu0 %v3306
    %4784 = vmatpush1.bf16.msra.mxu0 %v3305
    %4785 = vmatprep.subr.bf16.mxu0 %v3298
    %4786 = vmatpush1.bf16.msra.mxu0 %v3297
    %4787 = vmatprep.subr.bf16.mxu0 %v3290
    %4788 = vmatpush1.bf16.msra.mxu0 %v3289
    %4789 = vmatprep.subr.bf16.mxu0 %v3282
    %4790 = vmatpush1.bf16.msra.mxu0 %v3281
    %4791 = vmatprep.subr.bf16.mxu0 %v3274
    %4792 = vmatpush1.bf16.msra.mxu0 %v3273
    %4793 = vmatprep.subr.bf16.mxu0 %v3266
    %4794 = vmatpush1.bf16.msra.mxu0 %v3265
    %4795 = vmatprep.subr.bf16.mxu0 %v3258
    %4796 = vmatpush1.bf16.msra.mxu0 %v3257
    %4797 = vmatprep.subr.bf16.mxu0 %v3250
    %4798 = vmatpush1.bf16.msra.mxu0 %v3249
    %4799 = vmatprep.subr.bf16.mxu0 %v3370
    %4800 = vmatpush2.bf16.msra.mxu0 %v3369
    %4801 = vmatprep.subr.bf16.mxu0 %v3362
    %4802 = vmatpush2.bf16.msra.mxu0 %v3361
    %4803 = vmatprep.subr.bf16.mxu0 %v3354
    %4804 = vmatpush2.bf16.msra.mxu0 %v3353
    %4805 = vmatprep.subr.bf16.mxu0 %v3346
    %4806 = vmatpush2.bf16.msra.mxu0 %v3345
    %4807 = vmatprep.subr.bf16.mxu0 %v3338
    %4808 = vmatpush2.bf16.msra.mxu0 %v3337
    %4809 = vmatprep.subr.bf16.mxu0 %v3330
    %4810 = vmatpush2.bf16.msra.mxu0 %v3329
    %4811 = vmatprep.subr.bf16.mxu0 %v3322
    %4812 = vmatpush2.bf16.msra.mxu0 %v3321
    %4813 = vmatprep.subr.bf16.mxu0 %v3314
    %4814 = vmatpush2.bf16.msra.mxu0 %v3313
    %4815 = vmatprep.mubr.bf16.mxu0 %v1692
    %4816 = vmatmul.mubr.bf16.gmra.mxu0 %v1691
    %v4817 = vpop.f32.mrf.mxu0
    %v4818 = vadd.f32 %v1662, %v4817
    %v4819 = vpop.f32.mrf.mxu0
    %v4820 = vadd.f32 %v1666, %v4819
    %v4821 = vpop.f32.mrf.mxu0
    %v4822 = vadd.f32 %v1662, %v4821
    %v4823 = vpop.f32.mrf.mxu0
    %v4824 = vadd.f32 %v1666, %v4823
    %4825 = vdwg.mxu0
    %4826 = vmatprep.subr.bf16.mxu0 %v3434
    %4827 = vmatpush1.bf16.msra.mxu0 %v3433
    %4828 = vmatprep.subr.bf16.mxu0 %v3426
    %4829 = vmatpush1.bf16.msra.mxu0 %v3425
    %4830 = vmatprep.subr.bf16.mxu0 %v3418
    %4831 = vmatpush1.bf16.msra.mxu0 %v3417
    %4832 = vmatprep.subr.bf16.mxu0 %v3410
    %4833 = vmatpush1.bf16.msra.mxu0 %v3409
    %4834 = vmatprep.subr.bf16.mxu0 %v3402
    %4835 = vmatpush1.bf16.msra.mxu0 %v3401
    %4836 = vmatprep.subr.bf16.mxu0 %v3394
    %4837 = vmatpush1.bf16.msra.mxu0 %v3393
    %4838 = vmatprep.subr.bf16.mxu0 %v3386
    %4839 = vmatpush1.bf16.msra.mxu0 %v3385
    %4840 = vmatprep.subr.bf16.mxu0 %v3378
    %4841 = vmatpush1.bf16.msra.mxu0 %v3377
    %4842 = vmatprep.subr.bf16.mxu0 %v3498
    %4843 = vmatpush2.bf16.msra.mxu0 %v3497
    %4844 = vmatprep.subr.bf16.mxu0 %v3490
    %4845 = vmatpush2.bf16.msra.mxu0 %v3489
    %4846 = vmatprep.subr.bf16.mxu0 %v3482
    %4847 = vmatpush2.bf16.msra.mxu0 %v3481
    %4848 = vmatprep.subr.bf16.mxu0 %v3474
    %4849 = vmatpush2.bf16.msra.mxu0 %v3473
    %4850 = vmatprep.subr.bf16.mxu0 %v3466
    %4851 = vmatpush2.bf16.msra.mxu0 %v3465
    %4852 = vmatprep.subr.bf16.mxu0 %v3458
    %4853 = vmatpush2.bf16.msra.mxu0 %v3457
    %4854 = vmatprep.subr.bf16.mxu0 %v3450
    %4855 = vmatpush2.bf16.msra.mxu0 %v3449
    %4856 = vmatprep.subr.bf16.mxu0 %v3442
    %4857 = vmatpush2.bf16.msra.mxu0 %v3441
    %4858 = vmatprep.mubr.bf16.mxu0 %v1694
    %4859 = vmatmul.mubr.bf16.gmra.mxu0 %v1693
    %v4860 = vpop.f32.mrf.mxu0
    %v4861 = vadd.f32 %v4818, %v4860
    %v4862 = vpop.f32.mrf.mxu0
    %v4863 = vadd.f32 %v4820, %v4862
    %v4864 = vpop.f32.mrf.mxu0
    %v4865 = vadd.f32 %v4822, %v4864
    %v4866 = vpop.f32.mrf.mxu0
    %v4867 = vadd.f32 %v4824, %v4866
    %4868 = vdwg.mxu0
    %4869 = vmatprep.subr.bf16.mxu0 %v3562
    %4870 = vmatpush1.bf16.msra.mxu0 %v3561
    %4871 = vmatprep.subr.bf16.mxu0 %v3554
    %4872 = vmatpush1.bf16.msra.mxu0 %v3553
    %4873 = vmatprep.subr.bf16.mxu0 %v3546
    %4874 = vmatpush1.bf16.msra.mxu0 %v3545
    %4875 = vmatprep.subr.bf16.mxu0 %v3538
    %4876 = vmatpush1.bf16.msra.mxu0 %v3537
    %4877 = vmatprep.subr.bf16.mxu0 %v3530
    %4878 = vmatpush1.bf16.msra.mxu0 %v3529
    %4879 = vmatprep.subr.bf16.mxu0 %v3522
    %4880 = vmatpush1.bf16.msra.mxu0 %v3521
    %4881 = vmatprep.subr.bf16.mxu0 %v3514
    %4882 = vmatpush1.bf16.msra.mxu0 %v3513
    %4883 = vmatprep.subr.bf16.mxu0 %v3506
    %4884 = vmatpush1.bf16.msra.mxu0 %v3505
    %4885 = vmatprep.subr.bf16.mxu0 %v3626
    %4886 = vmatpush2.bf16.msra.mxu0 %v3625
    %4887 = vmatprep.subr.bf16.mxu0 %v3618
    %4888 = vmatpush2.bf16.msra.mxu0 %v3617
    %4889 = vmatprep.subr.bf16.mxu0 %v3610
    %4890 = vmatpush2.bf16.msra.mxu0 %v3609
    %4891 = vmatprep.subr.bf16.mxu0 %v3602
    %4892 = vmatpush2.bf16.msra.mxu0 %v3601
    %4893 = vmatprep.subr.bf16.mxu0 %v3594
    %4894 = vmatpush2.bf16.msra.mxu0 %v3593
    %4895 = vmatprep.subr.bf16.mxu0 %v3586
    %4896 = vmatpush2.bf16.msra.mxu0 %v3585
    %4897 = vmatprep.subr.bf16.mxu0 %v3578
    %4898 = vmatpush2.bf16.msra.mxu0 %v3577
    %4899 = vmatprep.subr.bf16.mxu0 %v3570
    %4900 = vmatpush2.bf16.msra.mxu0 %v3569
    %4901 = vmatprep.mubr.bf16.mxu0 %v1696
    %4902 = vmatmul.mubr.bf16.gmra.mxu0 %v1695
    %v4903 = vpop.f32.mrf.mxu0
    %v4904 = vadd.f32 %v4861, %v4903
    %v4905 = vpop.f32.mrf.mxu0
    %v4906 = vadd.f32 %v4863, %v4905
    %v4907 = vpop.f32.mrf.mxu0
    %v4908 = vadd.f32 %v4865, %v4907
    %v4909 = vpop.f32.mrf.mxu0
    %v4910 = vadd.f32 %v4867, %v4909
    %4911 = vdwg.mxu0
    %4912 = vmatprep.subr.bf16.mxu0 %v3690
    %4913 = vmatpush1.bf16.msra.mxu0 %v3689
    %4914 = vmatprep.subr.bf16.mxu0 %v3682
    %4915 = vmatpush1.bf16.msra.mxu0 %v3681
    %4916 = vmatprep.subr.bf16.mxu0 %v3674
    %4917 = vmatpush1.bf16.msra.mxu0 %v3673
    %4918 = vmatprep.subr.bf16.mxu0 %v3666
    %4919 = vmatpush1.bf16.msra.mxu0 %v3665
    %4920 = vmatprep.subr.bf16.mxu0 %v3658
    %4921 = vmatpush1.bf16.msra.mxu0 %v3657
    %4922 = vmatprep.subr.bf16.mxu0 %v3650
    %4923 = vmatpush1.bf16.msra.mxu0 %v3649
    %4924 = vmatprep.subr.bf16.mxu0 %v3642
    %4925 = vmatpush1.bf16.msra.mxu0 %v3641
    %4926 = vmatprep.subr.bf16.mxu0 %v3634
    %4927 = vmatpush1.bf16.msra.mxu0 %v3633
    %4928 = vmatprep.subr.bf16.mxu0 %v3754
    %4929 = vmatpush2.bf16.msra.mxu0 %v3753
    %4930 = vmatprep.subr.bf16.mxu0 %v3746
    %4931 = vmatpush2.bf16.msra.mxu0 %v3745
    %4932 = vmatprep.subr.bf16.mxu0 %v3738
    %4933 = vmatpush2.bf16.msra.mxu0 %v3737
    %4934 = vmatprep.subr.bf16.mxu0 %v3730
    %4935 = vmatpush2.bf16.msra.mxu0 %v3729
    %4936 = vmatprep.subr.bf16.mxu0 %v3722
    %4937 = vmatpush2.bf16.msra.mxu0 %v3721
    %4938 = vmatprep.subr.bf16.mxu0 %v3714
    %4939 = vmatpush2.bf16.msra.mxu0 %v3713
    %4940 = vmatprep.subr.bf16.mxu0 %v3706
    %4941 = vmatpush2.bf16.msra.mxu0 %v3705
    %4942 = vmatprep.subr.bf16.mxu0 %v3698
    %4943 = vmatpush2.bf16.msra.mxu0 %v3697
    %4944 = vmatprep.mubr.bf16.mxu0 %v1698
    %4945 = vmatmul.mubr.bf16.gmra.mxu0 %v1697
    %v4946 = vpop.f32.mrf.mxu0
    %v4947 = vadd.f32 %v4904, %v4946
    %v4948 = vpop.f32.mrf.mxu0
    %v4949 = vadd.f32 %v4906, %v4948
    %v4950 = vpop.f32.mrf.mxu0
    %v4951 = vadd.f32 %v4908, %v4950
    %v4952 = vpop.f32.mrf.mxu0
    %v4953 = vadd.f32 %v4910, %v4952
    %4954 = vdwg.mxu0
    %v4955 = vxor.u32 %v4431, 2147483648
    %v4956 = vxor.u32 %v4433, 2147483648
    %v4957 = vxor.u32 %v4603, 2147483648
    %v4958 = vxor.u32 %v4605, 2147483648
    %v4959 = vxor.u32 %v4775, 2147483648
    %v4960 = vxor.u32 %v4777, 2147483648
    %v4961 = vxor.u32 %v4947, 2147483648
    %v4962 = vxor.u32 %v4949, 2147483648
    %v4963 = vxor.u32 %v4435, 2147483648
    %v4964 = vxor.u32 %v4437, 2147483648
    %v4965 = vxor.u32 %v4607, 2147483648
    %v4966 = vxor.u32 %v4609, 2147483648
    %v4967 = vxor.u32 %v4779, 2147483648
    %v4968 = vxor.u32 %v4781, 2147483648
    %v4969 = vxor.u32 %v4951, 2147483648
    %v4970 = vxor.u32 %v4953, 2147483648
    %v4971 = vmul.f32 %v4955, 1.442695
    %v4972 = vpow.pop %v4971
    %v4973 = vmul.f32 %v4956, 1.442695
    %v4974 = vpow.pop %v4973
    %v4975 = vmul.f32 %v4957, 1.442695
    %v4976 = vpow.pop %v4975
    %v4977 = vmul.f32 %v4958, 1.442695
    %v4978 = vpow.pop %v4977
    %v4979 = vmul.f32 %v4959, 1.442695
    %v4980 = vpow.pop %v4979
    %v4981 = vmul.f32 %v4960, 1.442695
    %v4982 = vpow.pop %v4981
    %v4983 = vmul.f32 %v4961, 1.442695
    %v4984 = vpow.pop %v4983
    %v4985 = vmul.f32 %v4962, 1.442695
    %v4986 = vpow.pop %v4985
    %v4987 = vmul.f32 %v4963, 1.442695
    %v4988 = vpow.pop %v4987
    %v4989 = vmul.f32 %v4964, 1.442695
    %v4990 = vpow.pop %v4989
    %v4991 = vmul.f32 %v4965, 1.442695
    %v4992 = vpow.pop %v4991
    %v4993 = vmul.f32 %v4966, 1.442695
    %v4994 = vpow.pop %v4993
    %v4995 = vmul.f32 %v4967, 1.442695
    %v4996 = vpow.pop %v4995
    %v4997 = vmul.f32 %v4968, 1.442695
    %v4998 = vpow.pop %v4997
    %v4999 = vmul.f32 %v4969, 1.442695
    %v5000 = vpow.pop %v4999
    %v5001 = vmul.f32 %v4970, 1.442695
    %v5002 = vpow.pop %v5001
    %v5003 = vadd.f32 %v4972, 1.0
    %v5004 = vadd.f32 %v4974, 1.0
    %v5005 = vadd.f32 %v4976, 1.0
    %v5006 = vadd.f32 %v4978, 1.0
    %v5007 = vadd.f32 %v4980, 1.0
    %v5008 = vadd.f32 %v4982, 1.0
    %v5009 = vadd.f32 %v4984, 1.0
    %v5010 = vadd.f32 %v4986, 1.0
    %v5011 = vadd.f32 %v4988, 1.0
    %v5012 = vadd.f32 %v4990, 1.0
    %v5013 = vadd.f32 %v4992, 1.0
    %v5014 = vadd.f32 %v4994, 1.0
    %v5015 = vadd.f32 %v4996, 1.0
    %v5016 = vadd.f32 %v4998, 1.0
    %v5017 = vadd.f32 %v5000, 1.0
    %v5018 = vadd.f32 %v5002, 1.0
    %v5019 = vrcp.pop %v5003
    %v5020 = vmul.f32 1.0, %v5019
    %v5021 = vrcp.pop %v5004
    %v5022 = vmul.f32 1.0, %v5021
    %v5023 = vrcp.pop %v5005
    %v5024 = vmul.f32 1.0, %v5023
    %v5025 = vrcp.pop %v5006
    %v5026 = vmul.f32 1.0, %v5025
    %v5027 = vrcp.pop %v5007
    %v5028 = vmul.f32 1.0, %v5027
    %v5029 = vrcp.pop %v5008
    %v5030 = vmul.f32 1.0, %v5029
    %v5031 = vrcp.pop %v5009
    %v5032 = vmul.f32 1.0, %v5031
    %v5033 = vrcp.pop %v5010
    %v5034 = vmul.f32 1.0, %v5033
    %v5035 = vrcp.pop %v5011
    %v5036 = vmul.f32 1.0, %v5035
    %v5037 = vrcp.pop %v5012
    %v5038 = vmul.f32 1.0, %v5037
    %v5039 = vrcp.pop %v5013
    %v5040 = vmul.f32 1.0, %v5039
    %v5041 = vrcp.pop %v5014
    %v5042 = vmul.f32 1.0, %v5041
    %v5043 = vrcp.pop %v5015
    %v5044 = vmul.f32 1.0, %v5043
    %v5045 = vrcp.pop %v5016
    %v5046 = vmul.f32 1.0, %v5045
    %v5047 = vrcp.pop %v5017
    %v5048 = vmul.f32 1.0, %v5047
    %v5049 = vrcp.pop %v5018
    %v5050 = vmul.f32 1.0, %v5049
    %v5051 = vunpack.c.l.bf16 %v1075
    %v5052 = vunpack.c.h.bf16 %v1075
    %v5053 = vunpack.c.l.bf16 %v1076
    %v5054 = vunpack.c.h.bf16 %v1076
    %v5055 = vunpack.c.l.bf16 %v1077
    %v5056 = vunpack.c.h.bf16 %v1077
    %v5057 = vunpack.c.l.bf16 %v1078
    %v5058 = vunpack.c.h.bf16 %v1078
    %v5059 = vunpack.c.l.bf16 %v1079
    %v5060 = vunpack.c.h.bf16 %v1079
    %v5061 = vunpack.c.l.bf16 %v1080
    %v5062 = vunpack.c.h.bf16 %v1080
    %v5063 = vunpack.c.l.bf16 %v1081
    %v5064 = vunpack.c.h.bf16 %v1081
    %v5065 = vunpack.c.l.bf16 %v1082
    %v5066 = vunpack.c.h.bf16 %v1082
    %v5067 = vmul.f32 %v5051, %v5020
    %v5068 = vmul.f32 %v5052, %v5022
    %v5069 = vmul.f32 %v5053, %v5024
    %v5070 = vmul.f32 %v5054, %v5026
    %v5071 = vmul.f32 %v5055, %v5028
    %v5072 = vmul.f32 %v5056, %v5030
    %v5073 = vmul.f32 %v5057, %v5032
    %v5074 = vmul.f32 %v5058, %v5034
    %v5075 = vmul.f32 %v5059, %v5036
    %v5076 = vmul.f32 %v5060, %v5038
    %v5077 = vmul.f32 %v5061, %v5040
    %v5078 = vmul.f32 %v5062, %v5042
    %v5079 = vmul.f32 %v5063, %v5044
    %v5080 = vmul.f32 %v5064, %v5046
    %v5081 = vmul.f32 %v5065, %v5048
    %v5082 = vmul.f32 %v5066, %v5050
    %v5083 = vpack.c.bf16 %v5075, %v5067
    %v5084 = vpack.c.bf16 %v5076, %v5068
    %v5085 = vpack.c.bf16 %v5077, %v5069
    %v5086 = vpack.c.bf16 %v5078, %v5070
    %v5087 = vpack.c.bf16 %v5079, %v5071
    %v5088 = vpack.c.bf16 %v5080, %v5072
    %v5089 = vpack.c.bf16 %v5081, %v5073
    %v5090 = vpack.c.bf16 %v5082, %v5074
    %v5091 = vld [vmem:[#allocation10] sm:$0xff]
    %v5092 = vld [vmem:[#allocation10 + $0x8] sm:$0xff]
    %v5093 = vld [vmem:[#allocation10 + $0x10] sm:$0xff]
    %v5094 = vld [vmem:[#allocation10 + $0x18] sm:$0xff]
    %v5095 = vld [vmem:[#allocation10 + $0x20] sm:$0xff]
    %v5096 = vld [vmem:[#allocation10 + $0x28] sm:$0xff]
    %v5097 = vld [vmem:[#allocation10 + $0x30] sm:$0xff]
    %v5098 = vld [vmem:[#allocation10 + $0x38] sm:$0xff]
    %v5099 = vld [vmem:[#allocation10 + $0x40] sm:$0xff]
    %v5100 = vld [vmem:[#allocation10 + $0x48] sm:$0xff]
    %v5101 = vld [vmem:[#allocation10 + $0x50] sm:$0xff]
    %v5102 = vld [vmem:[#allocation10 + $0x58] sm:$0xff]
    %v5103 = vld [vmem:[#allocation10 + $0x60] sm:$0xff]
    %v5104 = vld [vmem:[#allocation10 + $0x68] sm:$0xff]
    %v5105 = vld [vmem:[#allocation10 + $0x70] sm:$0xff]
    %v5106 = vld [vmem:[#allocation10 + $0x78] sm:$0xff]
    %v5107 = vld [vmem:[#allocation10 + $0x80] sm:$0xff]
    %v5108 = vld [vmem:[#allocation10 + $0x88] sm:$0xff]
    %v5109 = vld [vmem:[#allocation10 + $0x90] sm:$0xff]
    %v5110 = vld [vmem:[#allocation10 + $0x98] sm:$0xff]
    %v5111 = vld [vmem:[#allocation10 + $0xa0] sm:$0xff]
    %v5112 = vld [vmem:[#allocation10 + $0xa8] sm:$0xff]
    %v5113 = vld [vmem:[#allocation10 + $0xb0] sm:$0xff]
    %v5114 = vld [vmem:[#allocation10 + $0xb8] sm:$0xff]
    %v5115 = vld [vmem:[#allocation10 + $0xc0] sm:$0xff]
    %v5116 = vld [vmem:[#allocation10 + $0xc8] sm:$0xff]
    %v5117 = vld [vmem:[#allocation10 + $0xd0] sm:$0xff]
    %v5118 = vld [vmem:[#allocation10 + $0xd8] sm:$0xff]
    %v5119 = vld [vmem:[#allocation10 + $0xe0] sm:$0xff]
    %v5120 = vld [vmem:[#allocation10 + $0xe8] sm:$0xff]
    %v5121 = vld [vmem:[#allocation10 + $0xf0] sm:$0xff]
    %v5122 = vld [vmem:[#allocation10 + $0xf8] sm:$0xff]
    %v5123 = vld [vmem:[#allocation10 + $0x100] sm:$0xff]
    %v5124 = vld [vmem:[#allocation10 + $0x108] sm:$0xff]
    %v5125 = vld [vmem:[#allocation10 + $0x110] sm:$0xff]
    %v5126 = vld [vmem:[#allocation10 + $0x118] sm:$0xff]
    %v5127 = vld [vmem:[#allocation10 + $0x120] sm:$0xff]
    %v5128 = vld [vmem:[#allocation10 + $0x128] sm:$0xff]
    %v5129 = vld [vmem:[#allocation10 + $0x130] sm:$0xff]
    %v5130 = vld [vmem:[#allocation10 + $0x138] sm:$0xff]
    %v5131 = vld [vmem:[#allocation10 + $0x140] sm:$0xff]
    %v5132 = vld [vmem:[#allocation10 + $0x148] sm:$0xff]
    %v5133 = vld [vmem:[#allocation10 + $0x150] sm:$0xff]
    %v5134 = vld [vmem:[#allocation10 + $0x158] sm:$0xff]
    %v5135 = vld [vmem:[#allocation10 + $0x160] sm:$0xff]
    %v5136 = vld [vmem:[#allocation10 + $0x168] sm:$0xff]
    %v5137 = vld [vmem:[#allocation10 + $0x170] sm:$0xff]
    %v5138 = vld [vmem:[#allocation10 + $0x178] sm:$0xff]
    %v5139 = vld [vmem:[#allocation10 + $0x180] sm:$0xff]
    %v5140 = vld [vmem:[#allocation10 + $0x188] sm:$0xff]
    %v5141 = vld [vmem:[#allocation10 + $0x190] sm:$0xff]
    %v5142 = vld [vmem:[#allocation10 + $0x198] sm:$0xff]
    %v5143 = vld [vmem:[#allocation10 + $0x1a0] sm:$0xff]
    %v5144 = vld [vmem:[#allocation10 + $0x1a8] sm:$0xff]
    %v5145 = vld [vmem:[#allocation10 + $0x1b0] sm:$0xff]
    %v5146 = vld [vmem:[#allocation10 + $0x1b8] sm:$0xff]
    %v5147 = vld [vmem:[#allocation10 + $0x1c0] sm:$0xff]
    %v5148 = vld [vmem:[#allocation10 + $0x1c8] sm:$0xff]
    %v5149 = vld [vmem:[#allocation10 + $0x1d0] sm:$0xff]
    %v5150 = vld [vmem:[#allocation10 + $0x1d8] sm:$0xff]
    %v5151 = vld [vmem:[#allocation10 + $0x1e0] sm:$0xff]
    %v5152 = vld [vmem:[#allocation10 + $0x1e8] sm:$0xff]
    %v5153 = vld [vmem:[#allocation10 + $0x1f0] sm:$0xff]
    %v5154 = vld [vmem:[#allocation10 + $0x1f8] sm:$0xff]
    %v5155 = vld [vmem:[#allocation10 + $0x200] sm:$0xff]
    %v5156 = vld [vmem:[#allocation10 + $0x208] sm:$0xff]
    %v5157 = vld [vmem:[#allocation10 + $0x210] sm:$0xff]
    %v5158 = vld [vmem:[#allocation10 + $0x218] sm:$0xff]
    %v5159 = vld [vmem:[#allocation10 + $0x220] sm:$0xff]
    %v5160 = vld [vmem:[#allocation10 + $0x228] sm:$0xff]
    %v5161 = vld [vmem:[#allocation10 + $0x230] sm:$0xff]
    %v5162 = vld [vmem:[#allocation10 + $0x238] sm:$0xff]
    %v5163 = vld [vmem:[#allocation10 + $0x240] sm:$0xff]
    %v5164 = vld [vmem:[#allocation10 + $0x248] sm:$0xff]
    %v5165 = vld [vmem:[#allocation10 + $0x250] sm:$0xff]
    %v5166 = vld [vmem:[#allocation10 + $0x258] sm:$0xff]
    %v5167 = vld [vmem:[#allocation10 + $0x260] sm:$0xff]
    %v5168 = vld [vmem:[#allocation10 + $0x268] sm:$0xff]
    %v5169 = vld [vmem:[#allocation10 + $0x270] sm:$0xff]
    %v5170 = vld [vmem:[#allocation10 + $0x278] sm:$0xff]
    %v5171 = vld [vmem:[#allocation10 + $0x280] sm:$0xff]
    %v5172 = vld [vmem:[#allocation10 + $0x288] sm:$0xff]
    %v5173 = vld [vmem:[#allocation10 + $0x290] sm:$0xff]
    %v5174 = vld [vmem:[#allocation10 + $0x298] sm:$0xff]
    %v5175 = vld [vmem:[#allocation10 + $0x2a0] sm:$0xff]
    %v5176 = vld [vmem:[#allocation10 + $0x2a8] sm:$0xff]
    %v5177 = vld [vmem:[#allocation10 + $0x2b0] sm:$0xff]
    %v5178 = vld [vmem:[#allocation10 + $0x2b8] sm:$0xff]
    %v5179 = vld [vmem:[#allocation10 + $0x2c0] sm:$0xff]
    %v5180 = vld [vmem:[#allocation10 + $0x2c8] sm:$0xff]
    %v5181 = vld [vmem:[#allocation10 + $0x2d0] sm:$0xff]
    %v5182 = vld [vmem:[#allocation10 + $0x2d8] sm:$0xff]
    %v5183 = vld [vmem:[#allocation10 + $0x2e0] sm:$0xff]
    %v5184 = vld [vmem:[#allocation10 + $0x2e8] sm:$0xff]
    %v5185 = vld [vmem:[#allocation10 + $0x2f0] sm:$0xff]
    %v5186 = vld [vmem:[#allocation10 + $0x2f8] sm:$0xff]
    %v5187 = vld [vmem:[#allocation10 + $0x300] sm:$0xff]
    %v5188 = vld [vmem:[#allocation10 + $0x308] sm:$0xff]
    %v5189 = vld [vmem:[#allocation10 + $0x310] sm:$0xff]
    %v5190 = vld [vmem:[#allocation10 + $0x318] sm:$0xff]
    %v5191 = vld [vmem:[#allocation10 + $0x320] sm:$0xff]
    %v5192 = vld [vmem:[#allocation10 + $0x328] sm:$0xff]
    %v5193 = vld [vmem:[#allocation10 + $0x330] sm:$0xff]
    %v5194 = vld [vmem:[#allocation10 + $0x338] sm:$0xff]
    %v5195 = vld [vmem:[#allocation10 + $0x340] sm:$0xff]
    %v5196 = vld [vmem:[#allocation10 + $0x348] sm:$0xff]
    %v5197 = vld [vmem:[#allocation10 + $0x350] sm:$0xff]
    %v5198 = vld [vmem:[#allocation10 + $0x358] sm:$0xff]
    %v5199 = vld [vmem:[#allocation10 + $0x360] sm:$0xff]
    %v5200 = vld [vmem:[#allocation10 + $0x368] sm:$0xff]
    %v5201 = vld [vmem:[#allocation10 + $0x370] sm:$0xff]
    %v5202 = vld [vmem:[#allocation10 + $0x378] sm:$0xff]
    %v5203 = vld [vmem:[#allocation10 + $0x380] sm:$0xff]
    %v5204 = vld [vmem:[#allocation10 + $0x388] sm:$0xff]
    %v5205 = vld [vmem:[#allocation10 + $0x390] sm:$0xff]
    %v5206 = vld [vmem:[#allocation10 + $0x398] sm:$0xff]
    %v5207 = vld [vmem:[#allocation10 + $0x3a0] sm:$0xff]
    %v5208 = vld [vmem:[#allocation10 + $0x3a8] sm:$0xff]
    %v5209 = vld [vmem:[#allocation10 + $0x3b0] sm:$0xff]
    %v5210 = vld [vmem:[#allocation10 + $0x3b8] sm:$0xff]
    %v5211 = vld [vmem:[#allocation10 + $0x3c0] sm:$0xff]
    %v5212 = vld [vmem:[#allocation10 + $0x3c8] sm:$0xff]
    %v5213 = vld [vmem:[#allocation10 + $0x3d0] sm:$0xff]
    %v5214 = vld [vmem:[#allocation10 + $0x3d8] sm:$0xff]
    %v5215 = vld [vmem:[#allocation10 + $0x3e0] sm:$0xff]
    %v5216 = vld [vmem:[#allocation10 + $0x3e8] sm:$0xff]
    %v5217 = vld [vmem:[#allocation10 + $0x3f0] sm:$0xff]
    %v5218 = vld [vmem:[#allocation10 + $0x3f8] sm:$0xff]
    %v5219 = vlaneseq
    %v5220 = vshrl.u32 %v5219, 7
    %v5221 = vsub.s32 2, %v5220
    %v5222 = vrot.slane %v127, %v5221
    %v5223 = vlaneseq
    %v5224 = vshrl.u32 %v5223, 7
    %v5225 = vsub.s32 6, %v5224
    %v5226 = vrot.slane %v127, %v5225
    %v5229 = vlaneseq
    %v5230 = vshrl.u32 %v5229, 7
    %v5231 = vsub.s32 2, %v5230
    %v5232 = vrot.slane %v5222, %v5231
    %v5233 = vlaneseq
    %v5234 = vshrl.u32 %v5233, 7
    %v5235 = vsub.s32 2, %v5234
    %v5236 = vrot.slane %v5226, %v5235
    %v5365 = vunpack.c.l.b16 %v5091
    %v5366 = vunpack.c.h.b16 %v5091
    %v5367 = vunpack.c.l.b16 %v5092
    %v5368 = vunpack.c.h.b16 %v5092
    %v5369 = vunpack.c.l.b16 %v5093
    %v5370 = vunpack.c.h.b16 %v5093
    %v5371 = vunpack.c.l.b16 %v5094
    %v5372 = vunpack.c.h.b16 %v5094
    %v5373 = vunpack.c.l.b16 %v5095
    %v5374 = vunpack.c.h.b16 %v5095
    %v5375 = vunpack.c.l.b16 %v5096
    %v5376 = vunpack.c.h.b16 %v5096
    %v5377 = vunpack.c.l.b16 %v5097
    %v5378 = vunpack.c.h.b16 %v5097
    %v5379 = vunpack.c.l.b16 %v5098
    %v5380 = vunpack.c.h.b16 %v5098
    %v5381 = vunpack.c.l.b16 %v5099
    %v5382 = vunpack.c.h.b16 %v5099
    %v5383 = vunpack.c.l.b16 %v5100
    %v5384 = vunpack.c.h.b16 %v5100
    %v5385 = vunpack.c.l.b16 %v5101
    %v5386 = vunpack.c.h.b16 %v5101
    %v5387 = vunpack.c.l.b16 %v5102
    %v5388 = vunpack.c.h.b16 %v5102
    %v5389 = vunpack.c.l.b16 %v5103
    %v5390 = vunpack.c.h.b16 %v5103
    %v5391 = vunpack.c.l.b16 %v5104
    %v5392 = vunpack.c.h.b16 %v5104
    %v5393 = vunpack.c.l.b16 %v5105
    %v5394 = vunpack.c.h.b16 %v5105
    %v5395 = vunpack.c.l.b16 %v5106
    %v5396 = vunpack.c.h.b16 %v5106
    %v5397 = vunpack.c.l.b16 %v5107
    %v5398 = vunpack.c.h.b16 %v5107
    %v5399 = vunpack.c.l.b16 %v5108
    %v5400 = vunpack.c.h.b16 %v5108
    %v5401 = vunpack.c.l.b16 %v5109
    %v5402 = vunpack.c.h.b16 %v5109
    %v5403 = vunpack.c.l.b16 %v5110
    %v5404 = vunpack.c.h.b16 %v5110
    %v5405 = vunpack.c.l.b16 %v5111
    %v5406 = vunpack.c.h.b16 %v5111
    %v5407 = vunpack.c.l.b16 %v5112
    %v5408 = vunpack.c.h.b16 %v5112
    %v5409 = vunpack.c.l.b16 %v5113
    %v5410 = vunpack.c.h.b16 %v5113
    %v5411 = vunpack.c.l.b16 %v5114
    %v5412 = vunpack.c.h.b16 %v5114
    %v5413 = vunpack.c.l.b16 %v5115
    %v5414 = vunpack.c.h.b16 %v5115
    %v5415 = vunpack.c.l.b16 %v5116
    %v5416 = vunpack.c.h.b16 %v5116
    %v5417 = vunpack.c.l.b16 %v5117
    %v5418 = vunpack.c.h.b16 %v5117
    %v5419 = vunpack.c.l.b16 %v5118
    %v5420 = vunpack.c.h.b16 %v5118
    %v5421 = vunpack.c.l.b16 %v5119
    %v5422 = vunpack.c.h.b16 %v5119
    %v5423 = vunpack.c.l.b16 %v5120
    %v5424 = vunpack.c.h.b16 %v5120
    %v5425 = vunpack.c.l.b16 %v5121
    %v5426 = vunpack.c.h.b16 %v5121
    %v5427 = vunpack.c.l.b16 %v5122
    %v5428 = vunpack.c.h.b16 %v5122
    %v5429 = vunpack.c.l.b16 %v5123
    %v5430 = vunpack.c.h.b16 %v5123
    %v5431 = vunpack.c.l.b16 %v5124
    %v5432 = vunpack.c.h.b16 %v5124
    %v5433 = vunpack.c.l.b16 %v5125
    %v5434 = vunpack.c.h.b16 %v5125
    %v5435 = vunpack.c.l.b16 %v5126
    %v5436 = vunpack.c.h.b16 %v5126
    %v5437 = vunpack.c.l.b16 %v5127
    %v5438 = vunpack.c.h.b16 %v5127
    %v5439 = vunpack.c.l.b16 %v5128
    %v5440 = vunpack.c.h.b16 %v5128
    %v5441 = vunpack.c.l.b16 %v5129
    %v5442 = vunpack.c.h.b16 %v5129
    %v5443 = vunpack.c.l.b16 %v5130
    %v5444 = vunpack.c.h.b16 %v5130
    %v5445 = vunpack.c.l.b16 %v5131
    %v5446 = vunpack.c.h.b16 %v5131
    %v5447 = vunpack.c.l.b16 %v5132
    %v5448 = vunpack.c.h.b16 %v5132
    %v5449 = vunpack.c.l.b16 %v5133
    %v5450 = vunpack.c.h.b16 %v5133
    %v5451 = vunpack.c.l.b16 %v5134
    %v5452 = vunpack.c.h.b16 %v5134
    %v5453 = vunpack.c.l.b16 %v5135
    %v5454 = vunpack.c.h.b16 %v5135
    %v5455 = vunpack.c.l.b16 %v5136
    %v5456 = vunpack.c.h.b16 %v5136
    %v5457 = vunpack.c.l.b16 %v5137
    %v5458 = vunpack.c.h.b16 %v5137
    %v5459 = vunpack.c.l.b16 %v5138
    %v5460 = vunpack.c.h.b16 %v5138
    %v5461 = vunpack.c.l.b16 %v5139
    %v5462 = vunpack.c.h.b16 %v5139
    %v5463 = vunpack.c.l.b16 %v5140
    %v5464 = vunpack.c.h.b16 %v5140
    %v5465 = vunpack.c.l.b16 %v5141
    %v5466 = vunpack.c.h.b16 %v5141
    %v5467 = vunpack.c.l.b16 %v5142
    %v5468 = vunpack.c.h.b16 %v5142
    %v5469 = vunpack.c.l.b16 %v5143
    %v5470 = vunpack.c.h.b16 %v5143
    %v5471 = vunpack.c.l.b16 %v5144
    %v5472 = vunpack.c.h.b16 %v5144
    %v5473 = vunpack.c.l.b16 %v5145
    %v5474 = vunpack.c.h.b16 %v5145
    %v5475 = vunpack.c.l.b16 %v5146
    %v5476 = vunpack.c.h.b16 %v5146
    %v5477 = vunpack.c.l.b16 %v5147
    %v5478 = vunpack.c.h.b16 %v5147
    %v5479 = vunpack.c.l.b16 %v5148
    %v5480 = vunpack.c.h.b16 %v5148
    %v5481 = vunpack.c.l.b16 %v5149
    %v5482 = vunpack.c.h.b16 %v5149
    %v5483 = vunpack.c.l.b16 %v5150
    %v5484 = vunpack.c.h.b16 %v5150
    %v5485 = vunpack.c.l.b16 %v5151
    %v5486 = vunpack.c.h.b16 %v5151
    %v5487 = vunpack.c.l.b16 %v5152
    %v5488 = vunpack.c.h.b16 %v5152
    %v5489 = vunpack.c.l.b16 %v5153
    %v5490 = vunpack.c.h.b16 %v5153
    %v5491 = vunpack.c.l.b16 %v5154
    %v5492 = vunpack.c.h.b16 %v5154
    %v5493 = vunpack.c.l.b16 %v5155
    %v5494 = vunpack.c.h.b16 %v5155
    %v5495 = vunpack.c.l.b16 %v5156
    %v5496 = vunpack.c.h.b16 %v5156
    %v5497 = vunpack.c.l.b16 %v5157
    %v5498 = vunpack.c.h.b16 %v5157
    %v5499 = vunpack.c.l.b16 %v5158
    %v5500 = vunpack.c.h.b16 %v5158
    %v5501 = vunpack.c.l.b16 %v5159
    %v5502 = vunpack.c.h.b16 %v5159
    %v5503 = vunpack.c.l.b16 %v5160
    %v5504 = vunpack.c.h.b16 %v5160
    %v5505 = vunpack.c.l.b16 %v5161
    %v5506 = vunpack.c.h.b16 %v5161
    %v5507 = vunpack.c.l.b16 %v5162
    %v5508 = vunpack.c.h.b16 %v5162
    %v5509 = vunpack.c.l.b16 %v5163
    %v5510 = vunpack.c.h.b16 %v5163
    %v5511 = vunpack.c.l.b16 %v5164
    %v5512 = vunpack.c.h.b16 %v5164
    %v5513 = vunpack.c.l.b16 %v5165
    %v5514 = vunpack.c.h.b16 %v5165
    %v5515 = vunpack.c.l.b16 %v5166
    %v5516 = vunpack.c.h.b16 %v5166
    %v5517 = vunpack.c.l.b16 %v5167
    %v5518 = vunpack.c.h.b16 %v5167
    %v5519 = vunpack.c.l.b16 %v5168
    %v5520 = vunpack.c.h.b16 %v5168
    %v5521 = vunpack.c.l.b16 %v5169
    %v5522 = vunpack.c.h.b16 %v5169
    %v5523 = vunpack.c.l.b16 %v5170
    %v5524 = vunpack.c.h.b16 %v5170
    %v5525 = vunpack.c.l.b16 %v5171
    %v5526 = vunpack.c.h.b16 %v5171
    %v5527 = vunpack.c.l.b16 %v5172
    %v5528 = vunpack.c.h.b16 %v5172
    %v5529 = vunpack.c.l.b16 %v5173
    %v5530 = vunpack.c.h.b16 %v5173
    %v5531 = vunpack.c.l.b16 %v5174
    %v5532 = vunpack.c.h.b16 %v5174
    %v5533 = vunpack.c.l.b16 %v5175
    %v5534 = vunpack.c.h.b16 %v5175
    %v5535 = vunpack.c.l.b16 %v5176
    %v5536 = vunpack.c.h.b16 %v5176
    %v5537 = vunpack.c.l.b16 %v5177
    %v5538 = vunpack.c.h.b16 %v5177
    %v5539 = vunpack.c.l.b16 %v5178
    %v5540 = vunpack.c.h.b16 %v5178
    %v5541 = vunpack.c.l.b16 %v5179
    %v5542 = vunpack.c.h.b16 %v5179
    %v5543 = vunpack.c.l.b16 %v5180
    %v5544 = vunpack.c.h.b16 %v5180
    %v5545 = vunpack.c.l.b16 %v5181
    %v5546 = vunpack.c.h.b16 %v5181
    %v5547 = vunpack.c.l.b16 %v5182
    %v5548 = vunpack.c.h.b16 %v5182
    %v5549 = vunpack.c.l.b16 %v5183
    %v5550 = vunpack.c.h.b16 %v5183
    %v5551 = vunpack.c.l.b16 %v5184
    %v5552 = vunpack.c.h.b16 %v5184
    %v5553 = vunpack.c.l.b16 %v5185
    %v5554 = vunpack.c.h.b16 %v5185
    %v5555 = vunpack.c.l.b16 %v5186
    %v5556 = vunpack.c.h.b16 %v5186
    %v5557 = vunpack.c.l.b16 %v5187
    %v5558 = vunpack.c.h.b16 %v5187
    %v5559 = vunpack.c.l.b16 %v5188
    %v5560 = vunpack.c.h.b16 %v5188
    %v5561 = vunpack.c.l.b16 %v5189
    %v5562 = vunpack.c.h.b16 %v5189
    %v5563 = vunpack.c.l.b16 %v5190
    %v5564 = vunpack.c.h.b16 %v5190
    %v5565 = vunpack.c.l.b16 %v5191
    %v5566 = vunpack.c.h.b16 %v5191
    %v5567 = vunpack.c.l.b16 %v5192
    %v5568 = vunpack.c.h.b16 %v5192
    %v5569 = vunpack.c.l.b16 %v5193
    %v5570 = vunpack.c.h.b16 %v5193
    %v5571 = vunpack.c.l.b16 %v5194
    %v5572 = vunpack.c.h.b16 %v5194
    %v5573 = vunpack.c.l.b16 %v5195
    %v5574 = vunpack.c.h.b16 %v5195
    %v5575 = vunpack.c.l.b16 %v5196
    %v5576 = vunpack.c.h.b16 %v5196
    %v5577 = vunpack.c.l.b16 %v5197
    %v5578 = vunpack.c.h.b16 %v5197
    %v5579 = vunpack.c.l.b16 %v5198
    %v5580 = vunpack.c.h.b16 %v5198
    %v5581 = vunpack.c.l.b16 %v5199
    %v5582 = vunpack.c.h.b16 %v5199
    %v5583 = vunpack.c.l.b16 %v5200
    %v5584 = vunpack.c.h.b16 %v5200
    %v5585 = vunpack.c.l.b16 %v5201
    %v5586 = vunpack.c.h.b16 %v5201
    %v5587 = vunpack.c.l.b16 %v5202
    %v5588 = vunpack.c.h.b16 %v5202
    %v5589 = vunpack.c.l.b16 %v5203
    %v5590 = vunpack.c.h.b16 %v5203
    %v5591 = vunpack.c.l.b16 %v5204
    %v5592 = vunpack.c.h.b16 %v5204
    %v5593 = vunpack.c.l.b16 %v5205
    %v5594 = vunpack.c.h.b16 %v5205
    %v5595 = vunpack.c.l.b16 %v5206
    %v5596 = vunpack.c.h.b16 %v5206
    %v5597 = vunpack.c.l.b16 %v5207
    %v5598 = vunpack.c.h.b16 %v5207
    %v5599 = vunpack.c.l.b16 %v5208
    %v5600 = vunpack.c.h.b16 %v5208
    %v5601 = vunpack.c.l.b16 %v5209
    %v5602 = vunpack.c.h.b16 %v5209
    %v5603 = vunpack.c.l.b16 %v5210
    %v5604 = vunpack.c.h.b16 %v5210
    %v5605 = vunpack.c.l.b16 %v5211
    %v5606 = vunpack.c.h.b16 %v5211
    %v5607 = vunpack.c.l.b16 %v5212
    %v5608 = vunpack.c.h.b16 %v5212
    %v5609 = vunpack.c.l.b16 %v5213
    %v5610 = vunpack.c.h.b16 %v5213
    %v5611 = vunpack.c.l.b16 %v5214
    %v5612 = vunpack.c.h.b16 %v5214
    %v5613 = vunpack.c.l.b16 %v5215
    %v5614 = vunpack.c.h.b16 %v5215
    %v5615 = vunpack.c.l.b16 %v5216
    %v5616 = vunpack.c.h.b16 %v5216
    %v5617 = vunpack.c.l.b16 %v5217
    %v5618 = vunpack.c.h.b16 %v5217
    %v5619 = vunpack.c.l.b16 %v5218
    %v5620 = vunpack.c.h.b16 %v5218
    %v5621 = vpack.c.b16 %v5367, %v5365
    %v5622 = vpack.c.b16 %v5368, %v5366
    %v5623 = vpack.c.b16 %v5371, %v5369
    %v5624 = vpack.c.b16 %v5372, %v5370
    %v5625 = vpack.c.b16 %v5375, %v5373
    %v5626 = vpack.c.b16 %v5376, %v5374
    %v5627 = vpack.c.b16 %v5379, %v5377
    %v5628 = vpack.c.b16 %v5380, %v5378
    %v5629 = vpack.c.b16 %v5383, %v5381
    %v5630 = vpack.c.b16 %v5384, %v5382
    %v5631 = vpack.c.b16 %v5387, %v5385
    %v5632 = vpack.c.b16 %v5388, %v5386
    %v5633 = vpack.c.b16 %v5391, %v5389
    %v5634 = vpack.c.b16 %v5392, %v5390
    %v5635 = vpack.c.b16 %v5395, %v5393
    %v5636 = vpack.c.b16 %v5396, %v5394
    %v5637 = vpack.c.b16 %v5399, %v5397
    %v5638 = vpack.c.b16 %v5400, %v5398
    %v5639 = vpack.c.b16 %v5403, %v5401
    %v5640 = vpack.c.b16 %v5404, %v5402
    %v5641 = vpack.c.b16 %v5407, %v5405
    %v5642 = vpack.c.b16 %v5408, %v5406
    %v5643 = vpack.c.b16 %v5411, %v5409
    %v5644 = vpack.c.b16 %v5412, %v5410
    %v5645 = vpack.c.b16 %v5415, %v5413
    %v5646 = vpack.c.b16 %v5416, %v5414
    %v5647 = vpack.c.b16 %v5419, %v5417
    %v5648 = vpack.c.b16 %v5420, %v5418
    %v5649 = vpack.c.b16 %v5423, %v5421
    %v5650 = vpack.c.b16 %v5424, %v5422
    %v5651 = vpack.c.b16 %v5427, %v5425
    %v5652 = vpack.c.b16 %v5428, %v5426
    %v5653 = vpack.c.b16 %v5431, %v5429
    %v5654 = vpack.c.b16 %v5432, %v5430
    %v5655 = vpack.c.b16 %v5435, %v5433
    %v5656 = vpack.c.b16 %v5436, %v5434
    %v5657 = vpack.c.b16 %v5439, %v5437
    %v5658 = vpack.c.b16 %v5440, %v5438
    %v5659 = vpack.c.b16 %v5443, %v5441
    %v5660 = vpack.c.b16 %v5444, %v5442
    %v5661 = vpack.c.b16 %v5447, %v5445
    %v5662 = vpack.c.b16 %v5448, %v5446
    %v5663 = vpack.c.b16 %v5451, %v5449
    %v5664 = vpack.c.b16 %v5452, %v5450
    %v5665 = vpack.c.b16 %v5455, %v5453
    %v5666 = vpack.c.b16 %v5456, %v5454
    %v5667 = vpack.c.b16 %v5459, %v5457
    %v5668 = vpack.c.b16 %v5460, %v5458
    %v5669 = vpack.c.b16 %v5463, %v5461
    %v5670 = vpack.c.b16 %v5464, %v5462
    %v5671 = vpack.c.b16 %v5467, %v5465
    %v5672 = vpack.c.b16 %v5468, %v5466
    %v5673 = vpack.c.b16 %v5471, %v5469
    %v5674 = vpack.c.b16 %v5472, %v5470
    %v5675 = vpack.c.b16 %v5475, %v5473
    %v5676 = vpack.c.b16 %v5476, %v5474
    %v5677 = vpack.c.b16 %v5479, %v5477
    %v5678 = vpack.c.b16 %v5480, %v5478
    %v5679 = vpack.c.b16 %v5483, %v5481
    %v5680 = vpack.c.b16 %v5484, %v5482
    %v5681 = vpack.c.b16 %v5487, %v5485
    %v5682 = vpack.c.b16 %v5488, %v5486
    %v5683 = vpack.c.b16 %v5491, %v5489
    %v5684 = vpack.c.b16 %v5492, %v5490
    %v5685 = vpack.c.b16 %v5495, %v5493
    %v5686 = vpack.c.b16 %v5496, %v5494
    %v5687 = vpack.c.b16 %v5499, %v5497
    %v5688 = vpack.c.b16 %v5500, %v5498
    %v5689 = vpack.c.b16 %v5503, %v5501
    %v5690 = vpack.c.b16 %v5504, %v5502
    %v5691 = vpack.c.b16 %v5507, %v5505
    %v5692 = vpack.c.b16 %v5508, %v5506
    %v5693 = vpack.c.b16 %v5511, %v5509
    %v5694 = vpack.c.b16 %v5512, %v5510
    %v5695 = vpack.c.b16 %v5515, %v5513
    %v5696 = vpack.c.b16 %v5516, %v5514
    %v5697 = vpack.c.b16 %v5519, %v5517
    %v5698 = vpack.c.b16 %v5520, %v5518
    %v5699 = vpack.c.b16 %v5523, %v5521
    %v5700 = vpack.c.b16 %v5524, %v5522
    %v5701 = vpack.c.b16 %v5527, %v5525
    %v5702 = vpack.c.b16 %v5528, %v5526
    %v5703 = vpack.c.b16 %v5531, %v5529
    %v5704 = vpack.c.b16 %v5532, %v5530
    %v5705 = vpack.c.b16 %v5535, %v5533
    %v5706 = vpack.c.b16 %v5536, %v5534
    %v5707 = vpack.c.b16 %v5539, %v5537
    %v5708 = vpack.c.b16 %v5540, %v5538
    %v5709 = vpack.c.b16 %v5543, %v5541
    %v5710 = vpack.c.b16 %v5544, %v5542
    %v5711 = vpack.c.b16 %v5547, %v5545
    %v5712 = vpack.c.b16 %v5548, %v5546
    %v5713 = vpack.c.b16 %v5551, %v5549
    %v5714 = vpack.c.b16 %v5552, %v5550
    %v5715 = vpack.c.b16 %v5555, %v5553
    %v5716 = vpack.c.b16 %v5556, %v5554
    %v5717 = vpack.c.b16 %v5559, %v5557
    %v5718 = vpack.c.b16 %v5560, %v5558
    %v5719 = vpack.c.b16 %v5563, %v5561
    %v5720 = vpack.c.b16 %v5564, %v5562
    %v5721 = vpack.c.b16 %v5567, %v5565
    %v5722 = vpack.c.b16 %v5568, %v5566
    %v5723 = vpack.c.b16 %v5571, %v5569
    %v5724 = vpack.c.b16 %v5572, %v5570
    %v5725 = vpack.c.b16 %v5575, %v5573
    %v5726 = vpack.c.b16 %v5576, %v5574
    %v5727 = vpack.c.b16 %v5579, %v5577
    %v5728 = vpack.c.b16 %v5580, %v5578
    %v5729 = vpack.c.b16 %v5583, %v5581
    %v5730 = vpack.c.b16 %v5584, %v5582
    %v5731 = vpack.c.b16 %v5587, %v5585
    %v5732 = vpack.c.b16 %v5588, %v5586
    %v5733 = vpack.c.b16 %v5591, %v5589
    %v5734 = vpack.c.b16 %v5592, %v5590
    %v5735 = vpack.c.b16 %v5595, %v5593
    %v5736 = vpack.c.b16 %v5596, %v5594
    %v5737 = vpack.c.b16 %v5599, %v5597
    %v5738 = vpack.c.b16 %v5600, %v5598
    %v5739 = vpack.c.b16 %v5603, %v5601
    %v5740 = vpack.c.b16 %v5604, %v5602
    %v5741 = vpack.c.b16 %v5607, %v5605
    %v5742 = vpack.c.b16 %v5608, %v5606
    %v5743 = vpack.c.b16 %v5611, %v5609
    %v5744 = vpack.c.b16 %v5612, %v5610
    %v5745 = vpack.c.b16 %v5615, %v5613
    %v5746 = vpack.c.b16 %v5616, %v5614
    %v5747 = vpack.c.b16 %v5619, %v5617
    %v5748 = vpack.c.b16 %v5620, %v5618
    %5877 = vmatprep.subr.bf16.mxu0 %v5636
    %5878 = vmatpush1.bf16.msra.mxu0 %v5635
    %5879 = vmatprep.subr.bf16.mxu0 %v5634
    %5880 = vmatpush1.bf16.msra.mxu0 %v5633
    %5881 = vmatprep.subr.bf16.mxu0 %v5632
    %5882 = vmatpush1.bf16.msra.mxu0 %v5631
    %5883 = vmatprep.subr.bf16.mxu0 %v5630
    %5884 = vmatpush1.bf16.msra.mxu0 %v5629
    %5885 = vmatprep.subr.bf16.mxu0 %v5628
    %5886 = vmatpush1.bf16.msra.mxu0 %v5627
    %5887 = vmatprep.subr.bf16.mxu0 %v5626
    %5888 = vmatpush1.bf16.msra.mxu0 %v5625
    %5889 = vmatprep.subr.bf16.mxu0 %v5624
    %5890 = vmatpush1.bf16.msra.mxu0 %v5623
    %5891 = vmatprep.subr.bf16.mxu0 %v5622
    %5892 = vmatpush1.bf16.msra.mxu0 %v5621
    %5893 = vmatprep.subr.bf16.mxu0 %v5652
    %5894 = vmatpush2.bf16.msra.mxu0 %v5651
    %5895 = vmatprep.subr.bf16.mxu0 %v5650
    %5896 = vmatpush2.bf16.msra.mxu0 %v5649
    %5897 = vmatprep.subr.bf16.mxu0 %v5648
    %5898 = vmatpush2.bf16.msra.mxu0 %v5647
    %5899 = vmatprep.subr.bf16.mxu0 %v5646
    %5900 = vmatpush2.bf16.msra.mxu0 %v5645
    %5901 = vmatprep.subr.bf16.mxu0 %v5644
    %5902 = vmatpush2.bf16.msra.mxu0 %v5643
    %5903 = vmatprep.subr.bf16.mxu0 %v5642
    %5904 = vmatpush2.bf16.msra.mxu0 %v5641
    %5905 = vmatprep.subr.bf16.mxu0 %v5640
    %5906 = vmatpush2.bf16.msra.mxu0 %v5639
    %5907 = vmatprep.subr.bf16.mxu0 %v5638
    %5908 = vmatpush2.bf16.msra.mxu0 %v5637
    %5909 = vmatprep.mubr.bf16.mxu0 %v5084
    %5910 = vmatmul.mubr.bf16.gmra.mxu0 %v5083
    %v5911 = vpop.f32.mrf.mxu0
    %v5912 = vadd.f32 %v5232, %v5911
    %v5913 = vpop.f32.mrf.mxu0
    %v5914 = vadd.f32 %v5236, %v5913
    %v5915 = vpop.f32.mrf.mxu0
    %v5916 = vadd.f32 %v5232, %v5915
    %v5917 = vpop.f32.mrf.mxu0
    %v5918 = vadd.f32 %v5236, %v5917
    %5919 = vdwg.mxu0
    %5920 = vmatprep.subr.bf16.mxu0 %v5668
    %5921 = vmatpush1.bf16.msra.mxu0 %v5667
    %5922 = vmatprep.subr.bf16.mxu0 %v5666
    %5923 = vmatpush1.bf16.msra.mxu0 %v5665
    %5924 = vmatprep.subr.bf16.mxu0 %v5664
    %5925 = vmatpush1.bf16.msra.mxu0 %v5663
    %5926 = vmatprep.subr.bf16.mxu0 %v5662
    %5927 = vmatpush1.bf16.msra.mxu0 %v5661
    %5928 = vmatprep.subr.bf16.mxu0 %v5660
    %5929 = vmatpush1.bf16.msra.mxu0 %v5659
    %5930 = vmatprep.subr.bf16.mxu0 %v5658
    %5931 = vmatpush1.bf16.msra.mxu0 %v5657
    %5932 = vmatprep.subr.bf16.mxu0 %v5656
    %5933 = vmatpush1.bf16.msra.mxu0 %v5655
    %5934 = vmatprep.subr.bf16.mxu0 %v5654
    %5935 = vmatpush1.bf16.msra.mxu0 %v5653
    %5936 = vmatprep.subr.bf16.mxu0 %v5684
    %5937 = vmatpush2.bf16.msra.mxu0 %v5683
    %5938 = vmatprep.subr.bf16.mxu0 %v5682
    %5939 = vmatpush2.bf16.msra.mxu0 %v5681
    %5940 = vmatprep.subr.bf16.mxu0 %v5680
    %5941 = vmatpush2.bf16.msra.mxu0 %v5679
    %5942 = vmatprep.subr.bf16.mxu0 %v5678
    %5943 = vmatpush2.bf16.msra.mxu0 %v5677
    %5944 = vmatprep.subr.bf16.mxu0 %v5676
    %5945 = vmatpush2.bf16.msra.mxu0 %v5675
    %5946 = vmatprep.subr.bf16.mxu0 %v5674
    %5947 = vmatpush2.bf16.msra.mxu0 %v5673
    %5948 = vmatprep.subr.bf16.mxu0 %v5672
    %5949 = vmatpush2.bf16.msra.mxu0 %v5671
    %5950 = vmatprep.subr.bf16.mxu0 %v5670
    %5951 = vmatpush2.bf16.msra.mxu0 %v5669
    %5952 = vmatprep.mubr.bf16.mxu0 %v5086
    %5953 = vmatmul.mubr.bf16.gmra.mxu0 %v5085
    %v5954 = vpop.f32.mrf.mxu0
    %v5955 = vadd.f32 %v5912, %v5954
    %v5956 = vpop.f32.mrf.mxu0
    %v5957 = vadd.f32 %v5914, %v5956
    %v5958 = vpop.f32.mrf.mxu0
    %v5959 = vadd.f32 %v5916, %v5958
    %v5960 = vpop.f32.mrf.mxu0
    %v5961 = vadd.f32 %v5918, %v5960
    %5962 = vdwg.mxu0
    %5963 = vmatprep.subr.bf16.mxu0 %v5700
    %5964 = vmatpush1.bf16.msra.mxu0 %v5699
    %5965 = vmatprep.subr.bf16.mxu0 %v5698
    %5966 = vmatpush1.bf16.msra.mxu0 %v5697
    %5967 = vmatprep.subr.bf16.mxu0 %v5696
    %5968 = vmatpush1.bf16.msra.mxu0 %v5695
    %5969 = vmatprep.subr.bf16.mxu0 %v5694
    %5970 = vmatpush1.bf16.msra.mxu0 %v5693
    %5971 = vmatprep.subr.bf16.mxu0 %v5692
    %5972 = vmatpush1.bf16.msra.mxu0 %v5691
    %5973 = vmatprep.subr.bf16.mxu0 %v5690
    %5974 = vmatpush1.bf16.msra.mxu0 %v5689
    %5975 = vmatprep.subr.bf16.mxu0 %v5688
    %5976 = vmatpush1.bf16.msra.mxu0 %v5687
    %5977 = vmatprep.subr.bf16.mxu0 %v5686
    %5978 = vmatpush1.bf16.msra.mxu0 %v5685
    %5979 = vmatprep.subr.bf16.mxu0 %v5716
    %5980 = vmatpush2.bf16.msra.mxu0 %v5715
    %5981 = vmatprep.subr.bf16.mxu0 %v5714
    %5982 = vmatpush2.bf16.msra.mxu0 %v5713
    %5983 = vmatprep.subr.bf16.mxu0 %v5712
    %5984 = vmatpush2.bf16.msra.mxu0 %v5711
    %5985 = vmatprep.subr.bf16.mxu0 %v5710
    %5986 = vmatpush2.bf16.msra.mxu0 %v5709
    %5987 = vmatprep.subr.bf16.mxu0 %v5708
    %5988 = vmatpush2.bf16.msra.mxu0 %v5707
    %5989 = vmatprep.subr.bf16.mxu0 %v5706
    %5990 = vmatpush2.bf16.msra.mxu0 %v5705
    %5991 = vmatprep.subr.bf16.mxu0 %v5704
    %5992 = vmatpush2.bf16.msra.mxu0 %v5703
    %5993 = vmatprep.subr.bf16.mxu0 %v5702
    %5994 = vmatpush2.bf16.msra.mxu0 %v5701
    %5995 = vmatprep.mubr.bf16.mxu0 %v5088
    %5996 = vmatmul.mubr.bf16.gmra.mxu0 %v5087
    %v5997 = vpop.f32.mrf.mxu0
    %v5998 = vadd.f32 %v5955, %v5997
    %v5999 = vpop.f32.mrf.mxu0
    %v6000 = vadd.f32 %v5957, %v5999
    %v6001 = vpop.f32.mrf.mxu0
    %v6002 = vadd.f32 %v5959, %v6001
    %v6003 = vpop.f32.mrf.mxu0
    %v6004 = vadd.f32 %v5961, %v6003
    %6005 = vdwg.mxu0
    %6006 = vmatprep.subr.bf16.mxu0 %v5732
    %6007 = vmatpush1.bf16.msra.mxu0 %v5731
    %6008 = vmatprep.subr.bf16.mxu0 %v5730
    %6009 = vmatpush1.bf16.msra.mxu0 %v5729
    %6010 = vmatprep.subr.bf16.mxu0 %v5728
    %6011 = vmatpush1.bf16.msra.mxu0 %v5727
    %6012 = vmatprep.subr.bf16.mxu0 %v5726
    %6013 = vmatpush1.bf16.msra.mxu0 %v5725
    %6014 = vmatprep.subr.bf16.mxu0 %v5724
    %6015 = vmatpush1.bf16.msra.mxu0 %v5723
    %6016 = vmatprep.subr.bf16.mxu0 %v5722
    %6017 = vmatpush1.bf16.msra.mxu0 %v5721
    %6018 = vmatprep.subr.bf16.mxu0 %v5720
    %6019 = vmatpush1.bf16.msra.mxu0 %v5719
    %6020 = vmatprep.subr.bf16.mxu0 %v5718
    %6021 = vmatpush1.bf16.msra.mxu0 %v5717
    %6022 = vmatprep.subr.bf16.mxu0 %v5748
    %6023 = vmatpush2.bf16.msra.mxu0 %v5747
    %6024 = vmatprep.subr.bf16.mxu0 %v5746
    %6025 = vmatpush2.bf16.msra.mxu0 %v5745
    %6026 = vmatprep.subr.bf16.mxu0 %v5744
    %6027 = vmatpush2.bf16.msra.mxu0 %v5743
    %6028 = vmatprep.subr.bf16.mxu0 %v5742
    %6029 = vmatpush2.bf16.msra.mxu0 %v5741
    %6030 = vmatprep.subr.bf16.mxu0 %v5740
    %6031 = vmatpush2.bf16.msra.mxu0 %v5739
    %6032 = vmatprep.subr.bf16.mxu0 %v5738
    %6033 = vmatpush2.bf16.msra.mxu0 %v5737
    %6034 = vmatprep.subr.bf16.mxu0 %v5736
    %6035 = vmatpush2.bf16.msra.mxu0 %v5735
    %6036 = vmatprep.subr.bf16.mxu0 %v5734
    %6037 = vmatpush2.bf16.msra.mxu0 %v5733
    %6038 = vmatprep.mubr.bf16.mxu0 %v5090
    %6039 = vmatmul.mubr.bf16.gmra.mxu0 %v5089
    %v6040 = vpop.f32.mrf.mxu0
    %v6041 = vadd.f32 %v5998, %v6040
    %v6042 = vpop.f32.mrf.mxu0
    %v6043 = vadd.f32 %v6000, %v6042
    %v6044 = vpop.f32.mrf.mxu0
    %v6045 = vadd.f32 %v6002, %v6044
    %v6046 = vpop.f32.mrf.mxu0
    %v6047 = vadd.f32 %v6004, %v6046
    %6048 = vdwg.mxu0
    %v6049 = vmax.f32 %v6041, 0.0
    %v6050 = vmax.f32 %v6043, 0.0
    %v6051 = vmax.f32 %v6045, 0.0
    %v6052 = vmax.f32 %v6047, 0.0
    %v6053 = vpack.c.bf16 %v6051, %v6049
    %v6054 = vpack.c.bf16 %v6052, %v6050
    %v6055 = vld [vmem:[#allocation11] sm:$0xf]
    %v6056 = vld [vmem:[#allocation11 + $0x4] sm:$0xf]
    %v6057 = vld [vmem:[#allocation11 + $0x8] sm:$0xf]
    %v6058 = vld [vmem:[#allocation11 + $0xc] sm:$0xf]
    %v6059 = vld [vmem:[#allocation11 + $0x10] sm:$0xf]
    %v6060 = vld [vmem:[#allocation11 + $0x14] sm:$0xf]
    %v6061 = vld [vmem:[#allocation11 + $0x18] sm:$0xf]
    %v6062 = vld [vmem:[#allocation11 + $0x1c] sm:$0xf]
    %v6063 = vld [vmem:[#allocation11 + $0x20] sm:$0xf]
    %v6064 = vld [vmem:[#allocation11 + $0x24] sm:$0xf]
    %v6065 = vld [vmem:[#allocation11 + $0x28] sm:$0xf]
    %v6066 = vld [vmem:[#allocation11 + $0x2c] sm:$0xf]
    %v6067 = vld [vmem:[#allocation11 + $0x30] sm:$0xf]
    %v6068 = vld [vmem:[#allocation11 + $0x34] sm:$0xf]
    %v6069 = vld [vmem:[#allocation11 + $0x38] sm:$0xf]
    %v6070 = vld [vmem:[#allocation11 + $0x3c] sm:$0xf]
    %v6071 = vld [vmem:[#allocation11 + $0x40] sm:$0xf]
    %v6072 = vld [vmem:[#allocation11 + $0x44] sm:$0xf]
    %v6073 = vld [vmem:[#allocation11 + $0x48] sm:$0xf]
    %v6074 = vld [vmem:[#allocation11 + $0x4c] sm:$0xf]
    %v6075 = vld [vmem:[#allocation11 + $0x50] sm:$0xf]
    %v6076 = vld [vmem:[#allocation11 + $0x54] sm:$0xf]
    %v6077 = vld [vmem:[#allocation11 + $0x58] sm:$0xf]
    %v6078 = vld [vmem:[#allocation11 + $0x5c] sm:$0xf]
    %v6079 = vld [vmem:[#allocation11 + $0x60] sm:$0xf]
    %v6080 = vld [vmem:[#allocation11 + $0x64] sm:$0xf]
    %v6081 = vld [vmem:[#allocation11 + $0x68] sm:$0xf]
    %v6082 = vld [vmem:[#allocation11 + $0x6c] sm:$0xf]
    %v6083 = vld [vmem:[#allocation11 + $0x70] sm:$0xf]
    %v6084 = vld [vmem:[#allocation11 + $0x74] sm:$0xf]
    %v6085 = vld [vmem:[#allocation11 + $0x78] sm:$0xf]
    %v6086 = vld [vmem:[#allocation11 + $0x7c] sm:$0xf]
    %v6087 = vlaneseq
    %v6088 = vshrl.u32 %v6087, 7
    %v6089 = vsub.s32 2, %v6088
    %v6090 = vrot.slane %v128, %v6089
    %v6123 = vunpack.c.l.b16 %v6055
    %v6124 = vunpack.c.l.b16 %v6056
    %v6125 = vunpack.c.l.b16 %v6057
    %v6126 = vunpack.c.l.b16 %v6058
    %v6127 = vunpack.c.l.b16 %v6059
    %v6128 = vunpack.c.l.b16 %v6060
    %v6129 = vunpack.c.l.b16 %v6061
    %v6130 = vunpack.c.l.b16 %v6062
    %v6131 = vunpack.c.l.b16 %v6063
    %v6132 = vunpack.c.l.b16 %v6064
    %v6133 = vunpack.c.l.b16 %v6065
    %v6134 = vunpack.c.l.b16 %v6066
    %v6135 = vunpack.c.l.b16 %v6067
    %v6136 = vunpack.c.l.b16 %v6068
    %v6137 = vunpack.c.l.b16 %v6069
    %v6138 = vunpack.c.l.b16 %v6070
    %v6139 = vunpack.c.l.b16 %v6071
    %v6140 = vunpack.c.l.b16 %v6072
    %v6141 = vunpack.c.l.b16 %v6073
    %v6142 = vunpack.c.l.b16 %v6074
    %v6143 = vunpack.c.l.b16 %v6075
    %v6144 = vunpack.c.l.b16 %v6076
    %v6145 = vunpack.c.l.b16 %v6077
    %v6146 = vunpack.c.l.b16 %v6078
    %v6147 = vunpack.c.l.b16 %v6079
    %v6148 = vunpack.c.l.b16 %v6080
    %v6149 = vunpack.c.l.b16 %v6081
    %v6150 = vunpack.c.l.b16 %v6082
    %v6151 = vunpack.c.l.b16 %v6083
    %v6152 = vunpack.c.l.b16 %v6084
    %v6153 = vunpack.c.l.b16 %v6085
    %v6154 = vunpack.c.l.b16 %v6086
    %v6155 = vpack.c.b16 %v6124, %v6123
    %v6156 = vpack.c.b16 %v6126, %v6125
    %v6157 = vpack.c.b16 %v6128, %v6127
    %v6158 = vpack.c.b16 %v6130, %v6129
    %v6159 = vpack.c.b16 %v6132, %v6131
    %v6160 = vpack.c.b16 %v6134, %v6133
    %v6161 = vpack.c.b16 %v6136, %v6135
    %v6162 = vpack.c.b16 %v6138, %v6137
    %v6163 = vpack.c.b16 %v6140, %v6139
    %v6164 = vpack.c.b16 %v6142, %v6141
    %v6165 = vpack.c.b16 %v6144, %v6143
    %v6166 = vpack.c.b16 %v6146, %v6145
    %v6167 = vpack.c.b16 %v6148, %v6147
    %v6168 = vpack.c.b16 %v6150, %v6149
    %v6169 = vpack.c.b16 %v6152, %v6151
    %v6170 = vpack.c.b16 %v6154, %v6153
    %6187 = vmatprep.subr.bf16.mxu0 0
    %6188 = vmatpush1.bf16.msra.mxu0 %v6162
    %6189 = vmatprep.subr.bf16.mxu0 0
    %6190 = vmatpush1.bf16.msra.mxu0 %v6161
    %6191 = vmatprep.subr.bf16.mxu0 0
    %6192 = vmatpush1.bf16.msra.mxu0 %v6160
    %6193 = vmatprep.subr.bf16.mxu0 0
    %6194 = vmatpush1.bf16.msra.mxu0 %v6159
    %6195 = vmatprep.subr.bf16.mxu0 0
    %6196 = vmatpush1.bf16.msra.mxu0 %v6158
    %6197 = vmatprep.subr.bf16.mxu0 0
    %6198 = vmatpush1.bf16.msra.mxu0 %v6157
    %6199 = vmatprep.subr.bf16.mxu0 0
    %6200 = vmatpush1.bf16.msra.mxu0 %v6156
    %6201 = vmatprep.subr.bf16.mxu0 0
    %6202 = vmatpush1.bf16.msra.mxu0 %v6155
    %6203 = vmatprep.subr.bf16.mxu0 0
    %6204 = vmatpush2.bf16.msra.mxu0 %v6170
    %6205 = vmatprep.subr.bf16.mxu0 0
    %6206 = vmatpush2.bf16.msra.mxu0 %v6169
    %6207 = vmatprep.subr.bf16.mxu0 0
    %6208 = vmatpush2.bf16.msra.mxu0 %v6168
    %6209 = vmatprep.subr.bf16.mxu0 0
    %6210 = vmatpush2.bf16.msra.mxu0 %v6167
    %6211 = vmatprep.subr.bf16.mxu0 0
    %6212 = vmatpush2.bf16.msra.mxu0 %v6166
    %6213 = vmatprep.subr.bf16.mxu0 0
    %6214 = vmatpush2.bf16.msra.mxu0 %v6165
    %6215 = vmatprep.subr.bf16.mxu0 0
    %6216 = vmatpush2.bf16.msra.mxu0 %v6164
    %6217 = vmatprep.subr.bf16.mxu0 0
    %6218 = vmatpush2.bf16.msra.mxu0 %v6163
    %6219 = vmatprep.mubr.bf16.mxu0 %v6054
    %6220 = vmatmul.mubr.bf16.gmra.mxu0 %v6053
    %v6221 = vpop.f32.mrf.mxu0
    %v6222 = vadd.f32 %v6090, %v6221
    %v6223 = vpop.f32.mrf.mxu0
    %v6224 = vpop.f32.mrf.mxu0
    %v6225 = vadd.f32 %v6090, %v6224
    %v6226 = vpop.f32.mrf.mxu0
    %6227 = vdwg.mxu0
    %6228 = vst [vmem:[%s10] sm:$0xff] %v6222
    %6229 = vst [vmem:[%s10 + $0x8] sm:$0xff] %v6225
    // Predicated region
    $region70: #{detector_forward.1} parent=1 // pred_check
      _
    $region71: #{detector_forward.1} parent=1 // pred_check_branch
      %6231 = sbr.rel (0) target = $region73
    $region72: #{detector_forward.1} parent=1 // pred_region
      _
    $region73: #{detector_forward.1} parent=1 // pred_fallthru
      _
    // Predicated region
    $region74: #{detector_forward.1} parent=1 // pred_check
      _
    $region75: #{detector_forward.1} parent=1 // pred_check_branch
      %6233 = sbr.rel (0) target = $region77
    $region76: #{detector_forward.1} parent=1 // pred_region
      _
    $region77: #{detector_forward.1} parent=1 // pred_fallthru
      _
    %6234 = vsyncpa [#allocation4], 1
    %6235 = vsyncpa [#allocation6], 1
    %6236 = vsyncpa [#allocation9], 1
    %6237 = vsyncpa [#allocation12], 1

</llo_original>
